<compile_context>
chip_gen: v7x
topology: tpu7x:2x2x1
jax: 0.10.0
libtpu: 0.0.40
codegen_flags: <defaults>
</compile_context>

<pallas_src>
import functools
import math

import jax
import jax.numpy as jnp
from jax import lax
from jax.experimental import pallas as pl
from jax.experimental.pallas import tpu as pltpu

_MASK = 1e30   # magnitude of the additive non-edge mask


# ----------------------------------------------------------------------------
# Fused whole-network kernel
# ----------------------------------------------------------------------------
def _gatnet_kernel(mb_ref, h_ref, *refs, layer_meta, negative_slope):
    # mb_ref : (N, N) f32 additive mask, 0.0 on edges (adj_t[v,u]=1), -1e30 on non-edges.
    # h_ref  : (N, F_in0) f32 input node features.
    # refs   : per layer (w_all bf16 (F_in, H*D+H), w_elT bf16 (H, F_in), bias f32 (1, H*D)),
    #          followed by the output ref (N, H_last*D_last).
    out_ref = refs[-1]
    prm = refs[:-1]

    mask_bias = mb_ref[...]
    edge = mask_bias >= 0.0                 # boolean edge mask, shared by all layers / heads
    h = h_ref[...].astype(jnp.float32)

    for li, (num_heads, head_dim) in enumerate(layer_meta):
        w_all_ref, w_elT_ref, b_ref = prm[3 * li: 3 * li + 3]
        hd = num_heads * head_dim

        h_bf = h.astype(jnp.bfloat16)
        # Fused projection: node features + destination ("right") attention term.
        proj = jnp.dot(h_bf, w_all_ref[...], preferred_element_type=jnp.float32)
        feat = proj[:, :hd]                                   # (N, H*D), lane-tile aligned
        er = proj[:, hd:hd + num_heads]                       # (N, H), starts at lane 128
        # Source ("left") attention term directly in transposed (H, N) layout: one NT matmul
        # contracting the feature axis (replaces H per-head K=1 MXU outer products).
        el_t = lax.dot_general(w_elT_ref[...], h_bf, (((1,), (1,)), ((), ())),
                               preferred_element_type=jnp.float32)   # (H, N)
        feat_bf = feat.astype(jnp.bfloat16)

        head_outs = []
        for head in range(num_heads):
            er_col = er[:, head:head + 1]                     # (N, 1): dst term
            el_row = el_t[head:head + 1, :]                   # (1, N): src term
            e = er_col + el_row                               # e[v, u] = er[v] + el[u]
            e = jnp.where(e > 0, e, negative_slope * e)       # LeakyReLU
            e = e + mask_bias                                 # additive non-edge mask
            m = jnp.max(e, axis=-1, keepdims=True)            # softmax over sources u
            p = jnp.where(edge, jnp.exp(e - m), 0.0)          # exact 0 off-edge / 0-in-degree
            s = jnp.sum(p, axis=-1, keepdims=True)
            inv = pl.reciprocal(jnp.where(s > 0.0, s, 1.0), approx=True)
            alpha = (p * inv).astype(jnp.bfloat16)            # (N, N) attention weights
            feat_h = feat_bf[:, head * head_dim:(head + 1) * head_dim]
            head_outs.append(jnp.dot(alpha, feat_h,
                                     preferred_element_type=jnp.float32))   # (N, D)

        rst = jnp.concatenate(head_outs, axis=-1) + b_ref[...]      # (N, H*D), lane-dense
        # ELU activation (GATNet applies `activation` on every layer).
        h = jnp.where(rst > 0, rst, jnp.exp(jnp.minimum(rst, 0.0)) - 1.0)

    out_ref[...] = h.astype(out_ref.dtype)


def gatnet_forward(adj, feats, layer_params, *, negative_slope=0.2):
    """adj[u, v] = 1 iff directed edge u -> v (dense stand-in for the DGL graph g)."""
    n = feats.shape[0]
    adj_t = jnp.transpose(adj).astype(jnp.float32)          # built once per forward
    mask_bias = (adj_t - 1.0) * _MASK                        # 0 on edges, -1e30 off-edge

    layer_meta = tuple((lp["num_heads"], lp["head_dim"]) for lp in layer_params)
    hd_out = layer_meta[-1][0] * layer_meta[-1][1]

    operands = [mask_bias, feats.astype(jnp.float32)]
    for lp in layer_params:
        operands += [lp["w_all_bf"], lp["w_elT_bf"], lp["bias"]]

    # Rough cost so XLA schedules around the fused custom call.
    flops, trans, bytes_acc = 0, 0, 4 * (n * n + feats.size + n * hd_out)
    f_in = feats.shape[1]
    for nh, d in layer_meta:
        hd = nh * d
        flops += 2 * n * f_in * (hd + 2 * nh) + 2 * n * n * hd + 8 * n * n * nh
        trans += n * n * nh + n * hd + n * nh
        bytes_acc += 2 * (f_in * (hd + nh) + nh * f_in) + 4 * hd
        f_in = hd

    vmem = pl.BlockSpec(memory_space=pltpu.MemorySpace.VMEM)
    kernel = functools.partial(_gatnet_kernel, layer_meta=layer_meta,
                               negative_slope=negative_slope)
    return pl.pallas_call(
        kernel,
        out_shape=jax.ShapeDtypeStruct((n, hd_out), jnp.float32),
        in_specs=[vmem] * len(operands),
        out_specs=vmem,
        cost_estimate=pl.CostEstimate(flops=flops, transcendentals=trans,
                                      bytes_accessed=bytes_acc),
    )(*operands)


# ----------------------------------------------------------------------------
# Parameters (DGL-GATConv style: xavier fc + attn vectors + bias). Attention
# vectors are folded into the fc weight for the kernel: (h @ W)*a == h @ (W*a).
# ----------------------------------------------------------------------------
def build_gatnet_params(key, num_layers, in_dim, num_hidden, heads):
    params = []
    f_in = in_dim
    gain = math.sqrt(2.0)
    for l in range(num_layers):
        nh = heads[l]
        key, kw, kl, kr, kb = jax.random.split(key, 5)
        w = gain * math.sqrt(2.0 / (f_in + nh * num_hidden)) * \
            jax.random.normal(kw, (f_in, nh, num_hidden), jnp.float32)
        a_std = gain * math.sqrt(2.0 / (num_hidden + 1))
        attn_l = a_std * jax.random.normal(kl, (nh, num_hidden), jnp.float32)
        attn_r = a_std * jax.random.normal(kr, (nh, num_hidden), jnp.float32)
        bias = 0.01 * jax.random.normal(kb, (nh * num_hidden,), jnp.float32)

        w_feat = w.reshape(f_in, nh * num_hidden)                    # (F_in, H*D)
        w_el = jnp.einsum("fhd,hd->fh", w, attn_l)                   # (F_in, H)
        w_er = jnp.einsum("fhd,hd->fh", w, attn_r)                   # (F_in, H)
        params.append({
            # f32 copies (references)
            "w_feat": w_feat, "w_el": w_el, "w_er": w_er,
            "bias": bias.reshape(1, nh * num_hidden),
            # kernel operands (bf16 MXU inputs)
            "w_all_bf": jnp.concatenate([w_feat, w_er], axis=1).astype(jnp.bfloat16),
            "w_elT_bf": jnp.transpose(w_el).astype(jnp.bfloat16),
            "num_heads": nh, "head_dim": num_hidden,
        })
        f_in = nh * num_hidden
    return params


# ----------------------------------------------------------------------------
# Pure-JAX reference.
#   mxu_dtype=float32  -> full-f32 module (eval-mode) semantics.
#   mxu_dtype=bfloat16 -> mirrors the kernel's bf16 MXU operands (tight equivalence check).
# ----------------------------------------------------------------------------
def gatnet_reference(adj, feats, layer_params, *, negative_slope=0.2,
                     mxu_dtype=jnp.float32):
    adj_t = jnp.transpose(adj).astype(jnp.float32)
    edge = adj_t > 0.0
    mask_bias = (adj_t - 1.0) * _MASK
    h = feats.astype(jnp.float32)
    for lp in layer_params:
        nh, d = lp["num_heads"], lp["head_dim"]
        n = h.shape[0]
        h_c = h.astype(mxu_dtype)
        feat = jnp.dot(h_c, lp["w_feat"].astype(mxu_dtype),
                       preferred_element_type=jnp.float32)               # (N, H*D)
        er = jnp.dot(h_c, lp["w_er"].astype(mxu_dtype),
                     preferred_element_type=jnp.float32)                 # (N, H)
        el = jnp.dot(h_c, lp["w_el"].astype(mxu_dtype),
                     preferred_element_type=jnp.float32)                 # (N, H)
        e = er[:, None, :] + el[None, :, :]                              # (dst, src, H)
        e = jnp.where(e > 0, e, negative_slope * e)                      # LeakyReLU
        e = e + mask_bias[:, :, None]
        m = jnp.max(e, axis=1, keepdims=True)
        p = jnp.where(edge[:, :, None], jnp.exp(e - m), 0.0)
        s = jnp.sum(p, axis=1, keepdims=True)
        alpha = p / jnp.where(s > 0.0, s, 1.0)
        rst = jnp.einsum("vuh,uhd->vhd", alpha.astype(mxu_dtype),
                         feat.reshape(n, nh, d).astype(mxu_dtype),
                         preferred_element_type=jnp.float32).reshape(n, nh * d)
        rst = rst + lp["bias"]
        h = jnp.where(rst > 0, rst, jnp.exp(jnp.minimum(rst, 0.0)) - 1.0)   # ELU
    return h


if __name__ == "__main__":
    num_layers, in_dim, num_hidden = 2, 16, 32
    heads = [4, 4]                      # heads * num_hidden = 128 -> lane-dense layer outputs
    negative_slope = 0.2
    n_nodes = 64

    key = jax.random.PRNGKey(0)
    key, k_adj, k_feat = jax.random.split(key, 3)

    # Random directed graph with self loops; node 0 is made zero-in-degree to exercise
    # the allow_zero_in_degree=True path.
    adj = (jax.random.uniform(k_adj, (n_nodes, n_nodes)) < 0.15).astype(jnp.float32)
    adj = jnp.maximum(adj, jnp.eye(n_nodes, dtype=jnp.float32))
    adj = adj.at[:, 0].set(0.0)

    feats = jax.random.normal(k_feat, (n_nodes, in_dim), jnp.float32)
    params = build_gatnet_params(key, num_layers, in_dim, num_hidden, heads)

    out = gatnet_forward(adj, feats, params, negative_slope=negative_slope)
    out = jax.block_until_ready(out)
    assert out.shape == (n_nodes, heads[-1] * num_hidden) and out.dtype == jnp.float32

    # Tight check vs a reference that mirrors the kernel's bf16 MXU-operand precision.
    ref_bf = gatnet_reference(adj, feats, params, negative_slope=negative_slope,
                              mxu_dtype=jnp.bfloat16)
    err_bf = jnp.max(jnp.abs(out - ref_bf))
    assert jnp.allclose(out, ref_bf, atol=3e-2, rtol=3e-2), (
        f"mismatch vs precision-matched reference: max abs err {err_bf:.3e}")

    # Semantic check vs full-f32 module math; looser tolerance accounts for bf16 MXU
    # operands (softmax amplifies small logit drift over two layers).
    ref_f32 = gatnet_reference(adj, feats, params, negative_slope=negative_slope,
                               mxu_dtype=jnp.float32)
    err_f32 = jnp.max(jnp.abs(out - ref_f32))
    assert jnp.allclose(out, ref_f32, atol=2.5e-1, rtol=1e-1), (
        f"mismatch vs f32 reference: max abs err {err_f32:.3e}")

    print("KERNEL_OK")
</pallas_src>

<mosaic_0001>
module attributes {stable_mosaic.version = 11 : i64} {
  func.func @_gatnet_kernel(%arg0: memref<64x64xf32, #tpu.memory_space<vmem>>, %arg1: memref<64x16xf32, #tpu.memory_space<vmem>>, %arg2: memref<16x132xbf16, #tpu.memory_space<vmem>>, %arg3: memref<4x16xbf16, #tpu.memory_space<vmem>>, %arg4: memref<1x128xf32, #tpu.memory_space<vmem>>, %arg5: memref<128x132xbf16, #tpu.memory_space<vmem>>, %arg6: memref<4x128xbf16, #tpu.memory_space<vmem>>, %arg7: memref<1x128xf32, #tpu.memory_space<vmem>>, %arg8: memref<64x128xf32, #tpu.memory_space<vmem>>) attributes {dimension_semantics = [], scalar_prefetch = 0 : i64, scratch_operands = 0 : i64, tpu.core_type = #tpu.core_type<tc>} {
    %c0 = arith.constant 0 : index
    %c0_0 = arith.constant 0 : index
    %0 = vector.load %arg0[%c0, %c0_0] : memref<64x64xf32, #tpu.memory_space<vmem>>, vector<64x64xf32>
    %cst = arith.constant 0.000000e+00 : f32
    %1 = vector.broadcast %cst : f32 to vector<64x64xf32>
    %2 = arith.cmpf oge, %0, %1 : vector<64x64xf32>
    %c0_1 = arith.constant 0 : index
    %c0_2 = arith.constant 0 : index
    %3 = vector.load %arg1[%c0_1, %c0_2] : memref<64x16xf32, #tpu.memory_space<vmem>>, vector<64x16xf32>
    %4 = arith.truncf %3 : vector<64x16xf32> to vector<64x16xbf16>
    %c0_3 = arith.constant 0 : index
    %c0_4 = arith.constant 0 : index
    %5 = vector.load %arg2[%c0_3, %c0_4] : memref<16x132xbf16, #tpu.memory_space<vmem>>, vector<16x132xbf16>
    %cst_5 = arith.constant dense<0.000000e+00> : vector<64x132xf32>
    %6 = tpu.matmul %4, %5, %cst_5 {dimension_numbers = #tpu.dot_dimension_numbers<[1], [0], [0], [1], [0, 0, 1, 1], [], []>} : vector<64x16xbf16>, vector<16x132xbf16>, vector<64x132xf32> -> vector<64x132xf32>
    %7 = vector.extract_strided_slice %6 {offsets = [0, 0], sizes = [64, 128], strides = [1, 1]} : vector<64x132xf32> to vector<64x128xf32>
    %8 = vector.extract_strided_slice %6 {offsets = [0, 128], sizes = [64, 4], strides = [1, 1]} : vector<64x132xf32> to vector<64x4xf32>
    %c0_6 = arith.constant 0 : index
    %c0_7 = arith.constant 0 : index
    %9 = vector.load %arg3[%c0_6, %c0_7] : memref<4x16xbf16, #tpu.memory_space<vmem>>, vector<4x16xbf16>
    %cst_8 = arith.constant dense<0.000000e+00> : vector<4x64xf32>
    %10 = tpu.matmul %9, %4, %cst_8 {dimension_numbers = #tpu.dot_dimension_numbers<[1], [1], [0], [0], [0, 0, 1, 0], [], []>} : vector<4x16xbf16>, vector<64x16xbf16>, vector<4x64xf32> -> vector<4x64xf32>
    %11 = arith.truncf %7 : vector<64x128xf32> to vector<64x128xbf16>
    %12 = vector.extract_strided_slice %8 {offsets = [0, 0], sizes = [64, 1], strides = [1, 1]} : vector<64x4xf32> to vector<64x1xf32>
    %13 = vector.extract_strided_slice %10 {offsets = [0, 0], sizes = [1, 64], strides = [1, 1]} : vector<4x64xf32> to vector<1x64xf32>
    %14 = vector.broadcast %12 : vector<64x1xf32> to vector<64x64xf32>
    %15 = vector.broadcast %13 : vector<1x64xf32> to vector<64x64xf32>
    %16 = arith.addf %14, %15 : vector<64x64xf32>
    %cst_9 = arith.constant 0.000000e+00 : f32
    %17 = vector.broadcast %cst_9 : f32 to vector<64x64xf32>
    %18 = arith.cmpf ogt, %16, %17 : vector<64x64xf32>
    %cst_10 = arith.constant 2.000000e-01 : f32
    %19 = vector.broadcast %cst_10 : f32 to vector<64x64xf32>
    %20 = arith.mulf %19, %16 : vector<64x64xf32>
    %21 = arith.select %18, %16, %20 : vector<64x64xi1>, vector<64x64xf32>
    %22 = arith.addf %21, %0 : vector<64x64xf32>
    %cst_11 = arith.constant dense<0xFF800000> : vector<64xf32>
    %23 = vector.multi_reduction <maximumf>, %22, %cst_11 [1] : vector<64x64xf32> to vector<64xf32>
    %24 = vector.shape_cast %23 : vector<64xf32> to vector<64x1xf32>
    %25 = vector.broadcast %24 : vector<64x1xf32> to vector<64x64xf32>
    %26 = arith.subf %22, %25 : vector<64x64xf32>
    %27 = math.exp %26 : vector<64x64xf32>
    %cst_12 = arith.constant 0.000000e+00 : f32
    %28 = vector.broadcast %cst_12 : f32 to vector<64x64xf32>
    %29 = arith.select %2, %27, %28 : vector<64x64xi1>, vector<64x64xf32>
    %cst_13 = arith.constant dense<0.000000e+00> : vector<64xf32>
    %30 = vector.multi_reduction <add>, %29, %cst_13 [1] : vector<64x64xf32> to vector<64xf32>
    %31 = vector.shape_cast %30 : vector<64xf32> to vector<64x1xf32>
    %cst_14 = arith.constant 0.000000e+00 : f32
    %32 = vector.broadcast %cst_14 : f32 to vector<64x1xf32>
    %33 = arith.cmpf ogt, %31, %32 : vector<64x1xf32>
    %cst_15 = arith.constant 1.000000e+00 : f32
    %34 = vector.broadcast %cst_15 : f32 to vector<64x1xf32>
    %35 = arith.select %33, %31, %34 : vector<64x1xi1>, vector<64x1xf32>
    %36 = tpu.reciprocal %35 {approx = true} : vector<64x1xf32> -> vector<64x1xf32>
    %37 = vector.broadcast %36 : vector<64x1xf32> to vector<64x64xf32>
    %38 = arith.mulf %29, %37 : vector<64x64xf32>
    %39 = arith.truncf %38 : vector<64x64xf32> to vector<64x64xbf16>
    %40 = vector.extract_strided_slice %11 {offsets = [0, 0], sizes = [64, 32], strides = [1, 1]} : vector<64x128xbf16> to vector<64x32xbf16>
    %cst_16 = arith.constant dense<0.000000e+00> : vector<64x32xf32>
    %41 = tpu.matmul %39, %40, %cst_16 {dimension_numbers = #tpu.dot_dimension_numbers<[1], [0], [0], [1], [0, 0, 1, 1], [], []>} : vector<64x64xbf16>, vector<64x32xbf16>, vector<64x32xf32> -> vector<64x32xf32>
    %42 = vector.extract_strided_slice %8 {offsets = [0, 1], sizes = [64, 1], strides = [1, 1]} : vector<64x4xf32> to vector<64x1xf32>
    %43 = vector.extract_strided_slice %10 {offsets = [1, 0], sizes = [1, 64], strides = [1, 1]} : vector<4x64xf32> to vector<1x64xf32>
    %44 = vector.broadcast %42 : vector<64x1xf32> to vector<64x64xf32>
    %45 = vector.broadcast %43 : vector<1x64xf32> to vector<64x64xf32>
    %46 = arith.addf %44, %45 : vector<64x64xf32>
    %cst_17 = arith.constant 0.000000e+00 : f32
    %47 = vector.broadcast %cst_17 : f32 to vector<64x64xf32>
    %48 = arith.cmpf ogt, %46, %47 : vector<64x64xf32>
    %cst_18 = arith.constant 2.000000e-01 : f32
    %49 = vector.broadcast %cst_18 : f32 to vector<64x64xf32>
    %50 = arith.mulf %49, %46 : vector<64x64xf32>
    %51 = arith.select %48, %46, %50 : vector<64x64xi1>, vector<64x64xf32>
    %52 = arith.addf %51, %0 : vector<64x64xf32>
    %cst_19 = arith.constant dense<0xFF800000> : vector<64xf32>
    %53 = vector.multi_reduction <maximumf>, %52, %cst_19 [1] : vector<64x64xf32> to vector<64xf32>
    %54 = vector.shape_cast %53 : vector<64xf32> to vector<64x1xf32>
    %55 = vector.broadcast %54 : vector<64x1xf32> to vector<64x64xf32>
    %56 = arith.subf %52, %55 : vector<64x64xf32>
    %57 = math.exp %56 : vector<64x64xf32>
    %cst_20 = arith.constant 0.000000e+00 : f32
    %58 = vector.broadcast %cst_20 : f32 to vector<64x64xf32>
    %59 = arith.select %2, %57, %58 : vector<64x64xi1>, vector<64x64xf32>
    %cst_21 = arith.constant dense<0.000000e+00> : vector<64xf32>
    %60 = vector.multi_reduction <add>, %59, %cst_21 [1] : vector<64x64xf32> to vector<64xf32>
    %61 = vector.shape_cast %60 : vector<64xf32> to vector<64x1xf32>
    %cst_22 = arith.constant 0.000000e+00 : f32
    %62 = vector.broadcast %cst_22 : f32 to vector<64x1xf32>
    %63 = arith.cmpf ogt, %61, %62 : vector<64x1xf32>
    %cst_23 = arith.constant 1.000000e+00 : f32
    %64 = vector.broadcast %cst_23 : f32 to vector<64x1xf32>
    %65 = arith.select %63, %61, %64 : vector<64x1xi1>, vector<64x1xf32>
    %66 = tpu.reciprocal %65 {approx = true} : vector<64x1xf32> -> vector<64x1xf32>
    %67 = vector.broadcast %66 : vector<64x1xf32> to vector<64x64xf32>
    %68 = arith.mulf %59, %67 : vector<64x64xf32>
    %69 = arith.truncf %68 : vector<64x64xf32> to vector<64x64xbf16>
    %70 = vector.extract_strided_slice %11 {offsets = [0, 32], sizes = [64, 32], strides = [1, 1]} : vector<64x128xbf16> to vector<64x32xbf16>
    %cst_24 = arith.constant dense<0.000000e+00> : vector<64x32xf32>
    %71 = tpu.matmul %69, %70, %cst_24 {dimension_numbers = #tpu.dot_dimension_numbers<[1], [0], [0], [1], [0, 0, 1, 1], [], []>} : vector<64x64xbf16>, vector<64x32xbf16>, vector<64x32xf32> -> vector<64x32xf32>
    %72 = vector.extract_strided_slice %8 {offsets = [0, 2], sizes = [64, 1], strides = [1, 1]} : vector<64x4xf32> to vector<64x1xf32>
    %73 = vector.extract_strided_slice %10 {offsets = [2, 0], sizes = [1, 64], strides = [1, 1]} : vector<4x64xf32> to vector<1x64xf32>
    %74 = vector.broadcast %72 : vector<64x1xf32> to vector<64x64xf32>
    %75 = vector.broadcast %73 : vector<1x64xf32> to vector<64x64xf32>
    %76 = arith.addf %74, %75 : vector<64x64xf32>
    %cst_25 = arith.constant 0.000000e+00 : f32
    %77 = vector.broadcast %cst_25 : f32 to vector<64x64xf32>
    %78 = arith.cmpf ogt, %76, %77 : vector<64x64xf32>
    %cst_26 = arith.constant 2.000000e-01 : f32
    %79 = vector.broadcast %cst_26 : f32 to vector<64x64xf32>
    %80 = arith.mulf %79, %76 : vector<64x64xf32>
    %81 = arith.select %78, %76, %80 : vector<64x64xi1>, vector<64x64xf32>
    %82 = arith.addf %81, %0 : vector<64x64xf32>
    %cst_27 = arith.constant dense<0xFF800000> : vector<64xf32>
    %83 = vector.multi_reduction <maximumf>, %82, %cst_27 [1] : vector<64x64xf32> to vector<64xf32>
    %84 = vector.shape_cast %83 : vector<64xf32> to vector<64x1xf32>
    %85 = vector.broadcast %84 : vector<64x1xf32> to vector<64x64xf32>
    %86 = arith.subf %82, %85 : vector<64x64xf32>
    %87 = math.exp %86 : vector<64x64xf32>
    %cst_28 = arith.constant 0.000000e+00 : f32
    %88 = vector.broadcast %cst_28 : f32 to vector<64x64xf32>
    %89 = arith.select %2, %87, %88 : vector<64x64xi1>, vector<64x64xf32>
    %cst_29 = arith.constant dense<0.000000e+00> : vector<64xf32>
    %90 = vector.multi_reduction <add>, %89, %cst_29 [1] : vector<64x64xf32> to vector<64xf32>
    %91 = vector.shape_cast %90 : vector<64xf32> to vector<64x1xf32>
    %cst_30 = arith.constant 0.000000e+00 : f32
    %92 = vector.broadcast %cst_30 : f32 to vector<64x1xf32>
    %93 = arith.cmpf ogt, %91, %92 : vector<64x1xf32>
    %cst_31 = arith.constant 1.000000e+00 : f32
    %94 = vector.broadcast %cst_31 : f32 to vector<64x1xf32>
    %95 = arith.select %93, %91, %94 : vector<64x1xi1>, vector<64x1xf32>
    %96 = tpu.reciprocal %95 {approx = true} : vector<64x1xf32> -> vector<64x1xf32>
    %97 = vector.broadcast %96 : vector<64x1xf32> to vector<64x64xf32>
    %98 = arith.mulf %89, %97 : vector<64x64xf32>
    %99 = arith.truncf %98 : vector<64x64xf32> to vector<64x64xbf16>
    %100 = vector.extract_strided_slice %11 {offsets = [0, 64], sizes = [64, 32], strides = [1, 1]} : vector<64x128xbf16> to vector<64x32xbf16>
    %cst_32 = arith.constant dense<0.000000e+00> : vector<64x32xf32>
    %101 = tpu.matmul %99, %100, %cst_32 {dimension_numbers = #tpu.dot_dimension_numbers<[1], [0], [0], [1], [0, 0, 1, 1], [], []>} : vector<64x64xbf16>, vector<64x32xbf16>, vector<64x32xf32> -> vector<64x32xf32>
    %102 = vector.extract_strided_slice %8 {offsets = [0, 3], sizes = [64, 1], strides = [1, 1]} : vector<64x4xf32> to vector<64x1xf32>
    %103 = vector.extract_strided_slice %10 {offsets = [3, 0], sizes = [1, 64], strides = [1, 1]} : vector<4x64xf32> to vector<1x64xf32>
    %104 = vector.broadcast %102 : vector<64x1xf32> to vector<64x64xf32>
    %105 = vector.broadcast %103 : vector<1x64xf32> to vector<64x64xf32>
    %106 = arith.addf %104, %105 : vector<64x64xf32>
    %cst_33 = arith.constant 0.000000e+00 : f32
    %107 = vector.broadcast %cst_33 : f32 to vector<64x64xf32>
    %108 = arith.cmpf ogt, %106, %107 : vector<64x64xf32>
    %cst_34 = arith.constant 2.000000e-01 : f32
    %109 = vector.broadcast %cst_34 : f32 to vector<64x64xf32>
    %110 = arith.mulf %109, %106 : vector<64x64xf32>
    %111 = arith.select %108, %106, %110 : vector<64x64xi1>, vector<64x64xf32>
    %112 = arith.addf %111, %0 : vector<64x64xf32>
    %cst_35 = arith.constant dense<0xFF800000> : vector<64xf32>
    %113 = vector.multi_reduction <maximumf>, %112, %cst_35 [1] : vector<64x64xf32> to vector<64xf32>
    %114 = vector.shape_cast %113 : vector<64xf32> to vector<64x1xf32>
    %115 = vector.broadcast %114 : vector<64x1xf32> to vector<64x64xf32>
    %116 = arith.subf %112, %115 : vector<64x64xf32>
    %117 = math.exp %116 : vector<64x64xf32>
    %cst_36 = arith.constant 0.000000e+00 : f32
    %118 = vector.broadcast %cst_36 : f32 to vector<64x64xf32>
    %119 = arith.select %2, %117, %118 : vector<64x64xi1>, vector<64x64xf32>
    %cst_37 = arith.constant dense<0.000000e+00> : vector<64xf32>
    %120 = vector.multi_reduction <add>, %119, %cst_37 [1] : vector<64x64xf32> to vector<64xf32>
    %121 = vector.shape_cast %120 : vector<64xf32> to vector<64x1xf32>
    %cst_38 = arith.constant 0.000000e+00 : f32
    %122 = vector.broadcast %cst_38 : f32 to vector<64x1xf32>
    %123 = arith.cmpf ogt, %121, %122 : vector<64x1xf32>
    %cst_39 = arith.constant 1.000000e+00 : f32
    %124 = vector.broadcast %cst_39 : f32 to vector<64x1xf32>
    %125 = arith.select %123, %121, %124 : vector<64x1xi1>, vector<64x1xf32>
    %126 = tpu.reciprocal %125 {approx = true} : vector<64x1xf32> -> vector<64x1xf32>
    %127 = vector.broadcast %126 : vector<64x1xf32> to vector<64x64xf32>
    %128 = arith.mulf %119, %127 : vector<64x64xf32>
    %129 = arith.truncf %128 : vector<64x64xf32> to vector<64x64xbf16>
    %130 = vector.extract_strided_slice %11 {offsets = [0, 96], sizes = [64, 32], strides = [1, 1]} : vector<64x128xbf16> to vector<64x32xbf16>
    %cst_40 = arith.constant dense<0.000000e+00> : vector<64x32xf32>
    %131 = tpu.matmul %129, %130, %cst_40 {dimension_numbers = #tpu.dot_dimension_numbers<[1], [0], [0], [1], [0, 0, 1, 1], [], []>} : vector<64x64xbf16>, vector<64x32xbf16>, vector<64x32xf32> -> vector<64x32xf32>
    %132 = tpu.concatenate %41, %71, %101, %131 in 1 : vector<64x32xf32>, vector<64x32xf32>, vector<64x32xf32>, vector<64x32xf32> -> vector<64x128xf32>
    %c0_41 = arith.constant 0 : index
    %c0_42 = arith.constant 0 : index
    %133 = vector.load %arg4[%c0_41, %c0_42] : memref<1x128xf32, #tpu.memory_space<vmem>>, vector<1x128xf32>
    %134 = vector.broadcast %133 : vector<1x128xf32> to vector<64x128xf32>
    %135 = arith.addf %132, %134 : vector<64x128xf32>
    %cst_43 = arith.constant 0.000000e+00 : f32
    %136 = vector.broadcast %cst_43 : f32 to vector<64x128xf32>
    %137 = arith.cmpf ogt, %135, %136 : vector<64x128xf32>
    %cst_44 = arith.constant 0.000000e+00 : f32
    %138 = vector.broadcast %cst_44 : f32 to vector<64x128xf32>
    %139 = arith.minimumf %135, %138 : vector<64x128xf32>
    %140 = math.exp %139 : vector<64x128xf32>
    %cst_45 = arith.constant 1.000000e+00 : f32
    %141 = vector.broadcast %cst_45 : f32 to vector<64x128xf32>
    %142 = arith.subf %140, %141 : vector<64x128xf32>
    %143 = arith.select %137, %135, %142 : vector<64x128xi1>, vector<64x128xf32>
    %144 = arith.truncf %143 : vector<64x128xf32> to vector<64x128xbf16>
    %c0_46 = arith.constant 0 : index
    %c0_47 = arith.constant 0 : index
    %145 = vector.load %arg5[%c0_46, %c0_47] : memref<128x132xbf16, #tpu.memory_space<vmem>>, vector<128x132xbf16>
    %cst_48 = arith.constant dense<0.000000e+00> : vector<64x132xf32>
    %146 = tpu.matmul %144, %145, %cst_48 {dimension_numbers = #tpu.dot_dimension_numbers<[1], [0], [0], [1], [0, 0, 1, 1], [], []>} : vector<64x128xbf16>, vector<128x132xbf16>, vector<64x132xf32> -> vector<64x132xf32>
    %147 = vector.extract_strided_slice %146 {offsets = [0, 0], sizes = [64, 128], strides = [1, 1]} : vector<64x132xf32> to vector<64x128xf32>
    %148 = vector.extract_strided_slice %146 {offsets = [0, 128], sizes = [64, 4], strides = [1, 1]} : vector<64x132xf32> to vector<64x4xf32>
    %c0_49 = arith.constant 0 : index
    %c0_50 = arith.constant 0 : index
    %149 = vector.load %arg6[%c0_49, %c0_50] : memref<4x128xbf16, #tpu.memory_space<vmem>>, vector<4x128xbf16>
    %cst_51 = arith.constant dense<0.000000e+00> : vector<4x64xf32>
    %150 = tpu.matmul %149, %144, %cst_51 {dimension_numbers = #tpu.dot_dimension_numbers<[1], [1], [0], [0], [0, 0, 1, 0], [], []>} : vector<4x128xbf16>, vector<64x128xbf16>, vector<4x64xf32> -> vector<4x64xf32>
    %151 = arith.truncf %147 : vector<64x128xf32> to vector<64x128xbf16>
    %152 = vector.extract_strided_slice %148 {offsets = [0, 0], sizes = [64, 1], strides = [1, 1]} : vector<64x4xf32> to vector<64x1xf32>
    %153 = vector.extract_strided_slice %150 {offsets = [0, 0], sizes = [1, 64], strides = [1, 1]} : vector<4x64xf32> to vector<1x64xf32>
    %154 = vector.broadcast %152 : vector<64x1xf32> to vector<64x64xf32>
    %155 = vector.broadcast %153 : vector<1x64xf32> to vector<64x64xf32>
    %156 = arith.addf %154, %155 : vector<64x64xf32>
    %cst_52 = arith.constant 0.000000e+00 : f32
    %157 = vector.broadcast %cst_52 : f32 to vector<64x64xf32>
    %158 = arith.cmpf ogt, %156, %157 : vector<64x64xf32>
    %cst_53 = arith.constant 2.000000e-01 : f32
    %159 = vector.broadcast %cst_53 : f32 to vector<64x64xf32>
    %160 = arith.mulf %159, %156 : vector<64x64xf32>
    %161 = arith.select %158, %156, %160 : vector<64x64xi1>, vector<64x64xf32>
    %162 = arith.addf %161, %0 : vector<64x64xf32>
    %cst_54 = arith.constant dense<0xFF800000> : vector<64xf32>
    %163 = vector.multi_reduction <maximumf>, %162, %cst_54 [1] : vector<64x64xf32> to vector<64xf32>
    %164 = vector.shape_cast %163 : vector<64xf32> to vector<64x1xf32>
    %165 = vector.broadcast %164 : vector<64x1xf32> to vector<64x64xf32>
    %166 = arith.subf %162, %165 : vector<64x64xf32>
    %167 = math.exp %166 : vector<64x64xf32>
    %cst_55 = arith.constant 0.000000e+00 : f32
    %168 = vector.broadcast %cst_55 : f32 to vector<64x64xf32>
    %169 = arith.select %2, %167, %168 : vector<64x64xi1>, vector<64x64xf32>
    %cst_56 = arith.constant dense<0.000000e+00> : vector<64xf32>
    %170 = vector.multi_reduction <add>, %169, %cst_56 [1] : vector<64x64xf32> to vector<64xf32>
    %171 = vector.shape_cast %170 : vector<64xf32> to vector<64x1xf32>
    %cst_57 = arith.constant 0.000000e+00 : f32
    %172 = vector.broadcast %cst_57 : f32 to vector<64x1xf32>
    %173 = arith.cmpf ogt, %171, %172 : vector<64x1xf32>
    %cst_58 = arith.constant 1.000000e+00 : f32
    %174 = vector.broadcast %cst_58 : f32 to vector<64x1xf32>
    %175 = arith.select %173, %171, %174 : vector<64x1xi1>, vector<64x1xf32>
    %176 = tpu.reciprocal %175 {approx = true} : vector<64x1xf32> -> vector<64x1xf32>
    %177 = vector.broadcast %176 : vector<64x1xf32> to vector<64x64xf32>
    %178 = arith.mulf %169, %177 : vector<64x64xf32>
    %179 = arith.truncf %178 : vector<64x64xf32> to vector<64x64xbf16>
    %180 = vector.extract_strided_slice %151 {offsets = [0, 0], sizes = [64, 32], strides = [1, 1]} : vector<64x128xbf16> to vector<64x32xbf16>
    %cst_59 = arith.constant dense<0.000000e+00> : vector<64x32xf32>
    %181 = tpu.matmul %179, %180, %cst_59 {dimension_numbers = #tpu.dot_dimension_numbers<[1], [0], [0], [1], [0, 0, 1, 1], [], []>} : vector<64x64xbf16>, vector<64x32xbf16>, vector<64x32xf32> -> vector<64x32xf32>
    %182 = vector.extract_strided_slice %148 {offsets = [0, 1], sizes = [64, 1], strides = [1, 1]} : vector<64x4xf32> to vector<64x1xf32>
    %183 = vector.extract_strided_slice %150 {offsets = [1, 0], sizes = [1, 64], strides = [1, 1]} : vector<4x64xf32> to vector<1x64xf32>
    %184 = vector.broadcast %182 : vector<64x1xf32> to vector<64x64xf32>
    %185 = vector.broadcast %183 : vector<1x64xf32> to vector<64x64xf32>
    %186 = arith.addf %184, %185 : vector<64x64xf32>
    %cst_60 = arith.constant 0.000000e+00 : f32
    %187 = vector.broadcast %cst_60 : f32 to vector<64x64xf32>
    %188 = arith.cmpf ogt, %186, %187 : vector<64x64xf32>
    %cst_61 = arith.constant 2.000000e-01 : f32
    %189 = vector.broadcast %cst_61 : f32 to vector<64x64xf32>
    %190 = arith.mulf %189, %186 : vector<64x64xf32>
    %191 = arith.select %188, %186, %190 : vector<64x64xi1>, vector<64x64xf32>
    %192 = arith.addf %191, %0 : vector<64x64xf32>
    %cst_62 = arith.constant dense<0xFF800000> : vector<64xf32>
    %193 = vector.multi_reduction <maximumf>, %192, %cst_62 [1] : vector<64x64xf32> to vector<64xf32>
    %194 = vector.shape_cast %193 : vector<64xf32> to vector<64x1xf32>
    %195 = vector.broadcast %194 : vector<64x1xf32> to vector<64x64xf32>
    %196 = arith.subf %192, %195 : vector<64x64xf32>
    %197 = math.exp %196 : vector<64x64xf32>
    %cst_63 = arith.constant 0.000000e+00 : f32
    %198 = vector.broadcast %cst_63 : f32 to vector<64x64xf32>
    %199 = arith.select %2, %197, %198 : vector<64x64xi1>, vector<64x64xf32>
    %cst_64 = arith.constant dense<0.000000e+00> : vector<64xf32>
    %200 = vector.multi_reduction <add>, %199, %cst_64 [1] : vector<64x64xf32> to vector<64xf32>
    %201 = vector.shape_cast %200 : vector<64xf32> to vector<64x1xf32>
    %cst_65 = arith.constant 0.000000e+00 : f32
    %202 = vector.broadcast %cst_65 : f32 to vector<64x1xf32>
    %203 = arith.cmpf ogt, %201, %202 : vector<64x1xf32>
    %cst_66 = arith.constant 1.000000e+00 : f32
    %204 = vector.broadcast %cst_66 : f32 to vector<64x1xf32>
    %205 = arith.select %203, %201, %204 : vector<64x1xi1>, vector<64x1xf32>
    %206 = tpu.reciprocal %205 {approx = true} : vector<64x1xf32> -> vector<64x1xf32>
    %207 = vector.broadcast %206 : vector<64x1xf32> to vector<64x64xf32>
    %208 = arith.mulf %199, %207 : vector<64x64xf32>
    %209 = arith.truncf %208 : vector<64x64xf32> to vector<64x64xbf16>
    %210 = vector.extract_strided_slice %151 {offsets = [0, 32], sizes = [64, 32], strides = [1, 1]} : vector<64x128xbf16> to vector<64x32xbf16>
    %cst_67 = arith.constant dense<0.000000e+00> : vector<64x32xf32>
    %211 = tpu.matmul %209, %210, %cst_67 {dimension_numbers = #tpu.dot_dimension_numbers<[1], [0], [0], [1], [0, 0, 1, 1], [], []>} : vector<64x64xbf16>, vector<64x32xbf16>, vector<64x32xf32> -> vector<64x32xf32>
    %212 = vector.extract_strided_slice %148 {offsets = [0, 2], sizes = [64, 1], strides = [1, 1]} : vector<64x4xf32> to vector<64x1xf32>
    %213 = vector.extract_strided_slice %150 {offsets = [2, 0], sizes = [1, 64], strides = [1, 1]} : vector<4x64xf32> to vector<1x64xf32>
    %214 = vector.broadcast %212 : vector<64x1xf32> to vector<64x64xf32>
    %215 = vector.broadcast %213 : vector<1x64xf32> to vector<64x64xf32>
    %216 = arith.addf %214, %215 : vector<64x64xf32>
    %cst_68 = arith.constant 0.000000e+00 : f32
    %217 = vector.broadcast %cst_68 : f32 to vector<64x64xf32>
    %218 = arith.cmpf ogt, %216, %217 : vector<64x64xf32>
    %cst_69 = arith.constant 2.000000e-01 : f32
    %219 = vector.broadcast %cst_69 : f32 to vector<64x64xf32>
    %220 = arith.mulf %219, %216 : vector<64x64xf32>
    %221 = arith.select %218, %216, %220 : vector<64x64xi1>, vector<64x64xf32>
    %222 = arith.addf %221, %0 : vector<64x64xf32>
    %cst_70 = arith.constant dense<0xFF800000> : vector<64xf32>
    %223 = vector.multi_reduction <maximumf>, %222, %cst_70 [1] : vector<64x64xf32> to vector<64xf32>
    %224 = vector.shape_cast %223 : vector<64xf32> to vector<64x1xf32>
    %225 = vector.broadcast %224 : vector<64x1xf32> to vector<64x64xf32>
    %226 = arith.subf %222, %225 : vector<64x64xf32>
    %227 = math.exp %226 : vector<64x64xf32>
    %cst_71 = arith.constant 0.000000e+00 : f32
    %228 = vector.broadcast %cst_71 : f32 to vector<64x64xf32>
    %229 = arith.select %2, %227, %228 : vector<64x64xi1>, vector<64x64xf32>
    %cst_72 = arith.constant dense<0.000000e+00> : vector<64xf32>
    %230 = vector.multi_reduction <add>, %229, %cst_72 [1] : vector<64x64xf32> to vector<64xf32>
    %231 = vector.shape_cast %230 : vector<64xf32> to vector<64x1xf32>
    %cst_73 = arith.constant 0.000000e+00 : f32
    %232 = vector.broadcast %cst_73 : f32 to vector<64x1xf32>
    %233 = arith.cmpf ogt, %231, %232 : vector<64x1xf32>
    %cst_74 = arith.constant 1.000000e+00 : f32
    %234 = vector.broadcast %cst_74 : f32 to vector<64x1xf32>
    %235 = arith.select %233, %231, %234 : vector<64x1xi1>, vector<64x1xf32>
    %236 = tpu.reciprocal %235 {approx = true} : vector<64x1xf32> -> vector<64x1xf32>
    %237 = vector.broadcast %236 : vector<64x1xf32> to vector<64x64xf32>
    %238 = arith.mulf %229, %237 : vector<64x64xf32>
    %239 = arith.truncf %238 : vector<64x64xf32> to vector<64x64xbf16>
    %240 = vector.extract_strided_slice %151 {offsets = [0, 64], sizes = [64, 32], strides = [1, 1]} : vector<64x128xbf16> to vector<64x32xbf16>
    %cst_75 = arith.constant dense<0.000000e+00> : vector<64x32xf32>
    %241 = tpu.matmul %239, %240, %cst_75 {dimension_numbers = #tpu.dot_dimension_numbers<[1], [0], [0], [1], [0, 0, 1, 1], [], []>} : vector<64x64xbf16>, vector<64x32xbf16>, vector<64x32xf32> -> vector<64x32xf32>
    %242 = vector.extract_strided_slice %148 {offsets = [0, 3], sizes = [64, 1], strides = [1, 1]} : vector<64x4xf32> to vector<64x1xf32>
    %243 = vector.extract_strided_slice %150 {offsets = [3, 0], sizes = [1, 64], strides = [1, 1]} : vector<4x64xf32> to vector<1x64xf32>
    %244 = vector.broadcast %242 : vector<64x1xf32> to vector<64x64xf32>
    %245 = vector.broadcast %243 : vector<1x64xf32> to vector<64x64xf32>
    %246 = arith.addf %244, %245 : vector<64x64xf32>
    %cst_76 = arith.constant 0.000000e+00 : f32
    %247 = vector.broadcast %cst_76 : f32 to vector<64x64xf32>
    %248 = arith.cmpf ogt, %246, %247 : vector<64x64xf32>
    %cst_77 = arith.constant 2.000000e-01 : f32
    %249 = vector.broadcast %cst_77 : f32 to vector<64x64xf32>
    %250 = arith.mulf %249, %246 : vector<64x64xf32>
    %251 = arith.select %248, %246, %250 : vector<64x64xi1>, vector<64x64xf32>
    %252 = arith.addf %251, %0 : vector<64x64xf32>
    %cst_78 = arith.constant dense<0xFF800000> : vector<64xf32>
    %253 = vector.multi_reduction <maximumf>, %252, %cst_78 [1] : vector<64x64xf32> to vector<64xf32>
    %254 = vector.shape_cast %253 : vector<64xf32> to vector<64x1xf32>
    %255 = vector.broadcast %254 : vector<64x1xf32> to vector<64x64xf32>
    %256 = arith.subf %252, %255 : vector<64x64xf32>
    %257 = math.exp %256 : vector<64x64xf32>
    %cst_79 = arith.constant 0.000000e+00 : f32
    %258 = vector.broadcast %cst_79 : f32 to vector<64x64xf32>
    %259 = arith.select %2, %257, %258 : vector<64x64xi1>, vector<64x64xf32>
    %cst_80 = arith.constant dense<0.000000e+00> : vector<64xf32>
    %260 = vector.multi_reduction <add>, %259, %cst_80 [1] : vector<64x64xf32> to vector<64xf32>
    %261 = vector.shape_cast %260 : vector<64xf32> to vector<64x1xf32>
    %cst_81 = arith.constant 0.000000e+00 : f32
    %262 = vector.broadcast %cst_81 : f32 to vector<64x1xf32>
    %263 = arith.cmpf ogt, %261, %262 : vector<64x1xf32>
    %cst_82 = arith.constant 1.000000e+00 : f32
    %264 = vector.broadcast %cst_82 : f32 to vector<64x1xf32>
    %265 = arith.select %263, %261, %264 : vector<64x1xi1>, vector<64x1xf32>
    %266 = tpu.reciprocal %265 {approx = true} : vector<64x1xf32> -> vector<64x1xf32>
    %267 = vector.broadcast %266 : vector<64x1xf32> to vector<64x64xf32>
    %268 = arith.mulf %259, %267 : vector<64x64xf32>
    %269 = arith.truncf %268 : vector<64x64xf32> to vector<64x64xbf16>
    %270 = vector.extract_strided_slice %151 {offsets = [0, 96], sizes = [64, 32], strides = [1, 1]} : vector<64x128xbf16> to vector<64x32xbf16>
    %cst_83 = arith.constant dense<0.000000e+00> : vector<64x32xf32>
    %271 = tpu.matmul %269, %270, %cst_83 {dimension_numbers = #tpu.dot_dimension_numbers<[1], [0], [0], [1], [0, 0, 1, 1], [], []>} : vector<64x64xbf16>, vector<64x32xbf16>, vector<64x32xf32> -> vector<64x32xf32>
    %272 = tpu.concatenate %181, %211, %241, %271 in 1 : vector<64x32xf32>, vector<64x32xf32>, vector<64x32xf32>, vector<64x32xf32> -> vector<64x128xf32>
    %c0_84 = arith.constant 0 : index
    %c0_85 = arith.constant 0 : index
    %273 = vector.load %arg7[%c0_84, %c0_85] : memref<1x128xf32, #tpu.memory_space<vmem>>, vector<1x128xf32>
    %274 = vector.broadcast %273 : vector<1x128xf32> to vector<64x128xf32>
    %275 = arith.addf %272, %274 : vector<64x128xf32>
    %cst_86 = arith.constant 0.000000e+00 : f32
    %276 = vector.broadcast %cst_86 : f32 to vector<64x128xf32>
    %277 = arith.cmpf ogt, %275, %276 : vector<64x128xf32>
    %cst_87 = arith.constant 0.000000e+00 : f32
    %278 = vector.broadcast %cst_87 : f32 to vector<64x128xf32>
    %279 = arith.minimumf %275, %278 : vector<64x128xf32>
    %280 = math.exp %279 : vector<64x128xf32>
    %cst_88 = arith.constant 1.000000e+00 : f32
    %281 = vector.broadcast %cst_88 : f32 to vector<64x128xf32>
    %282 = arith.subf %280, %281 : vector<64x128xf32>
    %283 = arith.select %277, %275, %282 : vector<64x128xi1>, vector<64x128xf32>
    %c0_89 = arith.constant 0 : index
    %c0_90 = arith.constant 0 : index
    %284 = vector.load %arg8[%c0_89, %c0_90] : memref<64x128xf32, #tpu.memory_space<vmem>>, vector<64x128xf32>
    tpu.vector_store %arg8[%c0_89, %c0_90], %283 {strides = array<i32>} : memref<64x128xf32, #tpu.memory_space<vmem>>, vector<64x128xf32>,
    return
  }
}

</mosaic_0001>

<llo_original>
// kernel: tpu_custom_call.1
$region0: #{tpu_custom_call.1}
  #allocation0 [shape = 'u32[]', space=smem, size = 0x4, offset = 0x4, fixed_abs, tag = 'smem constant byte address 0x4 - core index']
  #allocation1 [shape = 'u32[144,128]{1,0:T(1,128)}', space=vmem, size = 0x12000, scoped, tag = 'internal scratch']
  %s0 = inlined_call_operand.vmem [shape: f32[64,64], index: 0, kind: input, shape index: {}]
  %s1 = inlined_call_operand.vmem [shape: f32[64,16], index: 1, kind: input, shape index: {}]
  %s2 = inlined_call_operand.vmem [shape: bf16[16,132], index: 2, kind: input, shape index: {}]
  %s3 = inlined_call_operand.vmem [shape: bf16[4,16], index: 3, kind: input, shape index: {}]
  %s4 = inlined_call_operand.vmem [shape: f32[1,128], index: 4, kind: input, shape index: {}]
  %s5 = inlined_call_operand.vmem [shape: bf16[128,132], index: 5, kind: input, shape index: {}]
  %s6 = inlined_call_operand.vmem [shape: bf16[4,128], index: 6, kind: input, shape index: {}]
  %s7 = inlined_call_operand.vmem [shape: f32[1,128], index: 7, kind: input, shape index: {}]
  %s8 = inlined_call_operand.hbm [shape: f32[64,128], index: 8, kind: output, shape index: {}]
  %s9 = sld [smem:[#allocation0]]
  $region42: #{tpu_custom_call.1} parent=0
    _
  %s11 = ssub.s32 1, %s9
  %s12 = scalar_select 0, %s11, %s9
  $region1: #{tpu_custom_call.1} parent=0
    #allocation2 [shape = 'u8[32768]{0}', space=vmem, size = 0x8000, scoped, tag = 'output window, operand 0, single buffered']
    #allocation3 [shape = 's32[1]{0}', space=sflag, size = 0x4, scoped, tag = 'scoped memory for tpu_custom_call.1']
    %13 = vsyncpa [#allocation3], 0
    // Predicated region
    $region2: #{tpu_custom_call.1} parent=1 // pred_check
      _
    $region3: #{tpu_custom_call.1} parent=1 // pred_check_branch
      %15 = sbr.rel (0) target = $region5
    $region4: #{tpu_custom_call.1} parent=1 // pred_region
      _
    $region5: #{tpu_custom_call.1} parent=1 // pred_fallthru
      _
    // Predicated region
    $region6: #{tpu_custom_call.1} parent=1 // pred_check
      _
    $region7: #{tpu_custom_call.1} parent=1 // pred_check_branch
      %17 = sbr.rel (0) target = $region9
    $region8: #{tpu_custom_call.1} parent=1 // pred_region
      _
    $region9: #{tpu_custom_call.1} parent=1 // pred_fallthru
      _
    // Predicated region
    $region10: #{tpu_custom_call.1} parent=1 // pred_check
      _
    $region11: #{tpu_custom_call.1} parent=1 // pred_check_branch
      %19 = sbr.rel (0) target = $region13
    $region12: #{tpu_custom_call.1} parent=1 // pred_region
      _
    $region13: #{tpu_custom_call.1} parent=1 // pred_fallthru
      _
    // Predicated region
    $region14: #{tpu_custom_call.1} parent=1 // pred_check
      _
    $region15: #{tpu_custom_call.1} parent=1 // pred_check_branch
      %21 = sbr.rel (0) target = $region17
    $region16: #{tpu_custom_call.1} parent=1 // pred_region
      _
    $region17: #{tpu_custom_call.1} parent=1 // pred_fallthru
      _
    // Predicated region
    $region18: #{tpu_custom_call.1} parent=1 // pred_check
      _
    $region19: #{tpu_custom_call.1} parent=1 // pred_check_branch
      %23 = sbr.rel (0) target = $region21
    $region20: #{tpu_custom_call.1} parent=1 // pred_region
      _
    $region21: #{tpu_custom_call.1} parent=1 // pred_fallthru
      _
    // Predicated region
    $region22: #{tpu_custom_call.1} parent=1 // pred_check
      _
    $region23: #{tpu_custom_call.1} parent=1 // pred_check_branch
      %25 = sbr.rel (0) target = $region25
    $region24: #{tpu_custom_call.1} parent=1 // pred_region
      _
    $region25: #{tpu_custom_call.1} parent=1 // pred_fallthru
      _
    // Predicated region
    $region26: #{tpu_custom_call.1} parent=1 // pred_check
      _
    $region27: #{tpu_custom_call.1} parent=1 // pred_check_branch
      %27 = sbr.rel (0) target = $region29
    $region28: #{tpu_custom_call.1} parent=1 // pred_region
      _
    $region29: #{tpu_custom_call.1} parent=1 // pred_fallthru
      _
    // Predicated region
    $region30: #{tpu_custom_call.1} parent=1 // pred_check
      _
    $region31: #{tpu_custom_call.1} parent=1 // pred_check_branch
      %29 = sbr.rel (0) target = $region33
    $region32: #{tpu_custom_call.1} parent=1 // pred_region
      _
    $region33: #{tpu_custom_call.1} parent=1 // pred_fallthru
      _
    %v31 = vld [vmem:[%s0] sm:$0xff]
    %v32 = vld [vmem:[%s0 + $0x8] sm:$0xff]
    %v33 = vld [vmem:[%s0 + $0x10] sm:$0xff]
    %v34 = vld [vmem:[%s0 + $0x18] sm:$0xff]
    %v35 = vld [vmem:[%s0 + $0x20] sm:$0xff]
    %v36 = vld [vmem:[%s0 + $0x28] sm:$0xff]
    %v37 = vld [vmem:[%s0 + $0x30] sm:$0xff]
    %v38 = vld [vmem:[%s0 + $0x38] sm:$0xff]
    %vm39 = vcmp.ge.f32.partialorder %v31, 0.0
    %vm40 = vcmp.ge.f32.partialorder %v32, 0.0
    %vm41 = vcmp.ge.f32.partialorder %v33, 0.0
    %vm42 = vcmp.ge.f32.partialorder %v34, 0.0
    %vm43 = vcmp.ge.f32.partialorder %v35, 0.0
    %vm44 = vcmp.ge.f32.partialorder %v36, 0.0
    %vm45 = vcmp.ge.f32.partialorder %v37, 0.0
    %vm46 = vcmp.ge.f32.partialorder %v38, 0.0
    %v47 = vld [vmem:[%s1] sm:$0xff]
    %v48 = vld [vmem:[%s1 + $0x8] sm:$0xff]
    %v49 = vld [vmem:[%s1 + $0x10] sm:$0xff]
    %v50 = vld [vmem:[%s1 + $0x18] sm:$0xff]
    %v51 = vld [vmem:[%s1 + $0x20] sm:$0xff]
    %v52 = vld [vmem:[%s1 + $0x28] sm:$0xff]
    %v53 = vld [vmem:[%s1 + $0x30] sm:$0xff]
    %v54 = vld [vmem:[%s1 + $0x38] sm:$0xff]
    %v55 = vpack.c.bf16 %v48, %v47
    %v56 = vpack.c.bf16 %v50, %v49
    %v57 = vpack.c.bf16 %v52, %v51
    %v58 = vpack.c.bf16 %v54, %v53
    %v59 = vld [vmem:[%s2] sm:$0xff]
    %v60 = vld [vmem:[%s2 + $0x8] sm:$0xff]
    %v63 = vunpack.c.l.b16 %v59
    %v64 = vunpack.c.h.b16 %v59
    %v65 = vunpack.c.l.b16 %v60
    %v66 = vunpack.c.h.b16 %v60
    %v67 = vpack.c.b16 %v65, %v63
    %v68 = vpack.c.b16 %v66, %v64
    %vm71 = vcmask 130048
    %v73 = vsel %vm71, %v55, 0
    %v76 = vsel %vm71, %v56, 0
    %v79 = vsel %vm71, %v57, 0
    %v82 = vsel %vm71, %v58, 0
    %84 = vmatprep.subr.bf16.mxu0 %v68
    %85 = vmatpush1.bf16.msra.mxu0 %v67
    %86 = vmatprep.subr.bf16.mxu0 0
    %87 = vmatpush1.bf16.msra.mxu0 0
    %88 = vmatprep.subr.bf16.mxu0 0
    %89 = vmatpush1.bf16.msra.mxu0 0
    %90 = vmatprep.subr.bf16.mxu0 0
    %91 = vmatpush1.bf16.msra.mxu0 0
    %92 = vmatprep.subr.bf16.mxu0 0
    %93 = vmatpush1.bf16.msra.mxu0 0
    %94 = vmatprep.subr.bf16.mxu0 0
    %95 = vmatpush1.bf16.msra.mxu0 0
    %96 = vmatprep.subr.bf16.mxu0 0
    %97 = vmatpush1.bf16.msra.mxu0 0
    %98 = vmatprep.subr.bf16.mxu0 0
    %99 = vmatpush1.bf16.msra.mxu0 0
    %100 = vmatprep.subr.bf16.mxu0 0
    %101 = vmatpush1.bf16.msra.mxu0 0
    %102 = vmatprep.subr.bf16.mxu0 0
    %103 = vmatpush1.bf16.msra.mxu0 0
    %104 = vmatprep.subr.bf16.mxu0 0
    %105 = vmatpush1.bf16.msra.mxu0 0
    %106 = vmatprep.subr.bf16.mxu0 0
    %107 = vmatpush1.bf16.msra.mxu0 0
    %108 = vmatprep.subr.bf16.mxu0 0
    %109 = vmatpush1.bf16.msra.mxu0 0
    %110 = vmatprep.subr.bf16.mxu0 0
    %111 = vmatpush1.bf16.msra.mxu0 0
    %112 = vmatprep.subr.bf16.mxu0 0
    %113 = vmatpush1.bf16.msra.mxu0 0
    %114 = vmatprep.subr.bf16.mxu0 0
    %115 = vmatpush1.bf16.msra.mxu0 0
    %116 = vmatprep.mubr.bf16.mxu0 0
    %117 = vmatmul.mubr.bf16.gmra.mrb[0].mxu0 %v73
    %v118 = vpop.f32.mrb[0].mxu0
    %v119 = vadd.f32 0.0, %v118
    %v120 = vpop.f32.mrb[0].mxu0
    %v121 = vadd.f32 0.0, %v120
    %v122 = vpop.f32.mrb[0].mxu0
    %v123 = vadd.f32 0.0, %v122
    %v124 = vpop.f32.mrb[0].mxu0
    %v125 = vadd.f32 0.0, %v124
    %126 = vmatprep.mubr.bf16.mxu0 0
    %127 = vmatmul.mubr.bf16.gmra.mrb[0].mxu0 %v76
    %v128 = vpop.f32.mrb[0].mxu0
    %v129 = vadd.f32 0.0, %v128
    %v130 = vpop.f32.mrb[0].mxu0
    %v131 = vadd.f32 0.0, %v130
    %v132 = vpop.f32.mrb[0].mxu0
    %v133 = vadd.f32 0.0, %v132
    %v134 = vpop.f32.mrb[0].mxu0
    %v135 = vadd.f32 0.0, %v134
    %136 = vmatprep.mubr.bf16.mxu0 0
    %137 = vmatmul.mubr.bf16.gmra.mrb[0].mxu0 %v79
    %v138 = vpop.f32.mrb[0].mxu0
    %v139 = vadd.f32 0.0, %v138
    %v140 = vpop.f32.mrb[0].mxu0
    %v141 = vadd.f32 0.0, %v140
    %v142 = vpop.f32.mrb[0].mxu0
    %v143 = vadd.f32 0.0, %v142
    %v144 = vpop.f32.mrb[0].mxu0
    %v145 = vadd.f32 0.0, %v144
    %146 = vmatprep.mubr.bf16.mxu0 0
    %147 = vmatmul.mubr.bf16.gmra.mrb[0].mxu0 %v82
    %v148 = vpop.f32.mrb[0].mxu0
    %v149 = vadd.f32 0.0, %v148
    %v150 = vpop.f32.mrb[0].mxu0
    %v151 = vadd.f32 0.0, %v150
    %v152 = vpop.f32.mrb[0].mxu0
    %v153 = vadd.f32 0.0, %v152
    %v154 = vpop.f32.mrb[0].mxu0
    %v155 = vadd.f32 0.0, %v154
    %156 = vdwg.mxu0
    %v157 = vld [vmem:[%s3] sm:$0x3]
    %v159 = vsel %vm71, %v157, 0
    %161 = vmatprep.subr.bf16.mxu0 0
    %162 = vmatpush1.bf16.xpose.msra.mxu0 %v73
    %163 = vmatprep.subr.bf16.mxu0 0
    %164 = vmatpush1.bf16.xpose.msra.mxu0 %v76
    %165 = vmatprep.subr.bf16.mxu0 0
    %166 = vmatpush1.bf16.xpose.msra.mxu0 %v79
    %167 = vmatprep.subr.bf16.mxu0 0
    %168 = vmatpush1.bf16.xpose.msra.mxu0 %v82
    %169 = vmatprep.subr.bf16.mxu0 0
    %170 = vmatpush1.bf16.xpose.msra.mxu0 0
    %171 = vmatprep.subr.bf16.mxu0 0
    %172 = vmatpush1.bf16.xpose.msra.mxu0 0
    %173 = vmatprep.subr.bf16.mxu0 0
    %174 = vmatpush1.bf16.xpose.msra.mxu0 0
    %175 = vmatprep.subr.bf16.mxu0 0
    %176 = vmatpush1.bf16.xpose.msra.mxu0 0
    %177 = vmatprep.subr.bf16.mxu0 0
    %178 = vmatpush1.bf16.xpose.msra.mxu0 0
    %179 = vmatprep.subr.bf16.mxu0 0
    %180 = vmatpush1.bf16.xpose.msra.mxu0 0
    %181 = vmatprep.subr.bf16.mxu0 0
    %182 = vmatpush1.bf16.xpose.msra.mxu0 0
    %183 = vmatprep.subr.bf16.mxu0 0
    %184 = vmatpush1.bf16.xpose.msra.mxu0 0
    %185 = vmatprep.subr.bf16.mxu0 0
    %186 = vmatpush1.bf16.xpose.msra.mxu0 0
    %187 = vmatprep.subr.bf16.mxu0 0
    %188 = vmatpush1.bf16.xpose.msra.mxu0 0
    %189 = vmatprep.subr.bf16.mxu0 0
    %190 = vmatpush1.bf16.xpose.msra.mxu0 0
    %191 = vmatprep.subr.bf16.mxu0 0
    %192 = vmatpush1.bf16.xpose.msra.mxu0 0
    %193 = vmatprep.mubr.bf16.mxu0 0
    %194 = vmatmul.mubr.bf16.gmra.mrb[0].mxu0 %v159
    %v195 = vpop.f32.mrb[0].mxu0
    %v196 = vadd.f32 0.0, %v195
    %v197 = vpop.f32.mrb[0].mxu0
    %v198 = vpop.f32.mrb[0].mxu0
    %v199 = vpop.f32.mrb[0].mxu0
    %200 = vdwg.mxu0
    %v201 = vpack.c.bf16 %v123, %v119
    %v202 = vpack.c.bf16 %v133, %v129
    %v203 = vpack.c.bf16 %v143, %v139
    %v204 = vpack.c.bf16 %v153, %v149
    %206 = vset.pattern.permute.xlu0 0
    %207 = vperm.xlu0 %206, %v121
    %v208 = vpop.permute.xlu0 %207
    %211 = vset.pattern.permute.xlu0 0
    %212 = vperm.xlu0 %211, %v125
    %v213 = vpop.permute.xlu0 %212
    %216 = vset.pattern.permute.xlu0 0
    %217 = vperm.xlu0 %216, %v131
    %v218 = vpop.permute.xlu0 %217
    %221 = vset.pattern.permute.xlu0 0
    %222 = vperm.xlu0 %221, %v135
    %v223 = vpop.permute.xlu0 %222
    %226 = vset.pattern.permute.xlu0 0
    %227 = vperm.xlu0 %226, %v141
    %v228 = vpop.permute.xlu0 %227
    %231 = vset.pattern.permute.xlu0 0
    %232 = vperm.xlu0 %231, %v145
    %v233 = vpop.permute.xlu0 %232
    %236 = vset.pattern.permute.xlu0 0
    %237 = vperm.xlu0 %236, %v151
    %v238 = vpop.permute.xlu0 %237
    %241 = vset.pattern.permute.xlu0 0
    %242 = vperm.xlu0 %241, %v155
    %v243 = vpop.permute.xlu0 %242
    %v245 = vlaneseq
    %v246 = vshrl.u32 %v245, 7
    %v247 = vsub.s32 0, %v246
    %v248 = vrot.slane %v196, %v247
    %v249 = vadd.f32 %v208, %v248
    %v250 = vadd.f32 %v213, %v248
    %v251 = vadd.f32 %v218, %v248
    %v252 = vadd.f32 %v223, %v248
    %v253 = vadd.f32 %v228, %v248
    %v254 = vadd.f32 %v233, %v248
    %v255 = vadd.f32 %v238, %v248
    %v256 = vadd.f32 %v243, %v248
    %vm257 = vcmp.gt.f32.partialorder %v249, 0.0
    %vm258 = vcmp.gt.f32.partialorder %v250, 0.0
    %vm259 = vcmp.gt.f32.partialorder %v251, 0.0
    %vm260 = vcmp.gt.f32.partialorder %v252, 0.0
    %vm261 = vcmp.gt.f32.partialorder %v253, 0.0
    %vm262 = vcmp.gt.f32.partialorder %v254, 0.0
    %vm263 = vcmp.gt.f32.partialorder %v255, 0.0
    %vm264 = vcmp.gt.f32.partialorder %v256, 0.0
    %v265 = vmul.f32 %v249, 0.2
    %v266 = vmul.f32 %v250, 0.2
    %v267 = vmul.f32 %v251, 0.2
    %v268 = vmul.f32 %v252, 0.2
    %v269 = vmul.f32 %v253, 0.2
    %v270 = vmul.f32 %v254, 0.2
    %v271 = vmul.f32 %v255, 0.2
    %v272 = vmul.f32 %v256, 0.2
    %v273 = vsel %vm257, %v249, %v265
    %v274 = vsel %vm258, %v250, %v266
    %v275 = vsel %vm259, %v251, %v267
    %v276 = vsel %vm260, %v252, %v268
    %v277 = vsel %vm261, %v253, %v269
    %v278 = vsel %vm262, %v254, %v270
    %v279 = vsel %vm263, %v255, %v271
    %v280 = vsel %vm264, %v256, %v272
    %v281 = vadd.f32 %v273, %v31
    %v282 = vadd.f32 %v274, %v32
    %v283 = vadd.f32 %v275, %v33
    %v284 = vadd.f32 %v276, %v34
    %v285 = vadd.f32 %v277, %v35
    %v286 = vadd.f32 %v278, %v36
    %v287 = vadd.f32 %v279, %v37
    %v288 = vadd.f32 %v280, %v38
    %vm289 = vcmask 523264
    %v290 = vsel %vm289, %v281, -inf
    %291 = vmax.xlane.f32.xlu0 %v290
    %v292 = vpop.xlane.xlu0 %291
    %v293 = vsel %vm289, %v282, -inf
    %294 = vmax.xlane.f32.xlu0 %v293
    %v295 = vpop.xlane.xlu0 %294
    %v296 = vsel %vm289, %v283, -inf
    %297 = vmax.xlane.f32.xlu0 %v296
    %v298 = vpop.xlane.xlu0 %297
    %v299 = vsel %vm289, %v284, -inf
    %300 = vmax.xlane.f32.xlu0 %v299
    %v301 = vpop.xlane.xlu0 %300
    %v302 = vsel %vm289, %v285, -inf
    %303 = vmax.xlane.f32.xlu0 %v302
    %v304 = vpop.xlane.xlu0 %303
    %v305 = vsel %vm289, %v286, -inf
    %306 = vmax.xlane.f32.xlu0 %v305
    %v307 = vpop.xlane.xlu0 %306
    %v308 = vsel %vm289, %v287, -inf
    %309 = vmax.xlane.f32.xlu0 %v308
    %v310 = vpop.xlane.xlu0 %309
    %v311 = vsel %vm289, %v288, -inf
    %312 = vmax.xlane.f32.xlu0 %v311
    %v313 = vpop.xlane.xlu0 %312
    %v314 = vsub.f32 %v281, %v292
    %v315 = vsub.f32 %v282, %v295
    %v316 = vsub.f32 %v283, %v298
    %v317 = vsub.f32 %v284, %v301
    %v318 = vsub.f32 %v285, %v304
    %v319 = vsub.f32 %v286, %v307
    %v320 = vsub.f32 %v287, %v310
    %v321 = vsub.f32 %v288, %v313
    %v322 = vmul.f32 %v314, 1.442695
    %v323 = vpow.pop %v322
    %v324 = vmul.f32 %v315, 1.442695
    %v325 = vpow.pop %v324
    %v326 = vmul.f32 %v316, 1.442695
    %v327 = vpow.pop %v326
    %v328 = vmul.f32 %v317, 1.442695
    %v329 = vpow.pop %v328
    %v330 = vmul.f32 %v318, 1.442695
    %v331 = vpow.pop %v330
    %v332 = vmul.f32 %v319, 1.442695
    %v333 = vpow.pop %v332
    %v334 = vmul.f32 %v320, 1.442695
    %v335 = vpow.pop %v334
    %v336 = vmul.f32 %v321, 1.442695
    %v337 = vpow.pop %v336
    %v338 = vsel %vm39, %v323, 0.0
    %v339 = vsel %vm40, %v325, 0.0
    %v340 = vsel %vm41, %v327, 0.0
    %v341 = vsel %vm42, %v329, 0.0
    %v342 = vsel %vm43, %v331, 0.0
    %v343 = vsel %vm44, %v333, 0.0
    %v344 = vsel %vm45, %v335, 0.0
    %v345 = vsel %vm46, %v337, 0.0
    %v346 = vsel %vm289, %v338, 0.0
    %347 = vadd.xlane.f32.xlu0 %v346
    %v348 = vpop.xlane.xlu0 %347
    %v349 = vsel %vm289, %v339, 0.0
    %350 = vadd.xlane.f32.xlu0 %v349
    %v351 = vpop.xlane.xlu0 %350
    %v352 = vsel %vm289, %v340, 0.0
    %353 = vadd.xlane.f32.xlu0 %v352
    %v354 = vpop.xlane.xlu0 %353
    %v355 = vsel %vm289, %v341, 0.0
    %356 = vadd.xlane.f32.xlu0 %v355
    %v357 = vpop.xlane.xlu0 %356
    %v358 = vsel %vm289, %v342, 0.0
    %359 = vadd.xlane.f32.xlu0 %v358
    %v360 = vpop.xlane.xlu0 %359
    %v361 = vsel %vm289, %v343, 0.0
    %362 = vadd.xlane.f32.xlu0 %v361
    %v363 = vpop.xlane.xlu0 %362
    %v364 = vsel %vm289, %v344, 0.0
    %365 = vadd.xlane.f32.xlu0 %v364
    %v366 = vpop.xlane.xlu0 %365
    %v367 = vsel %vm289, %v345, 0.0
    %368 = vadd.xlane.f32.xlu0 %v367
    %v369 = vpop.xlane.xlu0 %368
    %vm370 = vcmp.gt.f32.partialorder %v348, 0.0
    %vm371 = vcmp.gt.f32.partialorder %v351, 0.0
    %vm372 = vcmp.gt.f32.partialorder %v354, 0.0
    %vm373 = vcmp.gt.f32.partialorder %v357, 0.0
    %vm374 = vcmp.gt.f32.partialorder %v360, 0.0
    %vm375 = vcmp.gt.f32.partialorder %v363, 0.0
    %vm376 = vcmp.gt.f32.partialorder %v366, 0.0
    %vm377 = vcmp.gt.f32.partialorder %v369, 0.0
    %v378 = vsel %vm370, %v348, 1.0
    %v379 = vsel %vm371, %v351, 1.0
    %v380 = vsel %vm372, %v354, 1.0
    %v381 = vsel %vm373, %v357, 1.0
    %v382 = vsel %vm374, %v360, 1.0
    %v383 = vsel %vm375, %v363, 1.0
    %v384 = vsel %vm376, %v366, 1.0
    %v385 = vsel %vm377, %v369, 1.0
    %v386 = vrcp.pop %v378
    %v387 = vrcp.pop %v379
    %v388 = vrcp.pop %v380
    %v389 = vrcp.pop %v381
    %v390 = vrcp.pop %v382
    %v391 = vrcp.pop %v383
    %v392 = vrcp.pop %v384
    %v393 = vrcp.pop %v385
    %v394 = vmul.f32 %v338, %v386
    %v395 = vmul.f32 %v339, %v387
    %v396 = vmul.f32 %v340, %v388
    %v397 = vmul.f32 %v341, %v389
    %v398 = vmul.f32 %v342, %v390
    %v399 = vmul.f32 %v343, %v391
    %v400 = vmul.f32 %v344, %v392
    %v401 = vmul.f32 %v345, %v393
    %v402 = vpack.c.bf16 %v395, %v394
    %v403 = vpack.c.bf16 %v397, %v396
    %v404 = vpack.c.bf16 %v399, %v398
    %v405 = vpack.c.bf16 %v401, %v400
    %v407 = vsel %vm289, %v402, 0
    %v410 = vsel %vm289, %v403, 0
    %v413 = vsel %vm289, %v404, 0
    %v416 = vsel %vm289, %v405, 0
    %418 = vmatprep.subr.bf16.mxu0 0
    %419 = vmatpush1.bf16.msra.mxu0 %v201
    %420 = vmatprep.subr.bf16.mxu0 0
    %421 = vmatpush1.bf16.msra.mxu0 %v202
    %422 = vmatprep.subr.bf16.mxu0 0
    %423 = vmatpush1.bf16.msra.mxu0 %v203
    %424 = vmatprep.subr.bf16.mxu0 0
    %425 = vmatpush1.bf16.msra.mxu0 %v204
    %426 = vmatprep.subr.bf16.mxu0 0
    %427 = vmatpush1.bf16.msra.mxu0 0
    %428 = vmatprep.subr.bf16.mxu0 0
    %429 = vmatpush1.bf16.msra.mxu0 0
    %430 = vmatprep.subr.bf16.mxu0 0
    %431 = vmatpush1.bf16.msra.mxu0 0
    %432 = vmatprep.subr.bf16.mxu0 0
    %433 = vmatpush1.bf16.msra.mxu0 0
    %434 = vmatprep.subr.bf16.mxu0 0
    %435 = vmatpush1.bf16.msra.mxu0 0
    %436 = vmatprep.subr.bf16.mxu0 0
    %437 = vmatpush1.bf16.msra.mxu0 0
    %438 = vmatprep.subr.bf16.mxu0 0
    %439 = vmatpush1.bf16.msra.mxu0 0
    %440 = vmatprep.subr.bf16.mxu0 0
    %441 = vmatpush1.bf16.msra.mxu0 0
    %442 = vmatprep.subr.bf16.mxu0 0
    %443 = vmatpush1.bf16.msra.mxu0 0
    %444 = vmatprep.subr.bf16.mxu0 0
    %445 = vmatpush1.bf16.msra.mxu0 0
    %446 = vmatprep.subr.bf16.mxu0 0
    %447 = vmatpush1.bf16.msra.mxu0 0
    %448 = vmatprep.subr.bf16.mxu0 0
    %449 = vmatpush1.bf16.msra.mxu0 0
    %450 = vmatprep.mubr.bf16.mxu0 0
    %451 = vmatmul.mubr.bf16.gmra.mrb[0].mxu0 %v407
    %v452 = vpop.f32.mrb[0].mxu0
    %v453 = vadd.f32 0.0, %v452
    %v454 = vpop.f32.mrb[0].mxu0
    %v455 = vpop.f32.mrb[0].mxu0
    %v456 = vadd.f32 0.0, %v455
    %v457 = vpop.f32.mrb[0].mxu0
    %458 = vmatprep.mubr.bf16.mxu0 0
    %459 = vmatmul.mubr.bf16.gmra.mrb[0].mxu0 %v410
    %v460 = vpop.f32.mrb[0].mxu0
    %v461 = vadd.f32 0.0, %v460
    %v462 = vpop.f32.mrb[0].mxu0
    %v463 = vpop.f32.mrb[0].mxu0
    %v464 = vadd.f32 0.0, %v463
    %v465 = vpop.f32.mrb[0].mxu0
    %466 = vmatprep.mubr.bf16.mxu0 0
    %467 = vmatmul.mubr.bf16.gmra.mrb[0].mxu0 %v413
    %v468 = vpop.f32.mrb[0].mxu0
    %v469 = vadd.f32 0.0, %v468
    %v470 = vpop.f32.mrb[0].mxu0
    %v471 = vpop.f32.mrb[0].mxu0
    %v472 = vadd.f32 0.0, %v471
    %v473 = vpop.f32.mrb[0].mxu0
    %474 = vmatprep.mubr.bf16.mxu0 0
    %475 = vmatmul.mubr.bf16.gmra.mrb[0].mxu0 %v416
    %v476 = vpop.f32.mrb[0].mxu0
    %v477 = vadd.f32 0.0, %v476
    %v478 = vpop.f32.mrb[0].mxu0
    %v479 = vpop.f32.mrb[0].mxu0
    %v480 = vadd.f32 0.0, %v479
    %v481 = vpop.f32.mrb[0].mxu0
    %482 = vdwg.mxu0
    %483 = vset.pattern.permute.xlu0 1
    %484 = vperm.xlu0 %483, %v121
    %v485 = vpop.permute.xlu0 %484
    %487 = vset.pattern.permute.xlu0 1
    %488 = vperm.xlu0 %487, %v125
    %v489 = vpop.permute.xlu0 %488
    %491 = vset.pattern.permute.xlu0 1
    %492 = vperm.xlu0 %491, %v131
    %v493 = vpop.permute.xlu0 %492
    %495 = vset.pattern.permute.xlu0 1
    %496 = vperm.xlu0 %495, %v135
    %v497 = vpop.permute.xlu0 %496
    %499 = vset.pattern.permute.xlu0 1
    %500 = vperm.xlu0 %499, %v141
    %v501 = vpop.permute.xlu0 %500
    %503 = vset.pattern.permute.xlu0 1
    %504 = vperm.xlu0 %503, %v145
    %v505 = vpop.permute.xlu0 %504
    %507 = vset.pattern.permute.xlu0 1
    %508 = vperm.xlu0 %507, %v151
    %v509 = vpop.permute.xlu0 %508
    %511 = vset.pattern.permute.xlu0 1
    %512 = vperm.xlu0 %511, %v155
    %v513 = vpop.permute.xlu0 %512
    %v515 = vlaneseq
    %v516 = vshrl.u32 %v515, 7
    %v517 = vsub.s32 1, %v516
    %v518 = vrot.slane %v196, %v517
    %v519 = vadd.f32 %v485, %v518
    %v520 = vadd.f32 %v489, %v518
    %v521 = vadd.f32 %v493, %v518
    %v522 = vadd.f32 %v497, %v518
    %v523 = vadd.f32 %v501, %v518
    %v524 = vadd.f32 %v505, %v518
    %v525 = vadd.f32 %v509, %v518
    %v526 = vadd.f32 %v513, %v518
    %vm527 = vcmp.gt.f32.partialorder %v519, 0.0
    %vm528 = vcmp.gt.f32.partialorder %v520, 0.0
    %vm529 = vcmp.gt.f32.partialorder %v521, 0.0
    %vm530 = vcmp.gt.f32.partialorder %v522, 0.0
    %vm531 = vcmp.gt.f32.partialorder %v523, 0.0
    %vm532 = vcmp.gt.f32.partialorder %v524, 0.0
    %vm533 = vcmp.gt.f32.partialorder %v525, 0.0
    %vm534 = vcmp.gt.f32.partialorder %v526, 0.0
    %v535 = vmul.f32 %v519, 0.2
    %v536 = vmul.f32 %v520, 0.2
    %v537 = vmul.f32 %v521, 0.2
    %v538 = vmul.f32 %v522, 0.2
    %v539 = vmul.f32 %v523, 0.2
    %v540 = vmul.f32 %v524, 0.2
    %v541 = vmul.f32 %v525, 0.2
    %v542 = vmul.f32 %v526, 0.2
    %v543 = vsel %vm527, %v519, %v535
    %v544 = vsel %vm528, %v520, %v536
    %v545 = vsel %vm529, %v521, %v537
    %v546 = vsel %vm530, %v522, %v538
    %v547 = vsel %vm531, %v523, %v539
    %v548 = vsel %vm532, %v524, %v540
    %v549 = vsel %vm533, %v525, %v541
    %v550 = vsel %vm534, %v526, %v542
    %v551 = vadd.f32 %v543, %v31
    %v552 = vadd.f32 %v544, %v32
    %v553 = vadd.f32 %v545, %v33
    %v554 = vadd.f32 %v546, %v34
    %v555 = vadd.f32 %v547, %v35
    %v556 = vadd.f32 %v548, %v36
    %v557 = vadd.f32 %v549, %v37
    %v558 = vadd.f32 %v550, %v38
    %v559 = vsel %vm289, %v551, -inf
    %560 = vmax.xlane.f32.xlu0 %v559
    %v561 = vpop.xlane.xlu0 %560
    %v562 = vsel %vm289, %v552, -inf
    %563 = vmax.xlane.f32.xlu0 %v562
    %v564 = vpop.xlane.xlu0 %563
    %v565 = vsel %vm289, %v553, -inf
    %566 = vmax.xlane.f32.xlu0 %v565
    %v567 = vpop.xlane.xlu0 %566
    %v568 = vsel %vm289, %v554, -inf
    %569 = vmax.xlane.f32.xlu0 %v568
    %v570 = vpop.xlane.xlu0 %569
    %v571 = vsel %vm289, %v555, -inf
    %572 = vmax.xlane.f32.xlu0 %v571
    %v573 = vpop.xlane.xlu0 %572
    %v574 = vsel %vm289, %v556, -inf
    %575 = vmax.xlane.f32.xlu0 %v574
    %v576 = vpop.xlane.xlu0 %575
    %v577 = vsel %vm289, %v557, -inf
    %578 = vmax.xlane.f32.xlu0 %v577
    %v579 = vpop.xlane.xlu0 %578
    %v580 = vsel %vm289, %v558, -inf
    %581 = vmax.xlane.f32.xlu0 %v580
    %v582 = vpop.xlane.xlu0 %581
    %v583 = vsub.f32 %v551, %v561
    %v584 = vsub.f32 %v552, %v564
    %v585 = vsub.f32 %v553, %v567
    %v586 = vsub.f32 %v554, %v570
    %v587 = vsub.f32 %v555, %v573
    %v588 = vsub.f32 %v556, %v576
    %v589 = vsub.f32 %v557, %v579
    %v590 = vsub.f32 %v558, %v582
    %v591 = vmul.f32 %v583, 1.442695
    %v592 = vpow.pop %v591
    %v593 = vmul.f32 %v584, 1.442695
    %v594 = vpow.pop %v593
    %v595 = vmul.f32 %v585, 1.442695
    %v596 = vpow.pop %v595
    %v597 = vmul.f32 %v586, 1.442695
    %v598 = vpow.pop %v597
    %v599 = vmul.f32 %v587, 1.442695
    %v600 = vpow.pop %v599
    %v601 = vmul.f32 %v588, 1.442695
    %v602 = vpow.pop %v601
    %v603 = vmul.f32 %v589, 1.442695
    %v604 = vpow.pop %v603
    %v605 = vmul.f32 %v590, 1.442695
    %v606 = vpow.pop %v605
    %v607 = vsel %vm39, %v592, 0.0
    %v608 = vsel %vm40, %v594, 0.0
    %v609 = vsel %vm41, %v596, 0.0
    %v610 = vsel %vm42, %v598, 0.0
    %v611 = vsel %vm43, %v600, 0.0
    %v612 = vsel %vm44, %v602, 0.0
    %v613 = vsel %vm45, %v604, 0.0
    %v614 = vsel %vm46, %v606, 0.0
    %v615 = vsel %vm289, %v607, 0.0
    %616 = vadd.xlane.f32.xlu0 %v615
    %v617 = vpop.xlane.xlu0 %616
    %v618 = vsel %vm289, %v608, 0.0
    %619 = vadd.xlane.f32.xlu0 %v618
    %v620 = vpop.xlane.xlu0 %619
    %v621 = vsel %vm289, %v609, 0.0
    %622 = vadd.xlane.f32.xlu0 %v621
    %v623 = vpop.xlane.xlu0 %622
    %v624 = vsel %vm289, %v610, 0.0
    %625 = vadd.xlane.f32.xlu0 %v624
    %v626 = vpop.xlane.xlu0 %625
    %v627 = vsel %vm289, %v611, 0.0
    %628 = vadd.xlane.f32.xlu0 %v627
    %v629 = vpop.xlane.xlu0 %628
    %v630 = vsel %vm289, %v612, 0.0
    %631 = vadd.xlane.f32.xlu0 %v630
    %v632 = vpop.xlane.xlu0 %631
    %v633 = vsel %vm289, %v613, 0.0
    %634 = vadd.xlane.f32.xlu0 %v633
    %v635 = vpop.xlane.xlu0 %634
    %v636 = vsel %vm289, %v614, 0.0
    %637 = vadd.xlane.f32.xlu0 %v636
    %v638 = vpop.xlane.xlu0 %637
    %vm639 = vcmp.gt.f32.partialorder %v617, 0.0
    %vm640 = vcmp.gt.f32.partialorder %v620, 0.0
    %vm641 = vcmp.gt.f32.partialorder %v623, 0.0
    %vm642 = vcmp.gt.f32.partialorder %v626, 0.0
    %vm643 = vcmp.gt.f32.partialorder %v629, 0.0
    %vm644 = vcmp.gt.f32.partialorder %v632, 0.0
    %vm645 = vcmp.gt.f32.partialorder %v635, 0.0
    %vm646 = vcmp.gt.f32.partialorder %v638, 0.0
    %v647 = vsel %vm639, %v617, 1.0
    %v648 = vsel %vm640, %v620, 1.0
    %v649 = vsel %vm641, %v623, 1.0
    %v650 = vsel %vm642, %v626, 1.0
    %v651 = vsel %vm643, %v629, 1.0
    %v652 = vsel %vm644, %v632, 1.0
    %v653 = vsel %vm645, %v635, 1.0
    %v654 = vsel %vm646, %v638, 1.0
    %v655 = vrcp.pop %v647
    %v656 = vrcp.pop %v648
    %v657 = vrcp.pop %v649
    %v658 = vrcp.pop %v650
    %v659 = vrcp.pop %v651
    %v660 = vrcp.pop %v652
    %v661 = vrcp.pop %v653
    %v662 = vrcp.pop %v654
    %v663 = vmul.f32 %v607, %v655
    %v664 = vmul.f32 %v608, %v656
    %v665 = vmul.f32 %v609, %v657
    %v666 = vmul.f32 %v610, %v658
    %v667 = vmul.f32 %v611, %v659
    %v668 = vmul.f32 %v612, %v660
    %v669 = vmul.f32 %v613, %v661
    %v670 = vmul.f32 %v614, %v662
    %v671 = vpack.c.bf16 %v664, %v663
    %v672 = vpack.c.bf16 %v666, %v665
    %v673 = vpack.c.bf16 %v668, %v667
    %v674 = vpack.c.bf16 %v670, %v669
    %679 = vrot.lane.b32.xlu0 %v201, 96
    %v680 = vpop.permute.xlu0 %679
    %681 = vrot.lane.b32.xlu0 %v202, 96
    %v682 = vpop.permute.xlu0 %681
    %683 = vrot.lane.b32.xlu0 %v203, 96
    %v684 = vpop.permute.xlu0 %683
    %685 = vrot.lane.b32.xlu0 %v204, 96
    %v686 = vpop.permute.xlu0 %685
    %v692 = vsel %vm289, %v671, 0
    %v695 = vsel %vm289, %v672, 0
    %v698 = vsel %vm289, %v673, 0
    %v701 = vsel %vm289, %v674, 0
    %703 = vmatprep.subr.bf16.mxu0 0
    %704 = vmatpush1.bf16.msra.mxu0 %v680
    %705 = vmatprep.subr.bf16.mxu0 0
    %706 = vmatpush1.bf16.msra.mxu0 %v682
    %707 = vmatprep.subr.bf16.mxu0 0
    %708 = vmatpush1.bf16.msra.mxu0 %v684
    %709 = vmatprep.subr.bf16.mxu0 0
    %710 = vmatpush1.bf16.msra.mxu0 %v686
    %711 = vmatprep.subr.bf16.mxu0 0
    %712 = vmatpush1.bf16.msra.mxu0 0
    %713 = vmatprep.subr.bf16.mxu0 0
    %714 = vmatpush1.bf16.msra.mxu0 0
    %715 = vmatprep.subr.bf16.mxu0 0
    %716 = vmatpush1.bf16.msra.mxu0 0
    %717 = vmatprep.subr.bf16.mxu0 0
    %718 = vmatpush1.bf16.msra.mxu0 0
    %719 = vmatprep.subr.bf16.mxu0 0
    %720 = vmatpush1.bf16.msra.mxu0 0
    %721 = vmatprep.subr.bf16.mxu0 0
    %722 = vmatpush1.bf16.msra.mxu0 0
    %723 = vmatprep.subr.bf16.mxu0 0
    %724 = vmatpush1.bf16.msra.mxu0 0
    %725 = vmatprep.subr.bf16.mxu0 0
    %726 = vmatpush1.bf16.msra.mxu0 0
    %727 = vmatprep.subr.bf16.mxu0 0
    %728 = vmatpush1.bf16.msra.mxu0 0
    %729 = vmatprep.subr.bf16.mxu0 0
    %730 = vmatpush1.bf16.msra.mxu0 0
    %731 = vmatprep.subr.bf16.mxu0 0
    %732 = vmatpush1.bf16.msra.mxu0 0
    %733 = vmatprep.subr.bf16.mxu0 0
    %734 = vmatpush1.bf16.msra.mxu0 0
    %735 = vmatprep.mubr.bf16.mxu0 0
    %736 = vmatmul.mubr.bf16.gmra.mrb[0].mxu0 %v692
    %v737 = vpop.f32.mrb[0].mxu0
    %v738 = vadd.f32 0.0, %v737
    %v739 = vpop.f32.mrb[0].mxu0
    %v740 = vpop.f32.mrb[0].mxu0
    %v741 = vadd.f32 0.0, %v740
    %v742 = vpop.f32.mrb[0].mxu0
    %743 = vmatprep.mubr.bf16.mxu0 0
    %744 = vmatmul.mubr.bf16.gmra.mrb[0].mxu0 %v695
    %v745 = vpop.f32.mrb[0].mxu0
    %v746 = vadd.f32 0.0, %v745
    %v747 = vpop.f32.mrb[0].mxu0
    %v748 = vpop.f32.mrb[0].mxu0
    %v749 = vadd.f32 0.0, %v748
    %v750 = vpop.f32.mrb[0].mxu0
    %751 = vmatprep.mubr.bf16.mxu0 0
    %752 = vmatmul.mubr.bf16.gmra.mrb[0].mxu0 %v698
    %v753 = vpop.f32.mrb[0].mxu0
    %v754 = vadd.f32 0.0, %v753
    %v755 = vpop.f32.mrb[0].mxu0
    %v756 = vpop.f32.mrb[0].mxu0
    %v757 = vadd.f32 0.0, %v756
    %v758 = vpop.f32.mrb[0].mxu0
    %759 = vmatprep.mubr.bf16.mxu0 0
    %760 = vmatmul.mubr.bf16.gmra.mrb[0].mxu0 %v701
    %v761 = vpop.f32.mrb[0].mxu0
    %v762 = vadd.f32 0.0, %v761
    %v763 = vpop.f32.mrb[0].mxu0
    %v764 = vpop.f32.mrb[0].mxu0
    %v765 = vadd.f32 0.0, %v764
    %v766 = vpop.f32.mrb[0].mxu0
    %767 = vdwg.mxu0
    %768 = vset.pattern.permute.xlu0 2
    %769 = vperm.xlu0 %768, %v121
    %v770 = vpop.permute.xlu0 %769
    %772 = vset.pattern.permute.xlu0 2
    %773 = vperm.xlu0 %772, %v125
    %v774 = vpop.permute.xlu0 %773
    %776 = vset.pattern.permute.xlu0 2
    %777 = vperm.xlu0 %776, %v131
    %v778 = vpop.permute.xlu0 %777
    %780 = vset.pattern.permute.xlu0 2
    %781 = vperm.xlu0 %780, %v135
    %v782 = vpop.permute.xlu0 %781
    %784 = vset.pattern.permute.xlu0 2
    %785 = vperm.xlu0 %784, %v141
    %v786 = vpop.permute.xlu0 %785
    %788 = vset.pattern.permute.xlu0 2
    %789 = vperm.xlu0 %788, %v145
    %v790 = vpop.permute.xlu0 %789
    %792 = vset.pattern.permute.xlu0 2
    %793 = vperm.xlu0 %792, %v151
    %v794 = vpop.permute.xlu0 %793
    %796 = vset.pattern.permute.xlu0 2
    %797 = vperm.xlu0 %796, %v155
    %v798 = vpop.permute.xlu0 %797
    %v800 = vlaneseq
    %v801 = vshrl.u32 %v800, 7
    %v802 = vsub.s32 2, %v801
    %v803 = vrot.slane %v196, %v802
    %v804 = vadd.f32 %v770, %v803
    %v805 = vadd.f32 %v774, %v803
    %v806 = vadd.f32 %v778, %v803
    %v807 = vadd.f32 %v782, %v803
    %v808 = vadd.f32 %v786, %v803
    %v809 = vadd.f32 %v790, %v803
    %v810 = vadd.f32 %v794, %v803
    %v811 = vadd.f32 %v798, %v803
    %vm812 = vcmp.gt.f32.partialorder %v804, 0.0
    %vm813 = vcmp.gt.f32.partialorder %v805, 0.0
    %vm814 = vcmp.gt.f32.partialorder %v806, 0.0
    %vm815 = vcmp.gt.f32.partialorder %v807, 0.0
    %vm816 = vcmp.gt.f32.partialorder %v808, 0.0
    %vm817 = vcmp.gt.f32.partialorder %v809, 0.0
    %vm818 = vcmp.gt.f32.partialorder %v810, 0.0
    %vm819 = vcmp.gt.f32.partialorder %v811, 0.0
    %v820 = vmul.f32 %v804, 0.2
    %v821 = vmul.f32 %v805, 0.2
    %v822 = vmul.f32 %v806, 0.2
    %v823 = vmul.f32 %v807, 0.2
    %v824 = vmul.f32 %v808, 0.2
    %v825 = vmul.f32 %v809, 0.2
    %v826 = vmul.f32 %v810, 0.2
    %v827 = vmul.f32 %v811, 0.2
    %v828 = vsel %vm812, %v804, %v820
    %v829 = vsel %vm813, %v805, %v821
    %v830 = vsel %vm814, %v806, %v822
    %v831 = vsel %vm815, %v807, %v823
    %v832 = vsel %vm816, %v808, %v824
    %v833 = vsel %vm817, %v809, %v825
    %v834 = vsel %vm818, %v810, %v826
    %v835 = vsel %vm819, %v811, %v827
    %v836 = vadd.f32 %v828, %v31
    %v837 = vadd.f32 %v829, %v32
    %v838 = vadd.f32 %v830, %v33
    %v839 = vadd.f32 %v831, %v34
    %v840 = vadd.f32 %v832, %v35
    %v841 = vadd.f32 %v833, %v36
    %v842 = vadd.f32 %v834, %v37
    %v843 = vadd.f32 %v835, %v38
    %v844 = vsel %vm289, %v836, -inf
    %845 = vmax.xlane.f32.xlu0 %v844
    %v846 = vpop.xlane.xlu0 %845
    %v847 = vsel %vm289, %v837, -inf
    %848 = vmax.xlane.f32.xlu0 %v847
    %v849 = vpop.xlane.xlu0 %848
    %v850 = vsel %vm289, %v838, -inf
    %851 = vmax.xlane.f32.xlu0 %v850
    %v852 = vpop.xlane.xlu0 %851
    %v853 = vsel %vm289, %v839, -inf
    %854 = vmax.xlane.f32.xlu0 %v853
    %v855 = vpop.xlane.xlu0 %854
    %v856 = vsel %vm289, %v840, -inf
    %857 = vmax.xlane.f32.xlu0 %v856
    %v858 = vpop.xlane.xlu0 %857
    %v859 = vsel %vm289, %v841, -inf
    %860 = vmax.xlane.f32.xlu0 %v859
    %v861 = vpop.xlane.xlu0 %860
    %v862 = vsel %vm289, %v842, -inf
    %863 = vmax.xlane.f32.xlu0 %v862
    %v864 = vpop.xlane.xlu0 %863
    %v865 = vsel %vm289, %v843, -inf
    %866 = vmax.xlane.f32.xlu0 %v865
    %v867 = vpop.xlane.xlu0 %866
    %v868 = vsub.f32 %v836, %v846
    %v869 = vsub.f32 %v837, %v849
    %v870 = vsub.f32 %v838, %v852
    %v871 = vsub.f32 %v839, %v855
    %v872 = vsub.f32 %v840, %v858
    %v873 = vsub.f32 %v841, %v861
    %v874 = vsub.f32 %v842, %v864
    %v875 = vsub.f32 %v843, %v867
    %v876 = vmul.f32 %v868, 1.442695
    %v877 = vpow.pop %v876
    %v878 = vmul.f32 %v869, 1.442695
    %v879 = vpow.pop %v878
    %v880 = vmul.f32 %v870, 1.442695
    %v881 = vpow.pop %v880
    %v882 = vmul.f32 %v871, 1.442695
    %v883 = vpow.pop %v882
    %v884 = vmul.f32 %v872, 1.442695
    %v885 = vpow.pop %v884
    %v886 = vmul.f32 %v873, 1.442695
    %v887 = vpow.pop %v886
    %v888 = vmul.f32 %v874, 1.442695
    %v889 = vpow.pop %v888
    %v890 = vmul.f32 %v875, 1.442695
    %v891 = vpow.pop %v890
    %v892 = vsel %vm39, %v877, 0.0
    %v893 = vsel %vm40, %v879, 0.0
    %v894 = vsel %vm41, %v881, 0.0
    %v895 = vsel %vm42, %v883, 0.0
    %v896 = vsel %vm43, %v885, 0.0
    %v897 = vsel %vm44, %v887, 0.0
    %v898 = vsel %vm45, %v889, 0.0
    %v899 = vsel %vm46, %v891, 0.0
    %v900 = vsel %vm289, %v892, 0.0
    %901 = vadd.xlane.f32.xlu0 %v900
    %v902 = vpop.xlane.xlu0 %901
    %v903 = vsel %vm289, %v893, 0.0
    %904 = vadd.xlane.f32.xlu0 %v903
    %v905 = vpop.xlane.xlu0 %904
    %v906 = vsel %vm289, %v894, 0.0
    %907 = vadd.xlane.f32.xlu0 %v906
    %v908 = vpop.xlane.xlu0 %907
    %v909 = vsel %vm289, %v895, 0.0
    %910 = vadd.xlane.f32.xlu0 %v909
    %v911 = vpop.xlane.xlu0 %910
    %v912 = vsel %vm289, %v896, 0.0
    %913 = vadd.xlane.f32.xlu0 %v912
    %v914 = vpop.xlane.xlu0 %913
    %v915 = vsel %vm289, %v897, 0.0
    %916 = vadd.xlane.f32.xlu0 %v915
    %v917 = vpop.xlane.xlu0 %916
    %v918 = vsel %vm289, %v898, 0.0
    %919 = vadd.xlane.f32.xlu0 %v918
    %v920 = vpop.xlane.xlu0 %919
    %v921 = vsel %vm289, %v899, 0.0
    %922 = vadd.xlane.f32.xlu0 %v921
    %v923 = vpop.xlane.xlu0 %922
    %vm924 = vcmp.gt.f32.partialorder %v902, 0.0
    %vm925 = vcmp.gt.f32.partialorder %v905, 0.0
    %vm926 = vcmp.gt.f32.partialorder %v908, 0.0
    %vm927 = vcmp.gt.f32.partialorder %v911, 0.0
    %vm928 = vcmp.gt.f32.partialorder %v914, 0.0
    %vm929 = vcmp.gt.f32.partialorder %v917, 0.0
    %vm930 = vcmp.gt.f32.partialorder %v920, 0.0
    %vm931 = vcmp.gt.f32.partialorder %v923, 0.0
    %v932 = vsel %vm924, %v902, 1.0
    %v933 = vsel %vm925, %v905, 1.0
    %v934 = vsel %vm926, %v908, 1.0
    %v935 = vsel %vm927, %v911, 1.0
    %v936 = vsel %vm928, %v914, 1.0
    %v937 = vsel %vm929, %v917, 1.0
    %v938 = vsel %vm930, %v920, 1.0
    %v939 = vsel %vm931, %v923, 1.0
    %v940 = vrcp.pop %v932
    %v941 = vrcp.pop %v933
    %v942 = vrcp.pop %v934
    %v943 = vrcp.pop %v935
    %v944 = vrcp.pop %v936
    %v945 = vrcp.pop %v937
    %v946 = vrcp.pop %v938
    %v947 = vrcp.pop %v939
    %v948 = vmul.f32 %v892, %v940
    %v949 = vmul.f32 %v893, %v941
    %v950 = vmul.f32 %v894, %v942
    %v951 = vmul.f32 %v895, %v943
    %v952 = vmul.f32 %v896, %v944
    %v953 = vmul.f32 %v897, %v945
    %v954 = vmul.f32 %v898, %v946
    %v955 = vmul.f32 %v899, %v947
    %v956 = vpack.c.bf16 %v949, %v948
    %v957 = vpack.c.bf16 %v951, %v950
    %v958 = vpack.c.bf16 %v953, %v952
    %v959 = vpack.c.bf16 %v955, %v954
    %960 = vrot.lane.b32.xlu0 %v201, 64
    %v961 = vpop.permute.xlu0 %960
    %962 = vrot.lane.b32.xlu0 %v202, 64
    %v963 = vpop.permute.xlu0 %962
    %964 = vrot.lane.b32.xlu0 %v203, 64
    %v965 = vpop.permute.xlu0 %964
    %966 = vrot.lane.b32.xlu0 %v204, 64
    %v967 = vpop.permute.xlu0 %966
    %v973 = vsel %vm289, %v956, 0
    %v976 = vsel %vm289, %v957, 0
    %v979 = vsel %vm289, %v958, 0
    %v982 = vsel %vm289, %v959, 0
    %984 = vmatprep.subr.bf16.mxu0 0
    %985 = vmatpush1.bf16.msra.mxu0 %v961
    %986 = vmatprep.subr.bf16.mxu0 0
    %987 = vmatpush1.bf16.msra.mxu0 %v963
    %988 = vmatprep.subr.bf16.mxu0 0
    %989 = vmatpush1.bf16.msra.mxu0 %v965
    %990 = vmatprep.subr.bf16.mxu0 0
    %991 = vmatpush1.bf16.msra.mxu0 %v967
    %992 = vmatprep.subr.bf16.mxu0 0
    %993 = vmatpush1.bf16.msra.mxu0 0
    %994 = vmatprep.subr.bf16.mxu0 0
    %995 = vmatpush1.bf16.msra.mxu0 0
    %996 = vmatprep.subr.bf16.mxu0 0
    %997 = vmatpush1.bf16.msra.mxu0 0
    %998 = vmatprep.subr.bf16.mxu0 0
    %999 = vmatpush1.bf16.msra.mxu0 0
    %1000 = vmatprep.subr.bf16.mxu0 0
    %1001 = vmatpush1.bf16.msra.mxu0 0
    %1002 = vmatprep.subr.bf16.mxu0 0
    %1003 = vmatpush1.bf16.msra.mxu0 0
    %1004 = vmatprep.subr.bf16.mxu0 0
    %1005 = vmatpush1.bf16.msra.mxu0 0
    %1006 = vmatprep.subr.bf16.mxu0 0
    %1007 = vmatpush1.bf16.msra.mxu0 0
    %1008 = vmatprep.subr.bf16.mxu0 0
    %1009 = vmatpush1.bf16.msra.mxu0 0
    %1010 = vmatprep.subr.bf16.mxu0 0
    %1011 = vmatpush1.bf16.msra.mxu0 0
    %1012 = vmatprep.subr.bf16.mxu0 0
    %1013 = vmatpush1.bf16.msra.mxu0 0
    %1014 = vmatprep.subr.bf16.mxu0 0
    %1015 = vmatpush1.bf16.msra.mxu0 0
    %1016 = vmatprep.mubr.bf16.mxu0 0
    %1017 = vmatmul.mubr.bf16.gmra.mrb[0].mxu0 %v973
    %v1018 = vpop.f32.mrb[0].mxu0
    %v1019 = vadd.f32 0.0, %v1018
    %v1020 = vpop.f32.mrb[0].mxu0
    %v1021 = vpop.f32.mrb[0].mxu0
    %v1022 = vadd.f32 0.0, %v1021
    %v1023 = vpop.f32.mrb[0].mxu0
    %1024 = vmatprep.mubr.bf16.mxu0 0
    %1025 = vmatmul.mubr.bf16.gmra.mrb[0].mxu0 %v976
    %v1026 = vpop.f32.mrb[0].mxu0
    %v1027 = vadd.f32 0.0, %v1026
    %v1028 = vpop.f32.mrb[0].mxu0
    %v1029 = vpop.f32.mrb[0].mxu0
    %v1030 = vadd.f32 0.0, %v1029
    %v1031 = vpop.f32.mrb[0].mxu0
    %1032 = vmatprep.mubr.bf16.mxu0 0
    %1033 = vmatmul.mubr.bf16.gmra.mrb[0].mxu0 %v979
    %v1034 = vpop.f32.mrb[0].mxu0
    %v1035 = vadd.f32 0.0, %v1034
    %v1036 = vpop.f32.mrb[0].mxu0
    %v1037 = vpop.f32.mrb[0].mxu0
    %v1038 = vadd.f32 0.0, %v1037
    %v1039 = vpop.f32.mrb[0].mxu0
    %1040 = vmatprep.mubr.bf16.mxu0 0
    %1041 = vmatmul.mubr.bf16.gmra.mrb[0].mxu0 %v982
    %v1042 = vpop.f32.mrb[0].mxu0
    %v1043 = vadd.f32 0.0, %v1042
    %v1044 = vpop.f32.mrb[0].mxu0
    %v1045 = vpop.f32.mrb[0].mxu0
    %v1046 = vadd.f32 0.0, %v1045
    %v1047 = vpop.f32.mrb[0].mxu0
    %1048 = vdwg.mxu0
    %1049 = vset.pattern.permute.xlu0 3
    %1050 = vperm.xlu0 %1049, %v121
    %v1051 = vpop.permute.xlu0 %1050
    %1053 = vset.pattern.permute.xlu0 3
    %1054 = vperm.xlu0 %1053, %v125
    %v1055 = vpop.permute.xlu0 %1054
    %1057 = vset.pattern.permute.xlu0 3
    %1058 = vperm.xlu0 %1057, %v131
    %v1059 = vpop.permute.xlu0 %1058
    %1061 = vset.pattern.permute.xlu0 3
    %1062 = vperm.xlu0 %1061, %v135
    %v1063 = vpop.permute.xlu0 %1062
    %1065 = vset.pattern.permute.xlu0 3
    %1066 = vperm.xlu0 %1065, %v141
    %v1067 = vpop.permute.xlu0 %1066
    %1069 = vset.pattern.permute.xlu0 3
    %1070 = vperm.xlu0 %1069, %v145
    %v1071 = vpop.permute.xlu0 %1070
    %1073 = vset.pattern.permute.xlu0 3
    %1074 = vperm.xlu0 %1073, %v151
    %v1075 = vpop.permute.xlu0 %1074
    %1077 = vset.pattern.permute.xlu0 3
    %1078 = vperm.xlu0 %1077, %v155
    %v1079 = vpop.permute.xlu0 %1078
    %v1081 = vlaneseq
    %v1082 = vshrl.u32 %v1081, 7
    %v1083 = vsub.s32 3, %v1082
    %v1084 = vrot.slane %v196, %v1083
    %v1085 = vadd.f32 %v1051, %v1084
    %v1086 = vadd.f32 %v1055, %v1084
    %v1087 = vadd.f32 %v1059, %v1084
    %v1088 = vadd.f32 %v1063, %v1084
    %v1089 = vadd.f32 %v1067, %v1084
    %v1090 = vadd.f32 %v1071, %v1084
    %v1091 = vadd.f32 %v1075, %v1084
    %v1092 = vadd.f32 %v1079, %v1084
    %vm1093 = vcmp.gt.f32.partialorder %v1085, 0.0
    %vm1094 = vcmp.gt.f32.partialorder %v1086, 0.0
    %vm1095 = vcmp.gt.f32.partialorder %v1087, 0.0
    %vm1096 = vcmp.gt.f32.partialorder %v1088, 0.0
    %vm1097 = vcmp.gt.f32.partialorder %v1089, 0.0
    %vm1098 = vcmp.gt.f32.partialorder %v1090, 0.0
    %vm1099 = vcmp.gt.f32.partialorder %v1091, 0.0
    %vm1100 = vcmp.gt.f32.partialorder %v1092, 0.0
    %v1101 = vmul.f32 %v1085, 0.2
    %v1102 = vmul.f32 %v1086, 0.2
    %v1103 = vmul.f32 %v1087, 0.2
    %v1104 = vmul.f32 %v1088, 0.2
    %v1105 = vmul.f32 %v1089, 0.2
    %v1106 = vmul.f32 %v1090, 0.2
    %v1107 = vmul.f32 %v1091, 0.2
    %v1108 = vmul.f32 %v1092, 0.2
    %v1109 = vsel %vm1093, %v1085, %v1101
    %v1110 = vsel %vm1094, %v1086, %v1102
    %v1111 = vsel %vm1095, %v1087, %v1103
    %v1112 = vsel %vm1096, %v1088, %v1104
    %v1113 = vsel %vm1097, %v1089, %v1105
    %v1114 = vsel %vm1098, %v1090, %v1106
    %v1115 = vsel %vm1099, %v1091, %v1107
    %v1116 = vsel %vm1100, %v1092, %v1108
    %v1117 = vadd.f32 %v1109, %v31
    %v1118 = vadd.f32 %v1110, %v32
    %v1119 = vadd.f32 %v1111, %v33
    %v1120 = vadd.f32 %v1112, %v34
    %v1121 = vadd.f32 %v1113, %v35
    %v1122 = vadd.f32 %v1114, %v36
    %v1123 = vadd.f32 %v1115, %v37
    %v1124 = vadd.f32 %v1116, %v38
    %v1125 = vsel %vm289, %v1117, -inf
    %1126 = vmax.xlane.f32.xlu0 %v1125
    %v1127 = vpop.xlane.xlu0 %1126
    %v1128 = vsel %vm289, %v1118, -inf
    %1129 = vmax.xlane.f32.xlu0 %v1128
    %v1130 = vpop.xlane.xlu0 %1129
    %v1131 = vsel %vm289, %v1119, -inf
    %1132 = vmax.xlane.f32.xlu0 %v1131
    %v1133 = vpop.xlane.xlu0 %1132
    %v1134 = vsel %vm289, %v1120, -inf
    %1135 = vmax.xlane.f32.xlu0 %v1134
    %v1136 = vpop.xlane.xlu0 %1135
    %v1137 = vsel %vm289, %v1121, -inf
    %1138 = vmax.xlane.f32.xlu0 %v1137
    %v1139 = vpop.xlane.xlu0 %1138
    %v1140 = vsel %vm289, %v1122, -inf
    %1141 = vmax.xlane.f32.xlu0 %v1140
    %v1142 = vpop.xlane.xlu0 %1141
    %v1143 = vsel %vm289, %v1123, -inf
    %1144 = vmax.xlane.f32.xlu0 %v1143
    %v1145 = vpop.xlane.xlu0 %1144
    %v1146 = vsel %vm289, %v1124, -inf
    %1147 = vmax.xlane.f32.xlu0 %v1146
    %v1148 = vpop.xlane.xlu0 %1147
    %v1149 = vsub.f32 %v1117, %v1127
    %v1150 = vsub.f32 %v1118, %v1130
    %v1151 = vsub.f32 %v1119, %v1133
    %v1152 = vsub.f32 %v1120, %v1136
    %v1153 = vsub.f32 %v1121, %v1139
    %v1154 = vsub.f32 %v1122, %v1142
    %v1155 = vsub.f32 %v1123, %v1145
    %v1156 = vsub.f32 %v1124, %v1148
    %v1157 = vmul.f32 %v1149, 1.442695
    %v1158 = vpow.pop %v1157
    %v1159 = vmul.f32 %v1150, 1.442695
    %v1160 = vpow.pop %v1159
    %v1161 = vmul.f32 %v1151, 1.442695
    %v1162 = vpow.pop %v1161
    %v1163 = vmul.f32 %v1152, 1.442695
    %v1164 = vpow.pop %v1163
    %v1165 = vmul.f32 %v1153, 1.442695
    %v1166 = vpow.pop %v1165
    %v1167 = vmul.f32 %v1154, 1.442695
    %v1168 = vpow.pop %v1167
    %v1169 = vmul.f32 %v1155, 1.442695
    %v1170 = vpow.pop %v1169
    %v1171 = vmul.f32 %v1156, 1.442695
    %v1172 = vpow.pop %v1171
    %v1173 = vsel %vm39, %v1158, 0.0
    %v1174 = vsel %vm40, %v1160, 0.0
    %v1175 = vsel %vm41, %v1162, 0.0
    %v1176 = vsel %vm42, %v1164, 0.0
    %v1177 = vsel %vm43, %v1166, 0.0
    %v1178 = vsel %vm44, %v1168, 0.0
    %v1179 = vsel %vm45, %v1170, 0.0
    %v1180 = vsel %vm46, %v1172, 0.0
    %v1181 = vsel %vm289, %v1173, 0.0
    %1182 = vadd.xlane.f32.xlu0 %v1181
    %v1183 = vpop.xlane.xlu0 %1182
    %v1184 = vsel %vm289, %v1174, 0.0
    %1185 = vadd.xlane.f32.xlu0 %v1184
    %v1186 = vpop.xlane.xlu0 %1185
    %v1187 = vsel %vm289, %v1175, 0.0
    %1188 = vadd.xlane.f32.xlu0 %v1187
    %v1189 = vpop.xlane.xlu0 %1188
    %v1190 = vsel %vm289, %v1176, 0.0
    %1191 = vadd.xlane.f32.xlu0 %v1190
    %v1192 = vpop.xlane.xlu0 %1191
    %v1193 = vsel %vm289, %v1177, 0.0
    %1194 = vadd.xlane.f32.xlu0 %v1193
    %v1195 = vpop.xlane.xlu0 %1194
    %v1196 = vsel %vm289, %v1178, 0.0
    %1197 = vadd.xlane.f32.xlu0 %v1196
    %v1198 = vpop.xlane.xlu0 %1197
    %v1199 = vsel %vm289, %v1179, 0.0
    %1200 = vadd.xlane.f32.xlu0 %v1199
    %v1201 = vpop.xlane.xlu0 %1200
    %v1202 = vsel %vm289, %v1180, 0.0
    %1203 = vadd.xlane.f32.xlu0 %v1202
    %v1204 = vpop.xlane.xlu0 %1203
    %vm1205 = vcmp.gt.f32.partialorder %v1183, 0.0
    %vm1206 = vcmp.gt.f32.partialorder %v1186, 0.0
    %vm1207 = vcmp.gt.f32.partialorder %v1189, 0.0
    %vm1208 = vcmp.gt.f32.partialorder %v1192, 0.0
    %vm1209 = vcmp.gt.f32.partialorder %v1195, 0.0
    %vm1210 = vcmp.gt.f32.partialorder %v1198, 0.0
    %vm1211 = vcmp.gt.f32.partialorder %v1201, 0.0
    %vm1212 = vcmp.gt.f32.partialorder %v1204, 0.0
    %v1213 = vsel %vm1205, %v1183, 1.0
    %v1214 = vsel %vm1206, %v1186, 1.0
    %v1215 = vsel %vm1207, %v1189, 1.0
    %v1216 = vsel %vm1208, %v1192, 1.0
    %v1217 = vsel %vm1209, %v1195, 1.0
    %v1218 = vsel %vm1210, %v1198, 1.0
    %v1219 = vsel %vm1211, %v1201, 1.0
    %v1220 = vsel %vm1212, %v1204, 1.0
    %v1221 = vrcp.pop %v1213
    %v1222 = vrcp.pop %v1214
    %v1223 = vrcp.pop %v1215
    %v1224 = vrcp.pop %v1216
    %v1225 = vrcp.pop %v1217
    %v1226 = vrcp.pop %v1218
    %v1227 = vrcp.pop %v1219
    %v1228 = vrcp.pop %v1220
    %v1229 = vmul.f32 %v1173, %v1221
    %v1230 = vmul.f32 %v1174, %v1222
    %v1231 = vmul.f32 %v1175, %v1223
    %v1232 = vmul.f32 %v1176, %v1224
    %v1233 = vmul.f32 %v1177, %v1225
    %v1234 = vmul.f32 %v1178, %v1226
    %v1235 = vmul.f32 %v1179, %v1227
    %v1236 = vmul.f32 %v1180, %v1228
    %v1237 = vpack.c.bf16 %v1230, %v1229
    %v1238 = vpack.c.bf16 %v1232, %v1231
    %v1239 = vpack.c.bf16 %v1234, %v1233
    %v1240 = vpack.c.bf16 %v1236, %v1235
    %1241 = vrot.lane.b32.xlu0 %v201, 32
    %v1242 = vpop.permute.xlu0 %1241
    %1243 = vrot.lane.b32.xlu0 %v202, 32
    %v1244 = vpop.permute.xlu0 %1243
    %1245 = vrot.lane.b32.xlu0 %v203, 32
    %v1246 = vpop.permute.xlu0 %1245
    %1247 = vrot.lane.b32.xlu0 %v204, 32
    %v1248 = vpop.permute.xlu0 %1247
    %v1254 = vsel %vm289, %v1237, 0
    %v1257 = vsel %vm289, %v1238, 0
    %v1260 = vsel %vm289, %v1239, 0
    %v1263 = vsel %vm289, %v1240, 0
    %1265 = vmatprep.subr.bf16.mxu0 0
    %1266 = vmatpush1.bf16.msra.mxu0 %v1242
    %1267 = vmatprep.subr.bf16.mxu0 0
    %1268 = vmatpush1.bf16.msra.mxu0 %v1244
    %1269 = vmatprep.subr.bf16.mxu0 0
    %1270 = vmatpush1.bf16.msra.mxu0 %v1246
    %1271 = vmatprep.subr.bf16.mxu0 0
    %1272 = vmatpush1.bf16.msra.mxu0 %v1248
    %1273 = vmatprep.subr.bf16.mxu0 0
    %1274 = vmatpush1.bf16.msra.mxu0 0
    %1275 = vmatprep.subr.bf16.mxu0 0
    %1276 = vmatpush1.bf16.msra.mxu0 0
    %1277 = vmatprep.subr.bf16.mxu0 0
    %1278 = vmatpush1.bf16.msra.mxu0 0
    %1279 = vmatprep.subr.bf16.mxu0 0
    %1280 = vmatpush1.bf16.msra.mxu0 0
    %1281 = vmatprep.subr.bf16.mxu0 0
    %1282 = vmatpush1.bf16.msra.mxu0 0
    %1283 = vmatprep.subr.bf16.mxu0 0
    %1284 = vmatpush1.bf16.msra.mxu0 0
    %1285 = vmatprep.subr.bf16.mxu0 0
    %1286 = vmatpush1.bf16.msra.mxu0 0
    %1287 = vmatprep.subr.bf16.mxu0 0
    %1288 = vmatpush1.bf16.msra.mxu0 0
    %1289 = vmatprep.subr.bf16.mxu0 0
    %1290 = vmatpush1.bf16.msra.mxu0 0
    %1291 = vmatprep.subr.bf16.mxu0 0
    %1292 = vmatpush1.bf16.msra.mxu0 0
    %1293 = vmatprep.subr.bf16.mxu0 0
    %1294 = vmatpush1.bf16.msra.mxu0 0
    %1295 = vmatprep.subr.bf16.mxu0 0
    %1296 = vmatpush1.bf16.msra.mxu0 0
    %1297 = vmatprep.mubr.bf16.mxu0 0
    %1298 = vmatmul.mubr.bf16.gmra.mrb[0].mxu0 %v1254
    %v1299 = vpop.f32.mrb[0].mxu0
    %v1300 = vadd.f32 0.0, %v1299
    %v1301 = vpop.f32.mrb[0].mxu0
    %v1302 = vpop.f32.mrb[0].mxu0
    %v1303 = vadd.f32 0.0, %v1302
    %v1304 = vpop.f32.mrb[0].mxu0
    %1305 = vmatprep.mubr.bf16.mxu0 0
    %1306 = vmatmul.mubr.bf16.gmra.mrb[0].mxu0 %v1257
    %v1307 = vpop.f32.mrb[0].mxu0
    %v1308 = vadd.f32 0.0, %v1307
    %v1309 = vpop.f32.mrb[0].mxu0
    %v1310 = vpop.f32.mrb[0].mxu0
    %v1311 = vadd.f32 0.0, %v1310
    %v1312 = vpop.f32.mrb[0].mxu0
    %1313 = vmatprep.mubr.bf16.mxu0 0
    %1314 = vmatmul.mubr.bf16.gmra.mrb[0].mxu0 %v1260
    %v1315 = vpop.f32.mrb[0].mxu0
    %v1316 = vadd.f32 0.0, %v1315
    %v1317 = vpop.f32.mrb[0].mxu0
    %v1318 = vpop.f32.mrb[0].mxu0
    %v1319 = vadd.f32 0.0, %v1318
    %v1320 = vpop.f32.mrb[0].mxu0
    %1321 = vmatprep.mubr.bf16.mxu0 0
    %1322 = vmatmul.mubr.bf16.gmra.mrb[0].mxu0 %v1263
    %v1323 = vpop.f32.mrb[0].mxu0
    %v1324 = vadd.f32 0.0, %v1323
    %v1325 = vpop.f32.mrb[0].mxu0
    %v1326 = vpop.f32.mrb[0].mxu0
    %v1327 = vadd.f32 0.0, %v1326
    %v1328 = vpop.f32.mrb[0].mxu0
    %1329 = vdwg.mxu0
    %1338 = vrot.lane.b32.xlu0 %v738, 32
    %v1339 = vpop.permute.xlu0 %1338
    %1340 = vrot.lane.b32.xlu0 %v741, 32
    %v1341 = vpop.permute.xlu0 %1340
    %1342 = vrot.lane.b32.xlu0 %v746, 32
    %v1343 = vpop.permute.xlu0 %1342
    %1344 = vrot.lane.b32.xlu0 %v749, 32
    %v1345 = vpop.permute.xlu0 %1344
    %1346 = vrot.lane.b32.xlu0 %v754, 32
    %v1347 = vpop.permute.xlu0 %1346
    %1348 = vrot.lane.b32.xlu0 %v757, 32
    %v1349 = vpop.permute.xlu0 %1348
    %1350 = vrot.lane.b32.xlu0 %v762, 32
    %v1351 = vpop.permute.xlu0 %1350
    %1352 = vrot.lane.b32.xlu0 %v765, 32
    %v1353 = vpop.permute.xlu0 %1352
    %1370 = vrot.lane.b32.xlu0 %v1019, 64
    %v1371 = vpop.permute.xlu0 %1370
    %1372 = vrot.lane.b32.xlu0 %v1022, 64
    %v1373 = vpop.permute.xlu0 %1372
    %1374 = vrot.lane.b32.xlu0 %v1027, 64
    %v1375 = vpop.permute.xlu0 %1374
    %1376 = vrot.lane.b32.xlu0 %v1030, 64
    %v1377 = vpop.permute.xlu0 %1376
    %1378 = vrot.lane.b32.xlu0 %v1035, 64
    %v1379 = vpop.permute.xlu0 %1378
    %1380 = vrot.lane.b32.xlu0 %v1038, 64
    %v1381 = vpop.permute.xlu0 %1380
    %1382 = vrot.lane.b32.xlu0 %v1043, 64
    %v1383 = vpop.permute.xlu0 %1382
    %1384 = vrot.lane.b32.xlu0 %v1046, 64
    %v1385 = vpop.permute.xlu0 %1384
    %1402 = vrot.lane.b32.xlu0 %v1300, 96
    %v1403 = vpop.permute.xlu0 %1402
    %1404 = vrot.lane.b32.xlu0 %v1303, 96
    %v1405 = vpop.permute.xlu0 %1404
    %1406 = vrot.lane.b32.xlu0 %v1308, 96
    %v1407 = vpop.permute.xlu0 %1406
    %1408 = vrot.lane.b32.xlu0 %v1311, 96
    %v1409 = vpop.permute.xlu0 %1408
    %1410 = vrot.lane.b32.xlu0 %v1316, 96
    %v1411 = vpop.permute.xlu0 %1410
    %1412 = vrot.lane.b32.xlu0 %v1319, 96
    %v1413 = vpop.permute.xlu0 %1412
    %1414 = vrot.lane.b32.xlu0 %v1324, 96
    %v1415 = vpop.permute.xlu0 %1414
    %1416 = vrot.lane.b32.xlu0 %v1327, 96
    %v1417 = vpop.permute.xlu0 %1416
    %vm1426 = vcmask 261120
    %v1427 = vsel %vm1426, %v453, %v1339
    %v1428 = vsel %vm1426, %v456, %v1341
    %v1429 = vsel %vm1426, %v461, %v1343
    %v1430 = vsel %vm1426, %v464, %v1345
    %v1431 = vsel %vm1426, %v469, %v1347
    %v1432 = vsel %vm1426, %v472, %v1349
    %v1433 = vsel %vm1426, %v477, %v1351
    %v1434 = vsel %vm1426, %v480, %v1353
    %v1435 = vsel %vm289, %v1427, %v1371
    %v1436 = vsel %vm289, %v1428, %v1373
    %v1437 = vsel %vm289, %v1429, %v1375
    %v1438 = vsel %vm289, %v1430, %v1377
    %v1439 = vsel %vm289, %v1431, %v1379
    %v1440 = vsel %vm289, %v1432, %v1381
    %v1441 = vsel %vm289, %v1433, %v1383
    %v1442 = vsel %vm289, %v1434, %v1385
    %vm1443 = vcmask 785408
    %v1444 = vsel %vm1443, %v1435, %v1403
    %v1445 = vsel %vm1443, %v1436, %v1405
    %v1446 = vsel %vm1443, %v1437, %v1407
    %v1447 = vsel %vm1443, %v1438, %v1409
    %v1448 = vsel %vm1443, %v1439, %v1411
    %v1449 = vsel %vm1443, %v1440, %v1413
    %v1450 = vsel %vm1443, %v1441, %v1415
    %v1451 = vsel %vm1443, %v1442, %v1417
    %v1452 = vld [vmem:[%s4] sm:$0x1]
    %v1454 = vlaneseq
    %v1455 = vshrl.u32 %v1454, 7
    %v1456 = vsub.s32 0, %v1455
    %v1457 = vrot.slane %v1452, %v1456
    %v1459 = vadd.f32 %v1444, %v1457
    %v1460 = vadd.f32 %v1445, %v1457
    %v1461 = vadd.f32 %v1446, %v1457
    %v1462 = vadd.f32 %v1447, %v1457
    %v1463 = vadd.f32 %v1448, %v1457
    %v1464 = vadd.f32 %v1449, %v1457
    %v1465 = vadd.f32 %v1450, %v1457
    %v1466 = vadd.f32 %v1451, %v1457
    %vm1467 = vcmp.gt.f32.partialorder %v1459, 0.0
    %vm1468 = vcmp.gt.f32.partialorder %v1460, 0.0
    %vm1469 = vcmp.gt.f32.partialorder %v1461, 0.0
    %vm1470 = vcmp.gt.f32.partialorder %v1462, 0.0
    %vm1471 = vcmp.gt.f32.partialorder %v1463, 0.0
    %vm1472 = vcmp.gt.f32.partialorder %v1464, 0.0
    %vm1473 = vcmp.gt.f32.partialorder %v1465, 0.0
    %vm1474 = vcmp.gt.f32.partialorder %v1466, 0.0
    %v1475 = vmin.f32 %v1459, 0.0
    %v1476 = vmin.f32 %v1460, 0.0
    %v1477 = vmin.f32 %v1461, 0.0
    %v1478 = vmin.f32 %v1462, 0.0
    %v1479 = vmin.f32 %v1463, 0.0
    %v1480 = vmin.f32 %v1464, 0.0
    %v1481 = vmin.f32 %v1465, 0.0
    %v1482 = vmin.f32 %v1466, 0.0
    %v1483 = vmul.f32 %v1475, 1.442695
    %v1484 = vpow.pop %v1483
    %v1485 = vmul.f32 %v1476, 1.442695
    %v1486 = vpow.pop %v1485
    %v1487 = vmul.f32 %v1477, 1.442695
    %v1488 = vpow.pop %v1487
    %v1489 = vmul.f32 %v1478, 1.442695
    %v1490 = vpow.pop %v1489
    %v1491 = vmul.f32 %v1479, 1.442695
    %v1492 = vpow.pop %v1491
    %v1493 = vmul.f32 %v1480, 1.442695
    %v1494 = vpow.pop %v1493
    %v1495 = vmul.f32 %v1481, 1.442695
    %v1496 = vpow.pop %v1495
    %v1497 = vmul.f32 %v1482, 1.442695
    %v1498 = vpow.pop %v1497
    %v1499 = vsub.f32 %v1484, 1.0
    %v1500 = vsub.f32 %v1486, 1.0
    %v1501 = vsub.f32 %v1488, 1.0
    %v1502 = vsub.f32 %v1490, 1.0
    %v1503 = vsub.f32 %v1492, 1.0
    %v1504 = vsub.f32 %v1494, 1.0
    %v1505 = vsub.f32 %v1496, 1.0
    %v1506 = vsub.f32 %v1498, 1.0
    %v1507 = vsel %vm1467, %v1459, %v1499
    %v1508 = vsel %vm1468, %v1460, %v1500
    %v1509 = vsel %vm1469, %v1461, %v1501
    %v1510 = vsel %vm1470, %v1462, %v1502
    %v1511 = vsel %vm1471, %v1463, %v1503
    %v1512 = vsel %vm1472, %v1464, %v1504
    %v1513 = vsel %vm1473, %v1465, %v1505
    %v1514 = vsel %vm1474, %v1466, %v1506
    %v1515 = vpack.c.bf16 %v1508, %v1507
    %v1516 = vpack.c.bf16 %v1510, %v1509
    %v1517 = vpack.c.bf16 %v1512, %v1511
    %v1518 = vpack.c.bf16 %v1514, %v1513
    %v1519 = vld [vmem:[%s5] sm:$0xff]
    %v1520 = vld [vmem:[%s5 + $0x8] sm:$0xff]
    %v1521 = vld [vmem:[%s5 + $0x10] sm:$0xff]
    %v1522 = vld [vmem:[%s5 + $0x18] sm:$0xff]
    %v1523 = vld [vmem:[%s5 + $0x20] sm:$0xff]
    %v1524 = vld [vmem:[%s5 + $0x28] sm:$0xff]
    %v1525 = vld [vmem:[%s5 + $0x30] sm:$0xff]
    %v1526 = vld [vmem:[%s5 + $0x38] sm:$0xff]
    %v1527 = vld [vmem:[%s5 + $0x40] sm:$0xff]
    %v1528 = vld [vmem:[%s5 + $0x48] sm:$0xff]
    %v1529 = vld [vmem:[%s5 + $0x50] sm:$0xff]
    %v1530 = vld [vmem:[%s5 + $0x58] sm:$0xff]
    %v1531 = vld [vmem:[%s5 + $0x60] sm:$0xff]
    %v1532 = vld [vmem:[%s5 + $0x68] sm:$0xff]
    %v1533 = vld [vmem:[%s5 + $0x70] sm:$0xff]
    %v1534 = vld [vmem:[%s5 + $0x78] sm:$0xff]
    %v1551 = vunpack.c.l.b16 %v1519
    %v1552 = vunpack.c.h.b16 %v1519
    %v1553 = vunpack.c.l.b16 %v1520
    %v1554 = vunpack.c.h.b16 %v1520
    %v1555 = vunpack.c.l.b16 %v1521
    %v1556 = vunpack.c.h.b16 %v1521
    %v1557 = vunpack.c.l.b16 %v1522
    %v1558 = vunpack.c.h.b16 %v1522
    %v1559 = vunpack.c.l.b16 %v1523
    %v1560 = vunpack.c.h.b16 %v1523
    %v1561 = vunpack.c.l.b16 %v1524
    %v1562 = vunpack.c.h.b16 %v1524
    %v1563 = vunpack.c.l.b16 %v1525
    %v1564 = vunpack.c.h.b16 %v1525
    %v1565 = vunpack.c.l.b16 %v1526
    %v1566 = vunpack.c.h.b16 %v1526
    %v1567 = vunpack.c.l.b16 %v1527
    %v1568 = vunpack.c.h.b16 %v1527
    %v1569 = vunpack.c.l.b16 %v1528
    %v1570 = vunpack.c.h.b16 %v1528
    %v1571 = vunpack.c.l.b16 %v1529
    %v1572 = vunpack.c.h.b16 %v1529
    %v1573 = vunpack.c.l.b16 %v1530
    %v1574 = vunpack.c.h.b16 %v1530
    %v1575 = vunpack.c.l.b16 %v1531
    %v1576 = vunpack.c.h.b16 %v1531
    %v1577 = vunpack.c.l.b16 %v1532
    %v1578 = vunpack.c.h.b16 %v1532
    %v1579 = vunpack.c.l.b16 %v1533
    %v1580 = vunpack.c.h.b16 %v1533
    %v1581 = vunpack.c.l.b16 %v1534
    %v1582 = vunpack.c.h.b16 %v1534
    %v1583 = vpack.c.b16 %v1553, %v1551
    %v1584 = vpack.c.b16 %v1554, %v1552
    %v1585 = vpack.c.b16 %v1557, %v1555
    %v1586 = vpack.c.b16 %v1558, %v1556
    %v1587 = vpack.c.b16 %v1561, %v1559
    %v1588 = vpack.c.b16 %v1562, %v1560
    %v1589 = vpack.c.b16 %v1565, %v1563
    %v1590 = vpack.c.b16 %v1566, %v1564
    %v1591 = vpack.c.b16 %v1569, %v1567
    %v1592 = vpack.c.b16 %v1570, %v1568
    %v1593 = vpack.c.b16 %v1573, %v1571
    %v1594 = vpack.c.b16 %v1574, %v1572
    %v1595 = vpack.c.b16 %v1577, %v1575
    %v1596 = vpack.c.b16 %v1578, %v1576
    %v1597 = vpack.c.b16 %v1581, %v1579
    %v1598 = vpack.c.b16 %v1582, %v1580
    %1615 = vmatprep.subr.bf16.mxu0 %v1584
    %1616 = vmatpush1.bf16.msra.mxu0 %v1583
    %1617 = vmatprep.subr.bf16.mxu0 %v1586
    %1618 = vmatpush1.bf16.msra.mxu0 %v1585
    %1619 = vmatprep.subr.bf16.mxu0 %v1588
    %1620 = vmatpush1.bf16.msra.mxu0 %v1587
    %1621 = vmatprep.subr.bf16.mxu0 %v1590
    %1622 = vmatpush1.bf16.msra.mxu0 %v1589
    %1623 = vmatprep.subr.bf16.mxu0 %v1592
    %1624 = vmatpush1.bf16.msra.mxu0 %v1591
    %1625 = vmatprep.subr.bf16.mxu0 %v1594
    %1626 = vmatpush1.bf16.msra.mxu0 %v1593
    %1627 = vmatprep.subr.bf16.mxu0 %v1596
    %1628 = vmatpush1.bf16.msra.mxu0 %v1595
    %1629 = vmatprep.subr.bf16.mxu0 %v1598
    %1630 = vmatpush1.bf16.msra.mxu0 %v1597
    %1631 = vmatprep.subr.bf16.mxu0 0
    %1632 = vmatpush1.bf16.msra.mxu0 0
    %1633 = vmatprep.subr.bf16.mxu0 0
    %1634 = vmatpush1.bf16.msra.mxu0 0
    %1635 = vmatprep.subr.bf16.mxu0 0
    %1636 = vmatpush1.bf16.msra.mxu0 0
    %1637 = vmatprep.subr.bf16.mxu0 0
    %1638 = vmatpush1.bf16.msra.mxu0 0
    %1639 = vmatprep.subr.bf16.mxu0 0
    %1640 = vmatpush1.bf16.msra.mxu0 0
    %1641 = vmatprep.subr.bf16.mxu0 0
    %1642 = vmatpush1.bf16.msra.mxu0 0
    %1643 = vmatprep.subr.bf16.mxu0 0
    %1644 = vmatpush1.bf16.msra.mxu0 0
    %1645 = vmatprep.subr.bf16.mxu0 0
    %1646 = vmatpush1.bf16.msra.mxu0 0
    %1647 = vmatprep.mubr.bf16.mxu0 0
    %1648 = vmatmul.mubr.bf16.gmra.mrb[0].mxu0 %v1515
    %v1649 = vpop.f32.mrb[0].mxu0
    %v1650 = vadd.f32 0.0, %v1649
    %v1651 = vpop.f32.mrb[0].mxu0
    %v1652 = vadd.f32 0.0, %v1651
    %v1653 = vpop.f32.mrb[0].mxu0
    %v1654 = vadd.f32 0.0, %v1653
    %v1655 = vpop.f32.mrb[0].mxu0
    %v1656 = vadd.f32 0.0, %v1655
    %1657 = vmatprep.mubr.bf16.mxu0 0
    %1658 = vmatmul.mubr.bf16.gmra.mrb[0].mxu0 %v1516
    %v1659 = vpop.f32.mrb[0].mxu0
    %v1660 = vadd.f32 0.0, %v1659
    %v1661 = vpop.f32.mrb[0].mxu0
    %v1662 = vadd.f32 0.0, %v1661
    %v1663 = vpop.f32.mrb[0].mxu0
    %v1664 = vadd.f32 0.0, %v1663
    %v1665 = vpop.f32.mrb[0].mxu0
    %v1666 = vadd.f32 0.0, %v1665
    %1667 = vmatprep.mubr.bf16.mxu0 0
    %1668 = vmatmul.mubr.bf16.gmra.mrb[0].mxu0 %v1517
    %v1669 = vpop.f32.mrb[0].mxu0
    %v1670 = vadd.f32 0.0, %v1669
    %v1671 = vpop.f32.mrb[0].mxu0
    %v1672 = vadd.f32 0.0, %v1671
    %v1673 = vpop.f32.mrb[0].mxu0
    %v1674 = vadd.f32 0.0, %v1673
    %v1675 = vpop.f32.mrb[0].mxu0
    %v1676 = vadd.f32 0.0, %v1675
    %1677 = vmatprep.mubr.bf16.mxu0 0
    %1678 = vmatmul.mubr.bf16.gmra.mrb[0].mxu0 %v1518
    %v1679 = vpop.f32.mrb[0].mxu0
    %v1680 = vadd.f32 0.0, %v1679
    %v1681 = vpop.f32.mrb[0].mxu0
    %v1682 = vadd.f32 0.0, %v1681
    %v1683 = vpop.f32.mrb[0].mxu0
    %v1684 = vadd.f32 0.0, %v1683
    %v1685 = vpop.f32.mrb[0].mxu0
    %v1686 = vadd.f32 0.0, %v1685
    %1687 = vdwg.mxu0
    %v1688 = vld [vmem:[%s6] sm:$0x3]
    %1689 = vmatprep.subr.bf16.mxu0 0
    %1690 = vmatpush1.bf16.xpose.msra.mxu0 %v1515
    %1691 = vmatprep.subr.bf16.mxu0 0
    %1692 = vmatpush1.bf16.xpose.msra.mxu0 %v1516
    %1693 = vmatprep.subr.bf16.mxu0 0
    %1694 = vmatpush1.bf16.xpose.msra.mxu0 %v1517
    %1695 = vmatprep.subr.bf16.mxu0 0
    %1696 = vmatpush1.bf16.xpose.msra.mxu0 %v1518
    %1697 = vmatprep.subr.bf16.mxu0 0
    %1698 = vmatpush1.bf16.xpose.msra.mxu0 0
    %1699 = vmatprep.subr.bf16.mxu0 0
    %1700 = vmatpush1.bf16.xpose.msra.mxu0 0
    %1701 = vmatprep.subr.bf16.mxu0 0
    %1702 = vmatpush1.bf16.xpose.msra.mxu0 0
    %1703 = vmatprep.subr.bf16.mxu0 0
    %1704 = vmatpush1.bf16.xpose.msra.mxu0 0
    %1705 = vmatprep.subr.bf16.mxu0 0
    %1706 = vmatpush1.bf16.xpose.msra.mxu0 0
    %1707 = vmatprep.subr.bf16.mxu0 0
    %1708 = vmatpush1.bf16.xpose.msra.mxu0 0
    %1709 = vmatprep.subr.bf16.mxu0 0
    %1710 = vmatpush1.bf16.xpose.msra.mxu0 0
    %1711 = vmatprep.subr.bf16.mxu0 0
    %1712 = vmatpush1.bf16.xpose.msra.mxu0 0
    %1713 = vmatprep.subr.bf16.mxu0 0
    %1714 = vmatpush1.bf16.xpose.msra.mxu0 0
    %1715 = vmatprep.subr.bf16.mxu0 0
    %1716 = vmatpush1.bf16.xpose.msra.mxu0 0
    %1717 = vmatprep.subr.bf16.mxu0 0
    %1718 = vmatpush1.bf16.xpose.msra.mxu0 0
    %1719 = vmatprep.subr.bf16.mxu0 0
    %1720 = vmatpush1.bf16.xpose.msra.mxu0 0
    %1721 = vmatprep.mubr.bf16.mxu0 0
    %1722 = vmatmul.mubr.bf16.gmra.mrb[0].mxu0 %v1688
    %v1723 = vpop.f32.mrb[0].mxu0
    %v1724 = vadd.f32 0.0, %v1723
    %v1725 = vpop.f32.mrb[0].mxu0
    %v1726 = vpop.f32.mrb[0].mxu0
    %v1727 = vpop.f32.mrb[0].mxu0
    %1728 = vdwg.mxu0
    %v1729 = vpack.c.bf16 %v1654, %v1650
    %v1730 = vpack.c.bf16 %v1664, %v1660
    %v1731 = vpack.c.bf16 %v1674, %v1670
    %v1732 = vpack.c.bf16 %v1684, %v1680
    %1734 = vset.pattern.permute.xlu0 0
    %1735 = vperm.xlu0 %1734, %v1652
    %v1736 = vpop.permute.xlu0 %1735
    %1739 = vset.pattern.permute.xlu0 0
    %1740 = vperm.xlu0 %1739, %v1656
    %v1741 = vpop.permute.xlu0 %1740
    %1744 = vset.pattern.permute.xlu0 0
    %1745 = vperm.xlu0 %1744, %v1662
    %v1746 = vpop.permute.xlu0 %1745
    %1749 = vset.pattern.permute.xlu0 0
    %1750 = vperm.xlu0 %1749, %v1666
    %v1751 = vpop.permute.xlu0 %1750
    %1754 = vset.pattern.permute.xlu0 0
    %1755 = vperm.xlu0 %1754, %v1672
    %v1756 = vpop.permute.xlu0 %1755
    %1759 = vset.pattern.permute.xlu0 0
    %1760 = vperm.xlu0 %1759, %v1676
    %v1761 = vpop.permute.xlu0 %1760
    %1764 = vset.pattern.permute.xlu0 0
    %1765 = vperm.xlu0 %1764, %v1682
    %v1766 = vpop.permute.xlu0 %1765
    %1769 = vset.pattern.permute.xlu0 0
    %1770 = vperm.xlu0 %1769, %v1686
    %v1771 = vpop.permute.xlu0 %1770
    %v1773 = vlaneseq
    %v1774 = vshrl.u32 %v1773, 7
    %v1775 = vsub.s32 0, %v1774
    %v1776 = vrot.slane %v1724, %v1775
    %v1777 = vadd.f32 %v1736, %v1776
    %v1778 = vadd.f32 %v1741, %v1776
    %v1779 = vadd.f32 %v1746, %v1776
    %v1780 = vadd.f32 %v1751, %v1776
    %v1781 = vadd.f32 %v1756, %v1776
    %v1782 = vadd.f32 %v1761, %v1776
    %v1783 = vadd.f32 %v1766, %v1776
    %v1784 = vadd.f32 %v1771, %v1776
    %vm1785 = vcmp.gt.f32.partialorder %v1777, 0.0
    %vm1786 = vcmp.gt.f32.partialorder %v1778, 0.0
    %vm1787 = vcmp.gt.f32.partialorder %v1779, 0.0
    %vm1788 = vcmp.gt.f32.partialorder %v1780, 0.0
    %vm1789 = vcmp.gt.f32.partialorder %v1781, 0.0
    %vm1790 = vcmp.gt.f32.partialorder %v1782, 0.0
    %vm1791 = vcmp.gt.f32.partialorder %v1783, 0.0
    %vm1792 = vcmp.gt.f32.partialorder %v1784, 0.0
    %v1793 = vmul.f32 %v1777, 0.2
    %v1794 = vmul.f32 %v1778, 0.2
    %v1795 = vmul.f32 %v1779, 0.2
    %v1796 = vmul.f32 %v1780, 0.2
    %v1797 = vmul.f32 %v1781, 0.2
    %v1798 = vmul.f32 %v1782, 0.2
    %v1799 = vmul.f32 %v1783, 0.2
    %v1800 = vmul.f32 %v1784, 0.2
    %v1801 = vsel %vm1785, %v1777, %v1793
    %v1802 = vsel %vm1786, %v1778, %v1794
    %v1803 = vsel %vm1787, %v1779, %v1795
    %v1804 = vsel %vm1788, %v1780, %v1796
    %v1805 = vsel %vm1789, %v1781, %v1797
    %v1806 = vsel %vm1790, %v1782, %v1798
    %v1807 = vsel %vm1791, %v1783, %v1799
    %v1808 = vsel %vm1792, %v1784, %v1800
    %v1809 = vadd.f32 %v1801, %v31
    %v1810 = vadd.f32 %v1802, %v32
    %v1811 = vadd.f32 %v1803, %v33
    %v1812 = vadd.f32 %v1804, %v34
    %v1813 = vadd.f32 %v1805, %v35
    %v1814 = vadd.f32 %v1806, %v36
    %v1815 = vadd.f32 %v1807, %v37
    %v1816 = vadd.f32 %v1808, %v38
    %v1817 = vsel %vm289, %v1809, -inf
    %1818 = vmax.xlane.f32.xlu0 %v1817
    %v1819 = vpop.xlane.xlu0 %1818
    %v1820 = vsel %vm289, %v1810, -inf
    %1821 = vmax.xlane.f32.xlu0 %v1820
    %v1822 = vpop.xlane.xlu0 %1821
    %v1823 = vsel %vm289, %v1811, -inf
    %1824 = vmax.xlane.f32.xlu0 %v1823
    %v1825 = vpop.xlane.xlu0 %1824
    %v1826 = vsel %vm289, %v1812, -inf
    %1827 = vmax.xlane.f32.xlu0 %v1826
    %v1828 = vpop.xlane.xlu0 %1827
    %v1829 = vsel %vm289, %v1813, -inf
    %1830 = vmax.xlane.f32.xlu0 %v1829
    %v1831 = vpop.xlane.xlu0 %1830
    %v1832 = vsel %vm289, %v1814, -inf
    %1833 = vmax.xlane.f32.xlu0 %v1832
    %v1834 = vpop.xlane.xlu0 %1833
    %v1835 = vsel %vm289, %v1815, -inf
    %1836 = vmax.xlane.f32.xlu0 %v1835
    %v1837 = vpop.xlane.xlu0 %1836
    %v1838 = vsel %vm289, %v1816, -inf
    %1839 = vmax.xlane.f32.xlu0 %v1838
    %v1840 = vpop.xlane.xlu0 %1839
    %v1841 = vsub.f32 %v1809, %v1819
    %v1842 = vsub.f32 %v1810, %v1822
    %v1843 = vsub.f32 %v1811, %v1825
    %v1844 = vsub.f32 %v1812, %v1828
    %v1845 = vsub.f32 %v1813, %v1831
    %v1846 = vsub.f32 %v1814, %v1834
    %v1847 = vsub.f32 %v1815, %v1837
    %v1848 = vsub.f32 %v1816, %v1840
    %v1849 = vmul.f32 %v1841, 1.442695
    %v1850 = vpow.pop %v1849
    %v1851 = vmul.f32 %v1842, 1.442695
    %v1852 = vpow.pop %v1851
    %v1853 = vmul.f32 %v1843, 1.442695
    %v1854 = vpow.pop %v1853
    %v1855 = vmul.f32 %v1844, 1.442695
    %v1856 = vpow.pop %v1855
    %v1857 = vmul.f32 %v1845, 1.442695
    %v1858 = vpow.pop %v1857
    %v1859 = vmul.f32 %v1846, 1.442695
    %v1860 = vpow.pop %v1859
    %v1861 = vmul.f32 %v1847, 1.442695
    %v1862 = vpow.pop %v1861
    %v1863 = vmul.f32 %v1848, 1.442695
    %v1864 = vpow.pop %v1863
    %v1865 = vsel %vm39, %v1850, 0.0
    %v1866 = vsel %vm40, %v1852, 0.0
    %v1867 = vsel %vm41, %v1854, 0.0
    %v1868 = vsel %vm42, %v1856, 0.0
    %v1869 = vsel %vm43, %v1858, 0.0
    %v1870 = vsel %vm44, %v1860, 0.0
    %v1871 = vsel %vm45, %v1862, 0.0
    %v1872 = vsel %vm46, %v1864, 0.0
    %v1873 = vsel %vm289, %v1865, 0.0
    %1874 = vadd.xlane.f32.xlu0 %v1873
    %v1875 = vpop.xlane.xlu0 %1874
    %v1876 = vsel %vm289, %v1866, 0.0
    %1877 = vadd.xlane.f32.xlu0 %v1876
    %v1878 = vpop.xlane.xlu0 %1877
    %v1879 = vsel %vm289, %v1867, 0.0
    %1880 = vadd.xlane.f32.xlu0 %v1879
    %v1881 = vpop.xlane.xlu0 %1880
    %v1882 = vsel %vm289, %v1868, 0.0
    %1883 = vadd.xlane.f32.xlu0 %v1882
    %v1884 = vpop.xlane.xlu0 %1883
    %v1885 = vsel %vm289, %v1869, 0.0
    %1886 = vadd.xlane.f32.xlu0 %v1885
    %v1887 = vpop.xlane.xlu0 %1886
    %v1888 = vsel %vm289, %v1870, 0.0
    %1889 = vadd.xlane.f32.xlu0 %v1888
    %v1890 = vpop.xlane.xlu0 %1889
    %v1891 = vsel %vm289, %v1871, 0.0
    %1892 = vadd.xlane.f32.xlu0 %v1891
    %v1893 = vpop.xlane.xlu0 %1892
    %v1894 = vsel %vm289, %v1872, 0.0
    %1895 = vadd.xlane.f32.xlu0 %v1894
    %v1896 = vpop.xlane.xlu0 %1895
    %vm1897 = vcmp.gt.f32.partialorder %v1875, 0.0
    %vm1898 = vcmp.gt.f32.partialorder %v1878, 0.0
    %vm1899 = vcmp.gt.f32.partialorder %v1881, 0.0
    %vm1900 = vcmp.gt.f32.partialorder %v1884, 0.0
    %vm1901 = vcmp.gt.f32.partialorder %v1887, 0.0
    %vm1902 = vcmp.gt.f32.partialorder %v1890, 0.0
    %vm1903 = vcmp.gt.f32.partialorder %v1893, 0.0
    %vm1904 = vcmp.gt.f32.partialorder %v1896, 0.0
    %v1905 = vsel %vm1897, %v1875, 1.0
    %v1906 = vsel %vm1898, %v1878, 1.0
    %v1907 = vsel %vm1899, %v1881, 1.0
    %v1908 = vsel %vm1900, %v1884, 1.0
    %v1909 = vsel %vm1901, %v1887, 1.0
    %v1910 = vsel %vm1902, %v1890, 1.0
    %v1911 = vsel %vm1903, %v1893, 1.0
    %v1912 = vsel %vm1904, %v1896, 1.0
    %v1913 = vrcp.pop %v1905
    %v1914 = vrcp.pop %v1906
    %v1915 = vrcp.pop %v1907
    %v1916 = vrcp.pop %v1908
    %v1917 = vrcp.pop %v1909
    %v1918 = vrcp.pop %v1910
    %v1919 = vrcp.pop %v1911
    %v1920 = vrcp.pop %v1912
    %v1921 = vmul.f32 %v1865, %v1913
    %v1922 = vmul.f32 %v1866, %v1914
    %v1923 = vmul.f32 %v1867, %v1915
    %v1924 = vmul.f32 %v1868, %v1916
    %v1925 = vmul.f32 %v1869, %v1917
    %v1926 = vmul.f32 %v1870, %v1918
    %v1927 = vmul.f32 %v1871, %v1919
    %v1928 = vmul.f32 %v1872, %v1920
    %v1929 = vpack.c.bf16 %v1922, %v1921
    %v1930 = vpack.c.bf16 %v1924, %v1923
    %v1931 = vpack.c.bf16 %v1926, %v1925
    %v1932 = vpack.c.bf16 %v1928, %v1927
    %v1934 = vsel %vm289, %v1929, 0
    %v1937 = vsel %vm289, %v1930, 0
    %v1940 = vsel %vm289, %v1931, 0
    %v1943 = vsel %vm289, %v1932, 0
    %1945 = vmatprep.subr.bf16.mxu0 0
    %1946 = vmatpush1.bf16.msra.mxu0 %v1729
    %1947 = vmatprep.subr.bf16.mxu0 0
    %1948 = vmatpush1.bf16.msra.mxu0 %v1730
    %1949 = vmatprep.subr.bf16.mxu0 0
    %1950 = vmatpush1.bf16.msra.mxu0 %v1731
    %1951 = vmatprep.subr.bf16.mxu0 0
    %1952 = vmatpush1.bf16.msra.mxu0 %v1732
    %1953 = vmatprep.subr.bf16.mxu0 0
    %1954 = vmatpush1.bf16.msra.mxu0 0
    %1955 = vmatprep.subr.bf16.mxu0 0
    %1956 = vmatpush1.bf16.msra.mxu0 0
    %1957 = vmatprep.subr.bf16.mxu0 0
    %1958 = vmatpush1.bf16.msra.mxu0 0
    %1959 = vmatprep.subr.bf16.mxu0 0
    %1960 = vmatpush1.bf16.msra.mxu0 0
    %1961 = vmatprep.subr.bf16.mxu0 0
    %1962 = vmatpush1.bf16.msra.mxu0 0
    %1963 = vmatprep.subr.bf16.mxu0 0
    %1964 = vmatpush1.bf16.msra.mxu0 0
    %1965 = vmatprep.subr.bf16.mxu0 0
    %1966 = vmatpush1.bf16.msra.mxu0 0
    %1967 = vmatprep.subr.bf16.mxu0 0
    %1968 = vmatpush1.bf16.msra.mxu0 0
    %1969 = vmatprep.subr.bf16.mxu0 0
    %1970 = vmatpush1.bf16.msra.mxu0 0
    %1971 = vmatprep.subr.bf16.mxu0 0
    %1972 = vmatpush1.bf16.msra.mxu0 0
    %1973 = vmatprep.subr.bf16.mxu0 0
    %1974 = vmatpush1.bf16.msra.mxu0 0
    %1975 = vmatprep.subr.bf16.mxu0 0
    %1976 = vmatpush1.bf16.msra.mxu0 0
    %1977 = vmatprep.mubr.bf16.mxu0 0
    %1978 = vmatmul.mubr.bf16.gmra.mrb[0].mxu0 %v1934
    %v1979 = vpop.f32.mrb[0].mxu0
    %v1980 = vadd.f32 0.0, %v1979
    %v1981 = vpop.f32.mrb[0].mxu0
    %v1982 = vpop.f32.mrb[0].mxu0
    %v1983 = vadd.f32 0.0, %v1982
    %v1984 = vpop.f32.mrb[0].mxu0
    %1985 = vmatprep.mubr.bf16.mxu0 0
    %1986 = vmatmul.mubr.bf16.gmra.mrb[0].mxu0 %v1937
    %v1987 = vpop.f32.mrb[0].mxu0
    %v1988 = vadd.f32 0.0, %v1987
    %v1989 = vpop.f32.mrb[0].mxu0
    %v1990 = vpop.f32.mrb[0].mxu0
    %v1991 = vadd.f32 0.0, %v1990
    %v1992 = vpop.f32.mrb[0].mxu0
    %1993 = vmatprep.mubr.bf16.mxu0 0
    %1994 = vmatmul.mubr.bf16.gmra.mrb[0].mxu0 %v1940
    %v1995 = vpop.f32.mrb[0].mxu0
    %v1996 = vadd.f32 0.0, %v1995
    %v1997 = vpop.f32.mrb[0].mxu0
    %v1998 = vpop.f32.mrb[0].mxu0
    %v1999 = vadd.f32 0.0, %v1998
    %v2000 = vpop.f32.mrb[0].mxu0
    %2001 = vmatprep.mubr.bf16.mxu0 0
    %2002 = vmatmul.mubr.bf16.gmra.mrb[0].mxu0 %v1943
    %v2003 = vpop.f32.mrb[0].mxu0
    %v2004 = vadd.f32 0.0, %v2003
    %v2005 = vpop.f32.mrb[0].mxu0
    %v2006 = vpop.f32.mrb[0].mxu0
    %v2007 = vadd.f32 0.0, %v2006
    %v2008 = vpop.f32.mrb[0].mxu0
    %2009 = vdwg.mxu0
    %2010 = vset.pattern.permute.xlu0 1
    %2011 = vperm.xlu0 %2010, %v1652
    %v2012 = vpop.permute.xlu0 %2011
    %2014 = vset.pattern.permute.xlu0 1
    %2015 = vperm.xlu0 %2014, %v1656
    %v2016 = vpop.permute.xlu0 %2015
    %2018 = vset.pattern.permute.xlu0 1
    %2019 = vperm.xlu0 %2018, %v1662
    %v2020 = vpop.permute.xlu0 %2019
    %2022 = vset.pattern.permute.xlu0 1
    %2023 = vperm.xlu0 %2022, %v1666
    %v2024 = vpop.permute.xlu0 %2023
    %2026 = vset.pattern.permute.xlu0 1
    %2027 = vperm.xlu0 %2026, %v1672
    %v2028 = vpop.permute.xlu0 %2027
    %2030 = vset.pattern.permute.xlu0 1
    %2031 = vperm.xlu0 %2030, %v1676
    %v2032 = vpop.permute.xlu0 %2031
    %2034 = vset.pattern.permute.xlu0 1
    %2035 = vperm.xlu0 %2034, %v1682
    %v2036 = vpop.permute.xlu0 %2035
    %2038 = vset.pattern.permute.xlu0 1
    %2039 = vperm.xlu0 %2038, %v1686
    %v2040 = vpop.permute.xlu0 %2039
    %v2042 = vlaneseq
    %v2043 = vshrl.u32 %v2042, 7
    %v2044 = vsub.s32 1, %v2043
    %v2045 = vrot.slane %v1724, %v2044
    %v2046 = vadd.f32 %v2012, %v2045
    %v2047 = vadd.f32 %v2016, %v2045
    %v2048 = vadd.f32 %v2020, %v2045
    %v2049 = vadd.f32 %v2024, %v2045
    %v2050 = vadd.f32 %v2028, %v2045
    %v2051 = vadd.f32 %v2032, %v2045
    %v2052 = vadd.f32 %v2036, %v2045
    %v2053 = vadd.f32 %v2040, %v2045
    %vm2054 = vcmp.gt.f32.partialorder %v2046, 0.0
    %vm2055 = vcmp.gt.f32.partialorder %v2047, 0.0
    %vm2056 = vcmp.gt.f32.partialorder %v2048, 0.0
    %vm2057 = vcmp.gt.f32.partialorder %v2049, 0.0
    %vm2058 = vcmp.gt.f32.partialorder %v2050, 0.0
    %vm2059 = vcmp.gt.f32.partialorder %v2051, 0.0
    %vm2060 = vcmp.gt.f32.partialorder %v2052, 0.0
    %vm2061 = vcmp.gt.f32.partialorder %v2053, 0.0
    %v2062 = vmul.f32 %v2046, 0.2
    %v2063 = vmul.f32 %v2047, 0.2
    %v2064 = vmul.f32 %v2048, 0.2
    %v2065 = vmul.f32 %v2049, 0.2
    %v2066 = vmul.f32 %v2050, 0.2
    %v2067 = vmul.f32 %v2051, 0.2
    %v2068 = vmul.f32 %v2052, 0.2
    %v2069 = vmul.f32 %v2053, 0.2
    %v2070 = vsel %vm2054, %v2046, %v2062
    %v2071 = vsel %vm2055, %v2047, %v2063
    %v2072 = vsel %vm2056, %v2048, %v2064
    %v2073 = vsel %vm2057, %v2049, %v2065
    %v2074 = vsel %vm2058, %v2050, %v2066
    %v2075 = vsel %vm2059, %v2051, %v2067
    %v2076 = vsel %vm2060, %v2052, %v2068
    %v2077 = vsel %vm2061, %v2053, %v2069
    %v2078 = vadd.f32 %v2070, %v31
    %v2079 = vadd.f32 %v2071, %v32
    %v2080 = vadd.f32 %v2072, %v33
    %v2081 = vadd.f32 %v2073, %v34
    %v2082 = vadd.f32 %v2074, %v35
    %v2083 = vadd.f32 %v2075, %v36
    %v2084 = vadd.f32 %v2076, %v37
    %v2085 = vadd.f32 %v2077, %v38
    %v2086 = vsel %vm289, %v2078, -inf
    %2087 = vmax.xlane.f32.xlu0 %v2086
    %v2088 = vpop.xlane.xlu0 %2087
    %v2089 = vsel %vm289, %v2079, -inf
    %2090 = vmax.xlane.f32.xlu0 %v2089
    %v2091 = vpop.xlane.xlu0 %2090
    %v2092 = vsel %vm289, %v2080, -inf
    %2093 = vmax.xlane.f32.xlu0 %v2092
    %v2094 = vpop.xlane.xlu0 %2093
    %v2095 = vsel %vm289, %v2081, -inf
    %2096 = vmax.xlane.f32.xlu0 %v2095
    %v2097 = vpop.xlane.xlu0 %2096
    %v2098 = vsel %vm289, %v2082, -inf
    %2099 = vmax.xlane.f32.xlu0 %v2098
    %v2100 = vpop.xlane.xlu0 %2099
    %v2101 = vsel %vm289, %v2083, -inf
    %2102 = vmax.xlane.f32.xlu0 %v2101
    %v2103 = vpop.xlane.xlu0 %2102
    %v2104 = vsel %vm289, %v2084, -inf
    %2105 = vmax.xlane.f32.xlu0 %v2104
    %v2106 = vpop.xlane.xlu0 %2105
    %v2107 = vsel %vm289, %v2085, -inf
    %2108 = vmax.xlane.f32.xlu0 %v2107
    %v2109 = vpop.xlane.xlu0 %2108
    %v2110 = vsub.f32 %v2078, %v2088
    %v2111 = vsub.f32 %v2079, %v2091
    %v2112 = vsub.f32 %v2080, %v2094
    %v2113 = vsub.f32 %v2081, %v2097
    %v2114 = vsub.f32 %v2082, %v2100
    %v2115 = vsub.f32 %v2083, %v2103
    %v2116 = vsub.f32 %v2084, %v2106
    %v2117 = vsub.f32 %v2085, %v2109
    %v2118 = vmul.f32 %v2110, 1.442695
    %v2119 = vpow.pop %v2118
    %v2120 = vmul.f32 %v2111, 1.442695
    %v2121 = vpow.pop %v2120
    %v2122 = vmul.f32 %v2112, 1.442695
    %v2123 = vpow.pop %v2122
    %v2124 = vmul.f32 %v2113, 1.442695
    %v2125 = vpow.pop %v2124
    %v2126 = vmul.f32 %v2114, 1.442695
    %v2127 = vpow.pop %v2126
    %v2128 = vmul.f32 %v2115, 1.442695
    %v2129 = vpow.pop %v2128
    %v2130 = vmul.f32 %v2116, 1.442695
    %v2131 = vpow.pop %v2130
    %v2132 = vmul.f32 %v2117, 1.442695
    %v2133 = vpow.pop %v2132
    %v2134 = vsel %vm39, %v2119, 0.0
    %v2135 = vsel %vm40, %v2121, 0.0
    %v2136 = vsel %vm41, %v2123, 0.0
    %v2137 = vsel %vm42, %v2125, 0.0
    %v2138 = vsel %vm43, %v2127, 0.0
    %v2139 = vsel %vm44, %v2129, 0.0
    %v2140 = vsel %vm45, %v2131, 0.0
    %v2141 = vsel %vm46, %v2133, 0.0
    %v2142 = vsel %vm289, %v2134, 0.0
    %2143 = vadd.xlane.f32.xlu0 %v2142
    %v2144 = vpop.xlane.xlu0 %2143
    %v2145 = vsel %vm289, %v2135, 0.0
    %2146 = vadd.xlane.f32.xlu0 %v2145
    %v2147 = vpop.xlane.xlu0 %2146
    %v2148 = vsel %vm289, %v2136, 0.0
    %2149 = vadd.xlane.f32.xlu0 %v2148
    %v2150 = vpop.xlane.xlu0 %2149
    %v2151 = vsel %vm289, %v2137, 0.0
    %2152 = vadd.xlane.f32.xlu0 %v2151
    %v2153 = vpop.xlane.xlu0 %2152
    %v2154 = vsel %vm289, %v2138, 0.0
    %2155 = vadd.xlane.f32.xlu0 %v2154
    %v2156 = vpop.xlane.xlu0 %2155
    %v2157 = vsel %vm289, %v2139, 0.0
    %2158 = vadd.xlane.f32.xlu0 %v2157
    %v2159 = vpop.xlane.xlu0 %2158
    %v2160 = vsel %vm289, %v2140, 0.0
    %2161 = vadd.xlane.f32.xlu0 %v2160
    %v2162 = vpop.xlane.xlu0 %2161
    %v2163 = vsel %vm289, %v2141, 0.0
    %2164 = vadd.xlane.f32.xlu0 %v2163
    %v2165 = vpop.xlane.xlu0 %2164
    %vm2166 = vcmp.gt.f32.partialorder %v2144, 0.0
    %vm2167 = vcmp.gt.f32.partialorder %v2147, 0.0
    %vm2168 = vcmp.gt.f32.partialorder %v2150, 0.0
    %vm2169 = vcmp.gt.f32.partialorder %v2153, 0.0
    %vm2170 = vcmp.gt.f32.partialorder %v2156, 0.0
    %vm2171 = vcmp.gt.f32.partialorder %v2159, 0.0
    %vm2172 = vcmp.gt.f32.partialorder %v2162, 0.0
    %vm2173 = vcmp.gt.f32.partialorder %v2165, 0.0
    %v2174 = vsel %vm2166, %v2144, 1.0
    %v2175 = vsel %vm2167, %v2147, 1.0
    %v2176 = vsel %vm2168, %v2150, 1.0
    %v2177 = vsel %vm2169, %v2153, 1.0
    %v2178 = vsel %vm2170, %v2156, 1.0
    %v2179 = vsel %vm2171, %v2159, 1.0
    %v2180 = vsel %vm2172, %v2162, 1.0
    %v2181 = vsel %vm2173, %v2165, 1.0
    %v2182 = vrcp.pop %v2174
    %v2183 = vrcp.pop %v2175
    %v2184 = vrcp.pop %v2176
    %v2185 = vrcp.pop %v2177
    %v2186 = vrcp.pop %v2178
    %v2187 = vrcp.pop %v2179
    %v2188 = vrcp.pop %v2180
    %v2189 = vrcp.pop %v2181
    %v2190 = vmul.f32 %v2134, %v2182
    %v2191 = vmul.f32 %v2135, %v2183
    %v2192 = vmul.f32 %v2136, %v2184
    %v2193 = vmul.f32 %v2137, %v2185
    %v2194 = vmul.f32 %v2138, %v2186
    %v2195 = vmul.f32 %v2139, %v2187
    %v2196 = vmul.f32 %v2140, %v2188
    %v2197 = vmul.f32 %v2141, %v2189
    %v2198 = vpack.c.bf16 %v2191, %v2190
    %v2199 = vpack.c.bf16 %v2193, %v2192
    %v2200 = vpack.c.bf16 %v2195, %v2194
    %v2201 = vpack.c.bf16 %v2197, %v2196
    %2206 = vrot.lane.b32.xlu0 %v1729, 96
    %v2207 = vpop.permute.xlu0 %2206
    %2208 = vrot.lane.b32.xlu0 %v1730, 96
    %v2209 = vpop.permute.xlu0 %2208
    %2210 = vrot.lane.b32.xlu0 %v1731, 96
    %v2211 = vpop.permute.xlu0 %2210
    %2212 = vrot.lane.b32.xlu0 %v1732, 96
    %v2213 = vpop.permute.xlu0 %2212
    %v2219 = vsel %vm289, %v2198, 0
    %v2222 = vsel %vm289, %v2199, 0
    %v2225 = vsel %vm289, %v2200, 0
    %v2228 = vsel %vm289, %v2201, 0
    %2230 = vmatprep.subr.bf16.mxu0 0
    %2231 = vmatpush1.bf16.msra.mxu0 %v2207
    %2232 = vmatprep.subr.bf16.mxu0 0
    %2233 = vmatpush1.bf16.msra.mxu0 %v2209
    %2234 = vmatprep.subr.bf16.mxu0 0
    %2235 = vmatpush1.bf16.msra.mxu0 %v2211
    %2236 = vmatprep.subr.bf16.mxu0 0
    %2237 = vmatpush1.bf16.msra.mxu0 %v2213
    %2238 = vmatprep.subr.bf16.mxu0 0
    %2239 = vmatpush1.bf16.msra.mxu0 0
    %2240 = vmatprep.subr.bf16.mxu0 0
    %2241 = vmatpush1.bf16.msra.mxu0 0
    %2242 = vmatprep.subr.bf16.mxu0 0
    %2243 = vmatpush1.bf16.msra.mxu0 0
    %2244 = vmatprep.subr.bf16.mxu0 0
    %2245 = vmatpush1.bf16.msra.mxu0 0
    %2246 = vmatprep.subr.bf16.mxu0 0
    %2247 = vmatpush1.bf16.msra.mxu0 0
    %2248 = vmatprep.subr.bf16.mxu0 0
    %2249 = vmatpush1.bf16.msra.mxu0 0
    %2250 = vmatprep.subr.bf16.mxu0 0
    %2251 = vmatpush1.bf16.msra.mxu0 0
    %2252 = vmatprep.subr.bf16.mxu0 0
    %2253 = vmatpush1.bf16.msra.mxu0 0
    %2254 = vmatprep.subr.bf16.mxu0 0
    %2255 = vmatpush1.bf16.msra.mxu0 0
    %2256 = vmatprep.subr.bf16.mxu0 0
    %2257 = vmatpush1.bf16.msra.mxu0 0
    %2258 = vmatprep.subr.bf16.mxu0 0
    %2259 = vmatpush1.bf16.msra.mxu0 0
    %2260 = vmatprep.subr.bf16.mxu0 0
    %2261 = vmatpush1.bf16.msra.mxu0 0
    %2262 = vmatprep.mubr.bf16.mxu0 0
    %2263 = vmatmul.mubr.bf16.gmra.mrb[0].mxu0 %v2219
    %v2264 = vpop.f32.mrb[0].mxu0
    %v2265 = vadd.f32 0.0, %v2264
    %v2266 = vpop.f32.mrb[0].mxu0
    %v2267 = vpop.f32.mrb[0].mxu0
    %v2268 = vadd.f32 0.0, %v2267
    %v2269 = vpop.f32.mrb[0].mxu0
    %2270 = vmatprep.mubr.bf16.mxu0 0
    %2271 = vmatmul.mubr.bf16.gmra.mrb[0].mxu0 %v2222
    %v2272 = vpop.f32.mrb[0].mxu0
    %v2273 = vadd.f32 0.0, %v2272
    %v2274 = vpop.f32.mrb[0].mxu0
    %v2275 = vpop.f32.mrb[0].mxu0
    %v2276 = vadd.f32 0.0, %v2275
    %v2277 = vpop.f32.mrb[0].mxu0
    %2278 = vmatprep.mubr.bf16.mxu0 0
    %2279 = vmatmul.mubr.bf16.gmra.mrb[0].mxu0 %v2225
    %v2280 = vpop.f32.mrb[0].mxu0
    %v2281 = vadd.f32 0.0, %v2280
    %v2282 = vpop.f32.mrb[0].mxu0
    %v2283 = vpop.f32.mrb[0].mxu0
    %v2284 = vadd.f32 0.0, %v2283
    %v2285 = vpop.f32.mrb[0].mxu0
    %2286 = vmatprep.mubr.bf16.mxu0 0
    %2287 = vmatmul.mubr.bf16.gmra.mrb[0].mxu0 %v2228
    %v2288 = vpop.f32.mrb[0].mxu0
    %v2289 = vadd.f32 0.0, %v2288
    %v2290 = vpop.f32.mrb[0].mxu0
    %v2291 = vpop.f32.mrb[0].mxu0
    %v2292 = vadd.f32 0.0, %v2291
    %v2293 = vpop.f32.mrb[0].mxu0
    %2294 = vdwg.mxu0
    %2295 = vset.pattern.permute.xlu0 2
    %2296 = vperm.xlu0 %2295, %v1652
    %v2297 = vpop.permute.xlu0 %2296
    %2299 = vset.pattern.permute.xlu0 2
    %2300 = vperm.xlu0 %2299, %v1656
    %v2301 = vpop.permute.xlu0 %2300
    %2303 = vset.pattern.permute.xlu0 2
    %2304 = vperm.xlu0 %2303, %v1662
    %v2305 = vpop.permute.xlu0 %2304
    %2307 = vset.pattern.permute.xlu0 2
    %2308 = vperm.xlu0 %2307, %v1666
    %v2309 = vpop.permute.xlu0 %2308
    %2311 = vset.pattern.permute.xlu0 2
    %2312 = vperm.xlu0 %2311, %v1672
    %v2313 = vpop.permute.xlu0 %2312
    %2315 = vset.pattern.permute.xlu0 2
    %2316 = vperm.xlu0 %2315, %v1676
    %v2317 = vpop.permute.xlu0 %2316
    %2319 = vset.pattern.permute.xlu0 2
    %2320 = vperm.xlu0 %2319, %v1682
    %v2321 = vpop.permute.xlu0 %2320
    %2323 = vset.pattern.permute.xlu0 2
    %2324 = vperm.xlu0 %2323, %v1686
    %v2325 = vpop.permute.xlu0 %2324
    %v2327 = vlaneseq
    %v2328 = vshrl.u32 %v2327, 7
    %v2329 = vsub.s32 2, %v2328
    %v2330 = vrot.slane %v1724, %v2329
    %v2331 = vadd.f32 %v2297, %v2330
    %v2332 = vadd.f32 %v2301, %v2330
    %v2333 = vadd.f32 %v2305, %v2330
    %v2334 = vadd.f32 %v2309, %v2330
    %v2335 = vadd.f32 %v2313, %v2330
    %v2336 = vadd.f32 %v2317, %v2330
    %v2337 = vadd.f32 %v2321, %v2330
    %v2338 = vadd.f32 %v2325, %v2330
    %vm2339 = vcmp.gt.f32.partialorder %v2331, 0.0
    %vm2340 = vcmp.gt.f32.partialorder %v2332, 0.0
    %vm2341 = vcmp.gt.f32.partialorder %v2333, 0.0
    %vm2342 = vcmp.gt.f32.partialorder %v2334, 0.0
    %vm2343 = vcmp.gt.f32.partialorder %v2335, 0.0
    %vm2344 = vcmp.gt.f32.partialorder %v2336, 0.0
    %vm2345 = vcmp.gt.f32.partialorder %v2337, 0.0
    %vm2346 = vcmp.gt.f32.partialorder %v2338, 0.0
    %v2347 = vmul.f32 %v2331, 0.2
    %v2348 = vmul.f32 %v2332, 0.2
    %v2349 = vmul.f32 %v2333, 0.2
    %v2350 = vmul.f32 %v2334, 0.2
    %v2351 = vmul.f32 %v2335, 0.2
    %v2352 = vmul.f32 %v2336, 0.2
    %v2353 = vmul.f32 %v2337, 0.2
    %v2354 = vmul.f32 %v2338, 0.2
    %v2355 = vsel %vm2339, %v2331, %v2347
    %v2356 = vsel %vm2340, %v2332, %v2348
    %v2357 = vsel %vm2341, %v2333, %v2349
    %v2358 = vsel %vm2342, %v2334, %v2350
    %v2359 = vsel %vm2343, %v2335, %v2351
    %v2360 = vsel %vm2344, %v2336, %v2352
    %v2361 = vsel %vm2345, %v2337, %v2353
    %v2362 = vsel %vm2346, %v2338, %v2354
    %v2363 = vadd.f32 %v2355, %v31
    %v2364 = vadd.f32 %v2356, %v32
    %v2365 = vadd.f32 %v2357, %v33
    %v2366 = vadd.f32 %v2358, %v34
    %v2367 = vadd.f32 %v2359, %v35
    %v2368 = vadd.f32 %v2360, %v36
    %v2369 = vadd.f32 %v2361, %v37
    %v2370 = vadd.f32 %v2362, %v38
    %v2371 = vsel %vm289, %v2363, -inf
    %2372 = vmax.xlane.f32.xlu0 %v2371
    %v2373 = vpop.xlane.xlu0 %2372
    %v2374 = vsel %vm289, %v2364, -inf
    %2375 = vmax.xlane.f32.xlu0 %v2374
    %v2376 = vpop.xlane.xlu0 %2375
    %v2377 = vsel %vm289, %v2365, -inf
    %2378 = vmax.xlane.f32.xlu0 %v2377
    %v2379 = vpop.xlane.xlu0 %2378
    %v2380 = vsel %vm289, %v2366, -inf
    %2381 = vmax.xlane.f32.xlu0 %v2380
    %v2382 = vpop.xlane.xlu0 %2381
    %v2383 = vsel %vm289, %v2367, -inf
    %2384 = vmax.xlane.f32.xlu0 %v2383
    %v2385 = vpop.xlane.xlu0 %2384
    %v2386 = vsel %vm289, %v2368, -inf
    %2387 = vmax.xlane.f32.xlu0 %v2386
    %v2388 = vpop.xlane.xlu0 %2387
    %v2389 = vsel %vm289, %v2369, -inf
    %2390 = vmax.xlane.f32.xlu0 %v2389
    %v2391 = vpop.xlane.xlu0 %2390
    %v2392 = vsel %vm289, %v2370, -inf
    %2393 = vmax.xlane.f32.xlu0 %v2392
    %v2394 = vpop.xlane.xlu0 %2393
    %v2395 = vsub.f32 %v2363, %v2373
    %v2396 = vsub.f32 %v2364, %v2376
    %v2397 = vsub.f32 %v2365, %v2379
    %v2398 = vsub.f32 %v2366, %v2382
    %v2399 = vsub.f32 %v2367, %v2385
    %v2400 = vsub.f32 %v2368, %v2388
    %v2401 = vsub.f32 %v2369, %v2391
    %v2402 = vsub.f32 %v2370, %v2394
    %v2403 = vmul.f32 %v2395, 1.442695
    %v2404 = vpow.pop %v2403
    %v2405 = vmul.f32 %v2396, 1.442695
    %v2406 = vpow.pop %v2405
    %v2407 = vmul.f32 %v2397, 1.442695
    %v2408 = vpow.pop %v2407
    %v2409 = vmul.f32 %v2398, 1.442695
    %v2410 = vpow.pop %v2409
    %v2411 = vmul.f32 %v2399, 1.442695
    %v2412 = vpow.pop %v2411
    %v2413 = vmul.f32 %v2400, 1.442695
    %v2414 = vpow.pop %v2413
    %v2415 = vmul.f32 %v2401, 1.442695
    %v2416 = vpow.pop %v2415
    %v2417 = vmul.f32 %v2402, 1.442695
    %v2418 = vpow.pop %v2417
    %v2419 = vsel %vm39, %v2404, 0.0
    %v2420 = vsel %vm40, %v2406, 0.0
    %v2421 = vsel %vm41, %v2408, 0.0
    %v2422 = vsel %vm42, %v2410, 0.0
    %v2423 = vsel %vm43, %v2412, 0.0
    %v2424 = vsel %vm44, %v2414, 0.0
    %v2425 = vsel %vm45, %v2416, 0.0
    %v2426 = vsel %vm46, %v2418, 0.0
    %v2427 = vsel %vm289, %v2419, 0.0
    %2428 = vadd.xlane.f32.xlu0 %v2427
    %v2429 = vpop.xlane.xlu0 %2428
    %v2430 = vsel %vm289, %v2420, 0.0
    %2431 = vadd.xlane.f32.xlu0 %v2430
    %v2432 = vpop.xlane.xlu0 %2431
    %v2433 = vsel %vm289, %v2421, 0.0
    %2434 = vadd.xlane.f32.xlu0 %v2433
    %v2435 = vpop.xlane.xlu0 %2434
    %v2436 = vsel %vm289, %v2422, 0.0
    %2437 = vadd.xlane.f32.xlu0 %v2436
    %v2438 = vpop.xlane.xlu0 %2437
    %v2439 = vsel %vm289, %v2423, 0.0
    %2440 = vadd.xlane.f32.xlu0 %v2439
    %v2441 = vpop.xlane.xlu0 %2440
    %v2442 = vsel %vm289, %v2424, 0.0
    %2443 = vadd.xlane.f32.xlu0 %v2442
    %v2444 = vpop.xlane.xlu0 %2443
    %v2445 = vsel %vm289, %v2425, 0.0
    %2446 = vadd.xlane.f32.xlu0 %v2445
    %v2447 = vpop.xlane.xlu0 %2446
    %v2448 = vsel %vm289, %v2426, 0.0
    %2449 = vadd.xlane.f32.xlu0 %v2448
    %v2450 = vpop.xlane.xlu0 %2449
    %vm2451 = vcmp.gt.f32.partialorder %v2429, 0.0
    %vm2452 = vcmp.gt.f32.partialorder %v2432, 0.0
    %vm2453 = vcmp.gt.f32.partialorder %v2435, 0.0
    %vm2454 = vcmp.gt.f32.partialorder %v2438, 0.0
    %vm2455 = vcmp.gt.f32.partialorder %v2441, 0.0
    %vm2456 = vcmp.gt.f32.partialorder %v2444, 0.0
    %vm2457 = vcmp.gt.f32.partialorder %v2447, 0.0
    %vm2458 = vcmp.gt.f32.partialorder %v2450, 0.0
    %v2459 = vsel %vm2451, %v2429, 1.0
    %v2460 = vsel %vm2452, %v2432, 1.0
    %v2461 = vsel %vm2453, %v2435, 1.0
    %v2462 = vsel %vm2454, %v2438, 1.0
    %v2463 = vsel %vm2455, %v2441, 1.0
    %v2464 = vsel %vm2456, %v2444, 1.0
    %v2465 = vsel %vm2457, %v2447, 1.0
    %v2466 = vsel %vm2458, %v2450, 1.0
    %v2467 = vrcp.pop %v2459
    %v2468 = vrcp.pop %v2460
    %v2469 = vrcp.pop %v2461
    %v2470 = vrcp.pop %v2462
    %v2471 = vrcp.pop %v2463
    %v2472 = vrcp.pop %v2464
    %v2473 = vrcp.pop %v2465
    %v2474 = vrcp.pop %v2466
    %v2475 = vmul.f32 %v2419, %v2467
    %v2476 = vmul.f32 %v2420, %v2468
    %v2477 = vmul.f32 %v2421, %v2469
    %v2478 = vmul.f32 %v2422, %v2470
    %v2479 = vmul.f32 %v2423, %v2471
    %v2480 = vmul.f32 %v2424, %v2472
    %v2481 = vmul.f32 %v2425, %v2473
    %v2482 = vmul.f32 %v2426, %v2474
    %v2483 = vpack.c.bf16 %v2476, %v2475
    %v2484 = vpack.c.bf16 %v2478, %v2477
    %v2485 = vpack.c.bf16 %v2480, %v2479
    %v2486 = vpack.c.bf16 %v2482, %v2481
    %2487 = vrot.lane.b32.xlu0 %v1729, 64
    %v2488 = vpop.permute.xlu0 %2487
    %2489 = vrot.lane.b32.xlu0 %v1730, 64
    %v2490 = vpop.permute.xlu0 %2489
    %2491 = vrot.lane.b32.xlu0 %v1731, 64
    %v2492 = vpop.permute.xlu0 %2491
    %2493 = vrot.lane.b32.xlu0 %v1732, 64
    %v2494 = vpop.permute.xlu0 %2493
    %v2500 = vsel %vm289, %v2483, 0
    %v2503 = vsel %vm289, %v2484, 0
    %v2506 = vsel %vm289, %v2485, 0
    %v2509 = vsel %vm289, %v2486, 0
    %2511 = vmatprep.subr.bf16.mxu0 0
    %2512 = vmatpush1.bf16.msra.mxu0 %v2488
    %2513 = vmatprep.subr.bf16.mxu0 0
    %2514 = vmatpush1.bf16.msra.mxu0 %v2490
    %2515 = vmatprep.subr.bf16.mxu0 0
    %2516 = vmatpush1.bf16.msra.mxu0 %v2492
    %2517 = vmatprep.subr.bf16.mxu0 0
    %2518 = vmatpush1.bf16.msra.mxu0 %v2494
    %2519 = vmatprep.subr.bf16.mxu0 0
    %2520 = vmatpush1.bf16.msra.mxu0 0
    %2521 = vmatprep.subr.bf16.mxu0 0
    %2522 = vmatpush1.bf16.msra.mxu0 0
    %2523 = vmatprep.subr.bf16.mxu0 0
    %2524 = vmatpush1.bf16.msra.mxu0 0
    %2525 = vmatprep.subr.bf16.mxu0 0
    %2526 = vmatpush1.bf16.msra.mxu0 0
    %2527 = vmatprep.subr.bf16.mxu0 0
    %2528 = vmatpush1.bf16.msra.mxu0 0
    %2529 = vmatprep.subr.bf16.mxu0 0
    %2530 = vmatpush1.bf16.msra.mxu0 0
    %2531 = vmatprep.subr.bf16.mxu0 0
    %2532 = vmatpush1.bf16.msra.mxu0 0
    %2533 = vmatprep.subr.bf16.mxu0 0
    %2534 = vmatpush1.bf16.msra.mxu0 0
    %2535 = vmatprep.subr.bf16.mxu0 0
    %2536 = vmatpush1.bf16.msra.mxu0 0
    %2537 = vmatprep.subr.bf16.mxu0 0
    %2538 = vmatpush1.bf16.msra.mxu0 0
    %2539 = vmatprep.subr.bf16.mxu0 0
    %2540 = vmatpush1.bf16.msra.mxu0 0
    %2541 = vmatprep.subr.bf16.mxu0 0
    %2542 = vmatpush1.bf16.msra.mxu0 0
    %2543 = vmatprep.mubr.bf16.mxu0 0
    %2544 = vmatmul.mubr.bf16.gmra.mrb[0].mxu0 %v2500
    %v2545 = vpop.f32.mrb[0].mxu0
    %v2546 = vadd.f32 0.0, %v2545
    %v2547 = vpop.f32.mrb[0].mxu0
    %v2548 = vpop.f32.mrb[0].mxu0
    %v2549 = vadd.f32 0.0, %v2548
    %v2550 = vpop.f32.mrb[0].mxu0
    %2551 = vmatprep.mubr.bf16.mxu0 0
    %2552 = vmatmul.mubr.bf16.gmra.mrb[0].mxu0 %v2503
    %v2553 = vpop.f32.mrb[0].mxu0
    %v2554 = vadd.f32 0.0, %v2553
    %v2555 = vpop.f32.mrb[0].mxu0
    %v2556 = vpop.f32.mrb[0].mxu0
    %v2557 = vadd.f32 0.0, %v2556
    %v2558 = vpop.f32.mrb[0].mxu0
    %2559 = vmatprep.mubr.bf16.mxu0 0
    %2560 = vmatmul.mubr.bf16.gmra.mrb[0].mxu0 %v2506
    %v2561 = vpop.f32.mrb[0].mxu0
    %v2562 = vadd.f32 0.0, %v2561
    %v2563 = vpop.f32.mrb[0].mxu0
    %v2564 = vpop.f32.mrb[0].mxu0
    %v2565 = vadd.f32 0.0, %v2564
    %v2566 = vpop.f32.mrb[0].mxu0
    %2567 = vmatprep.mubr.bf16.mxu0 0
    %2568 = vmatmul.mubr.bf16.gmra.mrb[0].mxu0 %v2509
    %v2569 = vpop.f32.mrb[0].mxu0
    %v2570 = vadd.f32 0.0, %v2569
    %v2571 = vpop.f32.mrb[0].mxu0
    %v2572 = vpop.f32.mrb[0].mxu0
    %v2573 = vadd.f32 0.0, %v2572
    %v2574 = vpop.f32.mrb[0].mxu0
    %2575 = vdwg.mxu0
    %2576 = vset.pattern.permute.xlu0 3
    %2577 = vperm.xlu0 %2576, %v1652
    %v2578 = vpop.permute.xlu0 %2577
    %2580 = vset.pattern.permute.xlu0 3
    %2581 = vperm.xlu0 %2580, %v1656
    %v2582 = vpop.permute.xlu0 %2581
    %2584 = vset.pattern.permute.xlu0 3
    %2585 = vperm.xlu0 %2584, %v1662
    %v2586 = vpop.permute.xlu0 %2585
    %2588 = vset.pattern.permute.xlu0 3
    %2589 = vperm.xlu0 %2588, %v1666
    %v2590 = vpop.permute.xlu0 %2589
    %2592 = vset.pattern.permute.xlu0 3
    %2593 = vperm.xlu0 %2592, %v1672
    %v2594 = vpop.permute.xlu0 %2593
    %2596 = vset.pattern.permute.xlu0 3
    %2597 = vperm.xlu0 %2596, %v1676
    %v2598 = vpop.permute.xlu0 %2597
    %2600 = vset.pattern.permute.xlu0 3
    %2601 = vperm.xlu0 %2600, %v1682
    %v2602 = vpop.permute.xlu0 %2601
    %2604 = vset.pattern.permute.xlu0 3
    %2605 = vperm.xlu0 %2604, %v1686
    %v2606 = vpop.permute.xlu0 %2605
    %v2608 = vlaneseq
    %v2609 = vshrl.u32 %v2608, 7
    %v2610 = vsub.s32 3, %v2609
    %v2611 = vrot.slane %v1724, %v2610
    %v2612 = vadd.f32 %v2578, %v2611
    %v2613 = vadd.f32 %v2582, %v2611
    %v2614 = vadd.f32 %v2586, %v2611
    %v2615 = vadd.f32 %v2590, %v2611
    %v2616 = vadd.f32 %v2594, %v2611
    %v2617 = vadd.f32 %v2598, %v2611
    %v2618 = vadd.f32 %v2602, %v2611
    %v2619 = vadd.f32 %v2606, %v2611
    %vm2620 = vcmp.gt.f32.partialorder %v2612, 0.0
    %vm2621 = vcmp.gt.f32.partialorder %v2613, 0.0
    %vm2622 = vcmp.gt.f32.partialorder %v2614, 0.0
    %vm2623 = vcmp.gt.f32.partialorder %v2615, 0.0
    %vm2624 = vcmp.gt.f32.partialorder %v2616, 0.0
    %vm2625 = vcmp.gt.f32.partialorder %v2617, 0.0
    %vm2626 = vcmp.gt.f32.partialorder %v2618, 0.0
    %vm2627 = vcmp.gt.f32.partialorder %v2619, 0.0
    %v2628 = vmul.f32 %v2612, 0.2
    %v2629 = vmul.f32 %v2613, 0.2
    %v2630 = vmul.f32 %v2614, 0.2
    %v2631 = vmul.f32 %v2615, 0.2
    %v2632 = vmul.f32 %v2616, 0.2
    %v2633 = vmul.f32 %v2617, 0.2
    %v2634 = vmul.f32 %v2618, 0.2
    %v2635 = vmul.f32 %v2619, 0.2
    %v2636 = vsel %vm2620, %v2612, %v2628
    %v2637 = vsel %vm2621, %v2613, %v2629
    %v2638 = vsel %vm2622, %v2614, %v2630
    %v2639 = vsel %vm2623, %v2615, %v2631
    %v2640 = vsel %vm2624, %v2616, %v2632
    %v2641 = vsel %vm2625, %v2617, %v2633
    %v2642 = vsel %vm2626, %v2618, %v2634
    %v2643 = vsel %vm2627, %v2619, %v2635
    %v2644 = vadd.f32 %v2636, %v31
    %v2645 = vadd.f32 %v2637, %v32
    %v2646 = vadd.f32 %v2638, %v33
    %v2647 = vadd.f32 %v2639, %v34
    %v2648 = vadd.f32 %v2640, %v35
    %v2649 = vadd.f32 %v2641, %v36
    %v2650 = vadd.f32 %v2642, %v37
    %v2651 = vadd.f32 %v2643, %v38
    %v2652 = vsel %vm289, %v2644, -inf
    %2653 = vmax.xlane.f32.xlu0 %v2652
    %v2654 = vpop.xlane.xlu0 %2653
    %v2655 = vsel %vm289, %v2645, -inf
    %2656 = vmax.xlane.f32.xlu0 %v2655
    %v2657 = vpop.xlane.xlu0 %2656
    %v2658 = vsel %vm289, %v2646, -inf
    %2659 = vmax.xlane.f32.xlu0 %v2658
    %v2660 = vpop.xlane.xlu0 %2659
    %v2661 = vsel %vm289, %v2647, -inf
    %2662 = vmax.xlane.f32.xlu0 %v2661
    %v2663 = vpop.xlane.xlu0 %2662
    %v2664 = vsel %vm289, %v2648, -inf
    %2665 = vmax.xlane.f32.xlu0 %v2664
    %v2666 = vpop.xlane.xlu0 %2665
    %v2667 = vsel %vm289, %v2649, -inf
    %2668 = vmax.xlane.f32.xlu0 %v2667
    %v2669 = vpop.xlane.xlu0 %2668
    %v2670 = vsel %vm289, %v2650, -inf
    %2671 = vmax.xlane.f32.xlu0 %v2670
    %v2672 = vpop.xlane.xlu0 %2671
    %v2673 = vsel %vm289, %v2651, -inf
    %2674 = vmax.xlane.f32.xlu0 %v2673
    %v2675 = vpop.xlane.xlu0 %2674
    %v2676 = vsub.f32 %v2644, %v2654
    %v2677 = vsub.f32 %v2645, %v2657
    %v2678 = vsub.f32 %v2646, %v2660
    %v2679 = vsub.f32 %v2647, %v2663
    %v2680 = vsub.f32 %v2648, %v2666
    %v2681 = vsub.f32 %v2649, %v2669
    %v2682 = vsub.f32 %v2650, %v2672
    %v2683 = vsub.f32 %v2651, %v2675
    %v2684 = vmul.f32 %v2676, 1.442695
    %v2685 = vpow.pop %v2684
    %v2686 = vmul.f32 %v2677, 1.442695
    %v2687 = vpow.pop %v2686
    %v2688 = vmul.f32 %v2678, 1.442695
    %v2689 = vpow.pop %v2688
    %v2690 = vmul.f32 %v2679, 1.442695
    %v2691 = vpow.pop %v2690
    %v2692 = vmul.f32 %v2680, 1.442695
    %v2693 = vpow.pop %v2692
    %v2694 = vmul.f32 %v2681, 1.442695
    %v2695 = vpow.pop %v2694
    %v2696 = vmul.f32 %v2682, 1.442695
    %v2697 = vpow.pop %v2696
    %v2698 = vmul.f32 %v2683, 1.442695
    %v2699 = vpow.pop %v2698
    %v2700 = vsel %vm39, %v2685, 0.0
    %v2701 = vsel %vm40, %v2687, 0.0
    %v2702 = vsel %vm41, %v2689, 0.0
    %v2703 = vsel %vm42, %v2691, 0.0
    %v2704 = vsel %vm43, %v2693, 0.0
    %v2705 = vsel %vm44, %v2695, 0.0
    %v2706 = vsel %vm45, %v2697, 0.0
    %v2707 = vsel %vm46, %v2699, 0.0
    %v2708 = vsel %vm289, %v2700, 0.0
    %2709 = vadd.xlane.f32.xlu0 %v2708
    %v2710 = vpop.xlane.xlu0 %2709
    %v2711 = vsel %vm289, %v2701, 0.0
    %2712 = vadd.xlane.f32.xlu0 %v2711
    %v2713 = vpop.xlane.xlu0 %2712
    %v2714 = vsel %vm289, %v2702, 0.0
    %2715 = vadd.xlane.f32.xlu0 %v2714
    %v2716 = vpop.xlane.xlu0 %2715
    %v2717 = vsel %vm289, %v2703, 0.0
    %2718 = vadd.xlane.f32.xlu0 %v2717
    %v2719 = vpop.xlane.xlu0 %2718
    %v2720 = vsel %vm289, %v2704, 0.0
    %2721 = vadd.xlane.f32.xlu0 %v2720
    %v2722 = vpop.xlane.xlu0 %2721
    %v2723 = vsel %vm289, %v2705, 0.0
    %2724 = vadd.xlane.f32.xlu0 %v2723
    %v2725 = vpop.xlane.xlu0 %2724
    %v2726 = vsel %vm289, %v2706, 0.0
    %2727 = vadd.xlane.f32.xlu0 %v2726
    %v2728 = vpop.xlane.xlu0 %2727
    %v2729 = vsel %vm289, %v2707, 0.0
    %2730 = vadd.xlane.f32.xlu0 %v2729
    %v2731 = vpop.xlane.xlu0 %2730
    %vm2732 = vcmp.gt.f32.partialorder %v2710, 0.0
    %vm2733 = vcmp.gt.f32.partialorder %v2713, 0.0
    %vm2734 = vcmp.gt.f32.partialorder %v2716, 0.0
    %vm2735 = vcmp.gt.f32.partialorder %v2719, 0.0
    %vm2736 = vcmp.gt.f32.partialorder %v2722, 0.0
    %vm2737 = vcmp.gt.f32.partialorder %v2725, 0.0
    %vm2738 = vcmp.gt.f32.partialorder %v2728, 0.0
    %vm2739 = vcmp.gt.f32.partialorder %v2731, 0.0
    %v2740 = vsel %vm2732, %v2710, 1.0
    %v2741 = vsel %vm2733, %v2713, 1.0
    %v2742 = vsel %vm2734, %v2716, 1.0
    %v2743 = vsel %vm2735, %v2719, 1.0
    %v2744 = vsel %vm2736, %v2722, 1.0
    %v2745 = vsel %vm2737, %v2725, 1.0
    %v2746 = vsel %vm2738, %v2728, 1.0
    %v2747 = vsel %vm2739, %v2731, 1.0
    %v2748 = vrcp.pop %v2740
    %v2749 = vrcp.pop %v2741
    %v2750 = vrcp.pop %v2742
    %v2751 = vrcp.pop %v2743
    %v2752 = vrcp.pop %v2744
    %v2753 = vrcp.pop %v2745
    %v2754 = vrcp.pop %v2746
    %v2755 = vrcp.pop %v2747
    %v2756 = vmul.f32 %v2700, %v2748
    %v2757 = vmul.f32 %v2701, %v2749
    %v2758 = vmul.f32 %v2702, %v2750
    %v2759 = vmul.f32 %v2703, %v2751
    %v2760 = vmul.f32 %v2704, %v2752
    %v2761 = vmul.f32 %v2705, %v2753
    %v2762 = vmul.f32 %v2706, %v2754
    %v2763 = vmul.f32 %v2707, %v2755
    %v2764 = vpack.c.bf16 %v2757, %v2756
    %v2765 = vpack.c.bf16 %v2759, %v2758
    %v2766 = vpack.c.bf16 %v2761, %v2760
    %v2767 = vpack.c.bf16 %v2763, %v2762
    %2768 = vrot.lane.b32.xlu0 %v1729, 32
    %v2769 = vpop.permute.xlu0 %2768
    %2770 = vrot.lane.b32.xlu0 %v1730, 32
    %v2771 = vpop.permute.xlu0 %2770
    %2772 = vrot.lane.b32.xlu0 %v1731, 32
    %v2773 = vpop.permute.xlu0 %2772
    %2774 = vrot.lane.b32.xlu0 %v1732, 32
    %v2775 = vpop.permute.xlu0 %2774
    %v2781 = vsel %vm289, %v2764, 0
    %v2784 = vsel %vm289, %v2765, 0
    %v2787 = vsel %vm289, %v2766, 0
    %v2790 = vsel %vm289, %v2767, 0
    %2792 = vmatprep.subr.bf16.mxu0 0
    %2793 = vmatpush1.bf16.msra.mxu0 %v2769
    %2794 = vmatprep.subr.bf16.mxu0 0
    %2795 = vmatpush1.bf16.msra.mxu0 %v2771
    %2796 = vmatprep.subr.bf16.mxu0 0
    %2797 = vmatpush1.bf16.msra.mxu0 %v2773
    %2798 = vmatprep.subr.bf16.mxu0 0
    %2799 = vmatpush1.bf16.msra.mxu0 %v2775
    %2800 = vmatprep.subr.bf16.mxu0 0
    %2801 = vmatpush1.bf16.msra.mxu0 0
    %2802 = vmatprep.subr.bf16.mxu0 0
    %2803 = vmatpush1.bf16.msra.mxu0 0
    %2804 = vmatprep.subr.bf16.mxu0 0
    %2805 = vmatpush1.bf16.msra.mxu0 0
    %2806 = vmatprep.subr.bf16.mxu0 0
    %2807 = vmatpush1.bf16.msra.mxu0 0
    %2808 = vmatprep.subr.bf16.mxu0 0
    %2809 = vmatpush1.bf16.msra.mxu0 0
    %2810 = vmatprep.subr.bf16.mxu0 0
    %2811 = vmatpush1.bf16.msra.mxu0 0
    %2812 = vmatprep.subr.bf16.mxu0 0
    %2813 = vmatpush1.bf16.msra.mxu0 0
    %2814 = vmatprep.subr.bf16.mxu0 0
    %2815 = vmatpush1.bf16.msra.mxu0 0
    %2816 = vmatprep.subr.bf16.mxu0 0
    %2817 = vmatpush1.bf16.msra.mxu0 0
    %2818 = vmatprep.subr.bf16.mxu0 0
    %2819 = vmatpush1.bf16.msra.mxu0 0
    %2820 = vmatprep.subr.bf16.mxu0 0
    %2821 = vmatpush1.bf16.msra.mxu0 0
    %2822 = vmatprep.subr.bf16.mxu0 0
    %2823 = vmatpush1.bf16.msra.mxu0 0
    %2824 = vmatprep.mubr.bf16.mxu0 0
    %2825 = vmatmul.mubr.bf16.gmra.mrb[0].mxu0 %v2781
    %v2826 = vpop.f32.mrb[0].mxu0
    %v2827 = vadd.f32 0.0, %v2826
    %v2828 = vpop.f32.mrb[0].mxu0
    %v2829 = vpop.f32.mrb[0].mxu0
    %v2830 = vadd.f32 0.0, %v2829
    %v2831 = vpop.f32.mrb[0].mxu0
    %2832 = vmatprep.mubr.bf16.mxu0 0
    %2833 = vmatmul.mubr.bf16.gmra.mrb[0].mxu0 %v2784
    %v2834 = vpop.f32.mrb[0].mxu0
    %v2835 = vadd.f32 0.0, %v2834
    %v2836 = vpop.f32.mrb[0].mxu0
    %v2837 = vpop.f32.mrb[0].mxu0
    %v2838 = vadd.f32 0.0, %v2837
    %v2839 = vpop.f32.mrb[0].mxu0
    %2840 = vmatprep.mubr.bf16.mxu0 0
    %2841 = vmatmul.mubr.bf16.gmra.mrb[0].mxu0 %v2787
    %v2842 = vpop.f32.mrb[0].mxu0
    %v2843 = vadd.f32 0.0, %v2842
    %v2844 = vpop.f32.mrb[0].mxu0
    %v2845 = vpop.f32.mrb[0].mxu0
    %v2846 = vadd.f32 0.0, %v2845
    %v2847 = vpop.f32.mrb[0].mxu0
    %2848 = vmatprep.mubr.bf16.mxu0 0
    %2849 = vmatmul.mubr.bf16.gmra.mrb[0].mxu0 %v2790
    %v2850 = vpop.f32.mrb[0].mxu0
    %v2851 = vadd.f32 0.0, %v2850
    %v2852 = vpop.f32.mrb[0].mxu0
    %v2853 = vpop.f32.mrb[0].mxu0
    %v2854 = vadd.f32 0.0, %v2853
    %v2855 = vpop.f32.mrb[0].mxu0
    %2856 = vdwg.mxu0
    %2865 = vrot.lane.b32.xlu0 %v2265, 32
    %v2866 = vpop.permute.xlu0 %2865
    %2867 = vrot.lane.b32.xlu0 %v2268, 32
    %v2868 = vpop.permute.xlu0 %2867
    %2869 = vrot.lane.b32.xlu0 %v2273, 32
    %v2870 = vpop.permute.xlu0 %2869
    %2871 = vrot.lane.b32.xlu0 %v2276, 32
    %v2872 = vpop.permute.xlu0 %2871
    %2873 = vrot.lane.b32.xlu0 %v2281, 32
    %v2874 = vpop.permute.xlu0 %2873
    %2875 = vrot.lane.b32.xlu0 %v2284, 32
    %v2876 = vpop.permute.xlu0 %2875
    %2877 = vrot.lane.b32.xlu0 %v2289, 32
    %v2878 = vpop.permute.xlu0 %2877
    %2879 = vrot.lane.b32.xlu0 %v2292, 32
    %v2880 = vpop.permute.xlu0 %2879
    %2897 = vrot.lane.b32.xlu0 %v2546, 64
    %v2898 = vpop.permute.xlu0 %2897
    %2899 = vrot.lane.b32.xlu0 %v2549, 64
    %v2900 = vpop.permute.xlu0 %2899
    %2901 = vrot.lane.b32.xlu0 %v2554, 64
    %v2902 = vpop.permute.xlu0 %2901
    %2903 = vrot.lane.b32.xlu0 %v2557, 64
    %v2904 = vpop.permute.xlu0 %2903
    %2905 = vrot.lane.b32.xlu0 %v2562, 64
    %v2906 = vpop.permute.xlu0 %2905
    %2907 = vrot.lane.b32.xlu0 %v2565, 64
    %v2908 = vpop.permute.xlu0 %2907
    %2909 = vrot.lane.b32.xlu0 %v2570, 64
    %v2910 = vpop.permute.xlu0 %2909
    %2911 = vrot.lane.b32.xlu0 %v2573, 64
    %v2912 = vpop.permute.xlu0 %2911
    %2929 = vrot.lane.b32.xlu0 %v2827, 96
    %v2930 = vpop.permute.xlu0 %2929
    %2931 = vrot.lane.b32.xlu0 %v2830, 96
    %v2932 = vpop.permute.xlu0 %2931
    %2933 = vrot.lane.b32.xlu0 %v2835, 96
    %v2934 = vpop.permute.xlu0 %2933
    %2935 = vrot.lane.b32.xlu0 %v2838, 96
    %v2936 = vpop.permute.xlu0 %2935
    %2937 = vrot.lane.b32.xlu0 %v2843, 96
    %v2938 = vpop.permute.xlu0 %2937
    %2939 = vrot.lane.b32.xlu0 %v2846, 96
    %v2940 = vpop.permute.xlu0 %2939
    %2941 = vrot.lane.b32.xlu0 %v2851, 96
    %v2942 = vpop.permute.xlu0 %2941
    %2943 = vrot.lane.b32.xlu0 %v2854, 96
    %v2944 = vpop.permute.xlu0 %2943
    %v2953 = vsel %vm1426, %v1980, %v2866
    %v2954 = vsel %vm1426, %v1983, %v2868
    %v2955 = vsel %vm1426, %v1988, %v2870
    %v2956 = vsel %vm1426, %v1991, %v2872
    %v2957 = vsel %vm1426, %v1996, %v2874
    %v2958 = vsel %vm1426, %v1999, %v2876
    %v2959 = vsel %vm1426, %v2004, %v2878
    %v2960 = vsel %vm1426, %v2007, %v2880
    %v2961 = vsel %vm289, %v2953, %v2898
    %v2962 = vsel %vm289, %v2954, %v2900
    %v2963 = vsel %vm289, %v2955, %v2902
    %v2964 = vsel %vm289, %v2956, %v2904
    %v2965 = vsel %vm289, %v2957, %v2906
    %v2966 = vsel %vm289, %v2958, %v2908
    %v2967 = vsel %vm289, %v2959, %v2910
    %v2968 = vsel %vm289, %v2960, %v2912
    %v2969 = vsel %vm1443, %v2961, %v2930
    %v2970 = vsel %vm1443, %v2962, %v2932
    %v2971 = vsel %vm1443, %v2963, %v2934
    %v2972 = vsel %vm1443, %v2964, %v2936
    %v2973 = vsel %vm1443, %v2965, %v2938
    %v2974 = vsel %vm1443, %v2966, %v2940
    %v2975 = vsel %vm1443, %v2967, %v2942
    %v2976 = vsel %vm1443, %v2968, %v2944
    %v2977 = vld [vmem:[%s7] sm:$0x1]
    %v2979 = vlaneseq
    %v2980 = vshrl.u32 %v2979, 7
    %v2981 = vsub.s32 0, %v2980
    %v2982 = vrot.slane %v2977, %v2981
    %v2984 = vadd.f32 %v2969, %v2982
    %v2985 = vadd.f32 %v2970, %v2982
    %v2986 = vadd.f32 %v2971, %v2982
    %v2987 = vadd.f32 %v2972, %v2982
    %v2988 = vadd.f32 %v2973, %v2982
    %v2989 = vadd.f32 %v2974, %v2982
    %v2990 = vadd.f32 %v2975, %v2982
    %v2991 = vadd.f32 %v2976, %v2982
    %vm2992 = vcmp.gt.f32.partialorder %v2984, 0.0
    %vm2993 = vcmp.gt.f32.partialorder %v2985, 0.0
    %vm2994 = vcmp.gt.f32.partialorder %v2986, 0.0
    %vm2995 = vcmp.gt.f32.partialorder %v2987, 0.0
    %vm2996 = vcmp.gt.f32.partialorder %v2988, 0.0
    %vm2997 = vcmp.gt.f32.partialorder %v2989, 0.0
    %vm2998 = vcmp.gt.f32.partialorder %v2990, 0.0
    %vm2999 = vcmp.gt.f32.partialorder %v2991, 0.0
    %v3000 = vmin.f32 %v2984, 0.0
    %v3001 = vmin.f32 %v2985, 0.0
    %v3002 = vmin.f32 %v2986, 0.0
    %v3003 = vmin.f32 %v2987, 0.0
    %v3004 = vmin.f32 %v2988, 0.0
    %v3005 = vmin.f32 %v2989, 0.0
    %v3006 = vmin.f32 %v2990, 0.0
    %v3007 = vmin.f32 %v2991, 0.0
    %v3008 = vmul.f32 %v3000, 1.442695
    %v3009 = vpow.pop %v3008
    %v3010 = vmul.f32 %v3001, 1.442695
    %v3011 = vpow.pop %v3010
    %v3012 = vmul.f32 %v3002, 1.442695
    %v3013 = vpow.pop %v3012
    %v3014 = vmul.f32 %v3003, 1.442695
    %v3015 = vpow.pop %v3014
    %v3016 = vmul.f32 %v3004, 1.442695
    %v3017 = vpow.pop %v3016
    %v3018 = vmul.f32 %v3005, 1.442695
    %v3019 = vpow.pop %v3018
    %v3020 = vmul.f32 %v3006, 1.442695
    %v3021 = vpow.pop %v3020
    %v3022 = vmul.f32 %v3007, 1.442695
    %v3023 = vpow.pop %v3022
    %v3024 = vsub.f32 %v3009, 1.0
    %v3025 = vsub.f32 %v3011, 1.0
    %v3026 = vsub.f32 %v3013, 1.0
    %v3027 = vsub.f32 %v3015, 1.0
    %v3028 = vsub.f32 %v3017, 1.0
    %v3029 = vsub.f32 %v3019, 1.0
    %v3030 = vsub.f32 %v3021, 1.0
    %v3031 = vsub.f32 %v3023, 1.0
    %v3032 = vsel %vm2992, %v2984, %v3024
    %v3033 = vsel %vm2993, %v2985, %v3025
    %v3034 = vsel %vm2994, %v2986, %v3026
    %v3035 = vsel %vm2995, %v2987, %v3027
    %v3036 = vsel %vm2996, %v2988, %v3028
    %v3037 = vsel %vm2997, %v2989, %v3029
    %v3038 = vsel %vm2998, %v2990, %v3030
    %v3039 = vsel %vm2999, %v2991, %v3031
    %3040 = vst [vmem:[#allocation2] sm:$0xff] %v3032
    %3041 = vst [vmem:[#allocation2 + $0x8] sm:$0xff] %v3033
    %3042 = vst [vmem:[#allocation2 + $0x10] sm:$0xff] %v3034
    %3043 = vst [vmem:[#allocation2 + $0x18] sm:$0xff] %v3035
    %3044 = vst [vmem:[#allocation2 + $0x20] sm:$0xff] %v3036
    %3045 = vst [vmem:[#allocation2 + $0x28] sm:$0xff] %v3037
    %3046 = vst [vmem:[#allocation2 + $0x30] sm:$0xff] %v3038
    %3047 = vst [vmem:[#allocation2 + $0x38] sm:$0xff] %v3039
    // Predicated region
    $region34: #{tpu_custom_call.1} parent=1 // pred_check
      _
    $region35: #{tpu_custom_call.1} parent=1 // pred_check_branch
      %3049 = sbr.rel (0) target = $region37
    $region36: #{tpu_custom_call.1} parent=1 // pred_region
      %s3051 = ssub.s32 1024, 1024
      %3052 = vsyncadd [#allocation3], %s3051
      %s3053 = sshll.u32 [#allocation2], 4
      %s3054 = int_to_ptr.vmem [resolvable:$true] %s3053
      %3059 = dma.vmem_to_hbm [thread:$0]  %s3054, 1024, %s8, [#allocation3], 128, 128, 8
    $region37: #{tpu_custom_call.1} parent=1 // pred_fallthru
      _
    // Predicated region
    $region38: #{tpu_custom_call.1} parent=1 // pred_check
      _
    $region39: #{tpu_custom_call.1} parent=1 // pred_check_branch
      %3061 = sbr.rel (0) target = $region41
    $region40: #{tpu_custom_call.1} parent=1 // pred_region
      %3062 = dma.done [#allocation3], 1024
    $region41: #{tpu_custom_call.1} parent=1 // pred_fallthru
      _
    %3063 = vsyncpa [#allocation3], 1

</llo_original>
